<compile_context>
chip_gen: v6e
topology: v6e:2x2x1
jax: 0.10.0
libtpu: 0.0.40
codegen_flags: <defaults>
</compile_context>

<pallas_src>
import functools

import jax
import jax.numpy as jnp
import numpy as np
from jax.experimental import pallas as pl
from jax.experimental.pallas import tpu as pltpu

EPS = 1e-5
MXU_DTYPE = jnp.bfloat16        # conv matmul operand dtype (accumulation stays f32)
HANDOFF_DTYPE = jnp.bfloat16    # inter-kernel (HBM) activation storage dtype
_HI = jax.lax.Precision.HIGHEST


# ----------------------------------------------------------------------------
# In-kernel helpers (operate on flattened (C, H*W) activations)
# ----------------------------------------------------------------------------
def _flat_shift(x, off):
    """y[:, p] = x[:, p + off] if 0 <= p + off < H*W else 0   (static off)."""
    c, hw = x.shape
    if off == 0:
        return x
    if off > 0:
        return jnp.concatenate([x[:, off:], jnp.zeros((c, off), x.dtype)], axis=1)
    return jnp.concatenate([jnp.zeros((c, -off), x.dtype), x[:, :hw + off]], axis=1)


def _conv3x3_acc(x, w_tap_ref, masks, img_w, acc=None):
    """Accumulate a 3x3 same-padded conv on a row-major flattened image.

    x:         (Cin, H*W), already cast once to the MXU operand dtype
    w_tap_ref: Ref (9, Cout, Cin)  -- per-tap weight matrices (OIHW[:, :, dy, dx])
    masks:     (2, H*W) {0,1}: row 0 zeroes the last image column, row 1 the first
    Returns / extends an f32 (Cout, H*W) accumulator.  9 small MXU matmuls,
    no (9*Cin, H*W) im2col buffer, no concat.
    """
    # Horizontal borders: pre-mask the *source* once per dx class (2 multiplies
    # per conv).  Vertical borders are handled by _flat_shift's zero fill.
    srcs = (x * masks[0:1, :],   # dx == 0 taps read source column w-1
            x,                   # dx == 1 taps need no mask
            x * masks[1:2, :])   # dx == 2 taps read source column w+1
    for dy in range(3):
        for dx in range(3):
            off = (dy - 1) * img_w + (dx - 1)
            tap = _flat_shift(srcs[dx], off)
            p = jnp.dot(w_tap_ref[3 * dy + dx], tap,
                        preferred_element_type=jnp.float32)
            acc = p if acc is None else acc + p
    return acc


def _bn_stats(y):
    """Per-sample per-channel (mean, centered sum of squares) -> (C, 2).

    Centered partial sums (Chan combine on the host) avoid the catastrophic
    cancellation of E[x^2] - E[x]^2 at large B*H*W.  Computed from the f32
    conv accumulator BEFORE any bf16 cast.
    """
    hw = y.shape[1]
    m = jnp.sum(y, axis=1, keepdims=True) * (1.0 / hw)
    d = y - m
    return jnp.concatenate([m, jnp.sum(d * d, axis=1, keepdims=True)], axis=1)


# ----------------------------------------------------------------------------
# Kernel 1: concat-free conv1 over (x2 || upsampled x1) + BN1 partial stats
# ----------------------------------------------------------------------------
def _conv1_kernel(img_w, x2_ref, x1u_ref, m_ref, wa_ref, wb_ref, y_ref, s_ref):
    # x2: (1, C2, HW) f32   x1u: (1, C1, HW) f32   m: (2, HW)
    # wa: (9, Cmid, C2)     wb: (9, Cmid, C1)      y: (1, Cmid, HW) bf16
    masks = m_ref[...]
    acc = _conv3x3_acc(x2_ref[0].astype(MXU_DTYPE), wa_ref, masks, img_w)
    acc = _conv3x3_acc(x1u_ref[0].astype(MXU_DTYPE), wb_ref, masks, img_w, acc)
    s_ref[0] = _bn_stats(acc)              # BN1 stats from the f32 accumulator
    y_ref[0] = acc.astype(y_ref.dtype)     # bf16 handoff to K2


# ----------------------------------------------------------------------------
# Kernel 2: BN1 (batch stats) + ReLU + conv2 + BN2 partial stats
# ----------------------------------------------------------------------------
def _bn_relu_conv2_kernel(img_w, y1_ref, sc_ref, sh_ref, m_ref, w_ref, y_ref, s_ref):
    # Elementwise math in f32 (v5e VPU has no bf16); single cast for the MXU.
    a = jnp.maximum(y1_ref[0].astype(jnp.float32) * sc_ref[...] + sh_ref[...], 0.0)
    acc = _conv3x3_acc(a.astype(MXU_DTYPE), w_ref, m_ref[...], img_w)
    s_ref[0] = _bn_stats(acc)
    y_ref[0] = acc.astype(y_ref.dtype)


# ----------------------------------------------------------------------------
# Kernel 3: BN2 (batch stats) + ReLU
# ----------------------------------------------------------------------------
def _bn_relu_kernel(y_ref, sc_ref, sh_ref, o_ref):
    o_ref[0] = jnp.maximum(y_ref[0].astype(jnp.float32) * sc_ref[...] + sh_ref[...],
                           0.0)


# ----------------------------------------------------------------------------
# Host-side constants / scalar glue (all tiny)
# ----------------------------------------------------------------------------
def _interp_matrix_align_corners(n_out, n_in):
    """Rows = torch Upsample(bilinear, align_corners=True) interpolation weights."""
    if n_in == 1:
        return jnp.ones((n_out, 1), jnp.float32)
    src = jnp.arange(n_out, dtype=jnp.float32) * (n_in - 1) / max(n_out - 1, 1)
    lo = jnp.clip(jnp.floor(src).astype(jnp.int32), 0, n_in - 2)
    frac = src - lo.astype(jnp.float32)
    return (jax.nn.one_hot(lo, n_in, dtype=jnp.float32) * (1.0 - frac)[:, None]
            + jax.nn.one_hot(lo + 1, n_in, dtype=jnp.float32) * frac[:, None])


def _upsample2x_pad(x1, H, W):
    """Separable bilinear x2 (align_corners=True) + F.pad as two small einsums.

    Replaces the former dense (h1*w1, H*W) kron matrix: O(C1*H*W) work and
    bytes instead of O((H*W)^2/4).
    """
    _, _, h1, w1 = x1.shape
    ah = _interp_matrix_align_corners(2 * h1, h1)
    aw = _interp_matrix_align_corners(2 * w1, w1)
    xu = jnp.einsum("oh,bchw->bcow", ah, x1, precision=_HI)
    xu = jnp.einsum("pw,bcow->bcop", aw, xu, precision=_HI)
    dY, dX = H - 2 * h1, W - 2 * w1
    return jnp.pad(xu, ((0, 0), (0, 0),
                        (dY // 2, dY - dY // 2), (dX // 2, dX - dX // 2)))


def _conv_border_masks(H, W):
    """(2, H*W) {0,1}: row 0 zeroes the last image column, row 1 the first."""
    col = jnp.arange(W, dtype=jnp.float32)
    m = jnp.stack([(col != W - 1).astype(jnp.float32),
                   (col != 0).astype(jnp.float32)], axis=0)        # (2, W)
    return jnp.tile(m, (1, H))                                      # (2, H*W)


def _bn_scale_shift(stats, gamma, beta, hw):
    """Chan-combine per-sample (mean, centered SS) into BN scale/shift."""
    mb, ssq = stats[:, :, 0], stats[:, :, 1]                        # (B, C)
    bsz = stats.shape[0]
    mean = jnp.mean(mb, axis=0)
    var = (jnp.sum(ssq, axis=0) + hw * jnp.sum((mb - mean) ** 2, axis=0)) / (bsz * hw)
    scale = gamma / jnp.sqrt(var + EPS)                             # biased var (PyTorch BN)
    shift = beta - mean * scale
    return scale.reshape(-1, 1), shift.reshape(-1, 1)


# ----------------------------------------------------------------------------
# Module-level forward
# ----------------------------------------------------------------------------
def up_forward(x1_nchw, x2_nchw, params):
    B, C1, h1, w1 = x1_nchw.shape
    _, C2, H, W = x2_nchw.shape
    HW = H * W
    Cmid = params["w1a"].shape[1]
    Cout = params["w2"].shape[1]

    # XLA prologue: separable bilinear x2 upsample + F.pad of x1 (the smallest
    # tensor in the block).  Free row-major reshapes to the lane-dense layout.
    x1u = _upsample2x_pad(x1_nchw, H, W).reshape(B, C1, HW)
    x2f = x2_nchw.reshape(B, C2, HW)
    masks = _conv_border_masks(H, W).astype(MXU_DTYPE)

    par = pltpu.CompilerParams(
        dimension_semantics=("parallel",),
        vmem_limit_bytes=48 * 1024 * 1024,   # above the 16/32 MiB scoped defaults,
    )                                        # still under v7x's 64 MiB physical VMEM
    # TODO(synk): at real UNet sizes add an H-strip grid axis (1-row halo) so
    # v7x's two TensorCores both get work and per-strip blocks fit VMEM; then
    # sweep pipeline_mode=pl.Buffered(2..3) on the activation in_specs.

    y1, s1 = pl.pallas_call(
        functools.partial(_conv1_kernel, W),
        out_shape=(jax.ShapeDtypeStruct((B, Cmid, HW), HANDOFF_DTYPE),
                   jax.ShapeDtypeStruct((B, Cmid, 2), jnp.float32)),
        grid=(B,),
        in_specs=[
            pl.BlockSpec((1, C2, HW), lambda b: (b, 0, 0)),
            pl.BlockSpec((1, C1, HW), lambda b: (b, 0, 0)),
            pl.BlockSpec((2, HW), lambda b: (0, 0)),
            pl.BlockSpec((9, Cmid, C2), lambda b: (0, 0, 0)),
            pl.BlockSpec((9, Cmid, C1), lambda b: (0, 0, 0)),
        ],
        out_specs=(pl.BlockSpec((1, Cmid, HW), lambda b: (b, 0, 0)),
                   pl.BlockSpec((1, Cmid, 2), lambda b: (b, 0, 0))),
        compiler_params=par,
    )(x2f, x1u, masks, params["w1a"], params["w1b"])

    sc1, sh1 = _bn_scale_shift(s1, params["g1"], params["b1"], HW)

    y2, s2 = pl.pallas_call(
        functools.partial(_bn_relu_conv2_kernel, W),
        out_shape=(jax.ShapeDtypeStruct((B, Cout, HW), HANDOFF_DTYPE),
                   jax.ShapeDtypeStruct((B, Cout, 2), jnp.float32)),
        grid=(B,),
        in_specs=[
            pl.BlockSpec((1, Cmid, HW), lambda b: (b, 0, 0)),
            pl.BlockSpec((Cmid, 1), lambda b: (0, 0)),
            pl.BlockSpec((Cmid, 1), lambda b: (0, 0)),
            pl.BlockSpec((2, HW), lambda b: (0, 0)),
            pl.BlockSpec((9, Cout, Cmid), lambda b: (0, 0, 0)),
        ],
        out_specs=(pl.BlockSpec((1, Cout, HW), lambda b: (b, 0, 0)),
                   pl.BlockSpec((1, Cout, 2), lambda b: (b, 0, 0))),
        compiler_params=par,
    )(y1, sc1, sh1, masks, params["w2"])

    sc2, sh2 = _bn_scale_shift(s2, params["g2"], params["b2"], HW)

    out = pl.pallas_call(
        _bn_relu_kernel,
        out_shape=jax.ShapeDtypeStruct((B, Cout, HW), jnp.float32),
        grid=(B,),
        in_specs=[
            pl.BlockSpec((1, Cout, HW), lambda b: (b, 0, 0)),
            pl.BlockSpec((Cout, 1), lambda b: (0, 0)),
            pl.BlockSpec((Cout, 1), lambda b: (0, 0)),
        ],
        out_specs=pl.BlockSpec((1, Cout, HW), lambda b: (b, 0, 0)),
        compiler_params=par,
    )(y2, sc2, sh2)

    return out.reshape(B, Cout, H, W)        # free: back to PyTorch NCHW


# ----------------------------------------------------------------------------
# Pure-JAX f32 reference (PyTorch semantics) for correctness checking
# ----------------------------------------------------------------------------
def ref_up_forward(x1, x2, w1_oihw, w2_oihw, g1, b1, g2, b2):
    _, _, h1, w1 = x1.shape
    _, _, H, W = x2.shape
    x1u = _upsample2x_pad(x1, H, W)
    x = jnp.concatenate([x2, x1u], axis=1)

    def conv(z, w):
        return jax.lax.conv_general_dilated(
            z, w, (1, 1), "SAME",
            dimension_numbers=("NCHW", "OIHW", "NCHW"), precision=_HI)

    def bn_relu(z, g, b):
        m = jnp.mean(z, axis=(0, 2, 3), keepdims=True)
        v = jnp.mean((z - m) ** 2, axis=(0, 2, 3), keepdims=True)
        y = (z - m) / jnp.sqrt(v + EPS) * g.reshape(1, -1, 1, 1) + b.reshape(1, -1, 1, 1)
        return jnp.maximum(y, 0.0)

    y = bn_relu(conv(x, w1_oihw), g1, b1)
    return bn_relu(conv(y, w2_oihw), g2, b2)


if __name__ == "__main__":
    key = jax.random.PRNGKey(0)
    k1, k2, kw1, kw2, kg1, kb1, kg2, kb2 = jax.random.split(key, 8)

    B = 2
    in_channels = 8                       # channel count after torch.cat([x2, x1u])
    out_channels = 8
    mid_channels = in_channels // 2       # DoubleConv(in, out, in // 2)  (bilinear=True)
    C1 = in_channels // 2                 # x1 (low-res) channels
    C2 = in_channels // 2                 # x2 (skip) channels

    # PyTorch-convention NCHW inputs: x1 is the low-res map, x2 is the skip.
    x1 = jax.random.normal(k1, (B, C1, 8, 8), jnp.float32)
    x2 = jax.random.normal(k2, (B, C2, 16, 16), jnp.float32)

    w1_oihw = 0.1 * jax.random.normal(kw1, (mid_channels, in_channels, 3, 3), jnp.float32)
    w2_oihw = 0.1 * jax.random.normal(kw2, (out_channels, mid_channels, 3, 3), jnp.float32)
    g1 = 1.0 + 0.1 * jax.random.normal(kg1, (mid_channels,), jnp.float32)
    b1 = 0.1 * jax.random.normal(kb1, (mid_channels,), jnp.float32)
    g2 = 1.0 + 0.1 * jax.random.normal(kg2, (out_channels,), jnp.float32)
    b2 = 0.1 * jax.random.normal(kb2, (out_channels,), jnp.float32)

    # Per-tap weight packing (9, Cout, Cin): t = 3*dy + dx, columns split into
    # the x2-channel block (first C2 input channels of conv1) and the x1u block.
    def pack_taps(w_oihw):
        o, i = w_oihw.shape[0], w_oihw.shape[1]
        return jnp.transpose(w_oihw, (2, 3, 0, 1)).reshape(9, o, i).astype(MXU_DTYPE)

    params = dict(
        w1a=pack_taps(w1_oihw[:, :C2]),          # conv1 columns fed by x2
        w1b=pack_taps(w1_oihw[:, C2:]),          # conv1 columns fed by upsampled x1
        w2=pack_taps(w2_oihw),
        g1=g1, b1=b1, g2=g2, b2=b2,
    )

    out = jax.block_until_ready(jax.jit(up_forward)(x1, x2, params))
    assert out.shape == (B, out_channels, 16, 16)

    ref = ref_up_forward(x1, x2, w1_oihw, w2_oihw, g1, b1, g2, b2)
    # bf16 MXU operands + bf16 inter-kernel storage (f32 accumulation and f32
    # BN statistics) give ~1% deviation vs. the f32 reference.  Set MXU_DTYPE
    # and HANDOFF_DTYPE to jnp.float32 above for tight (1e-5) parity.
    np.testing.assert_allclose(np.asarray(out), np.asarray(ref), rtol=3e-2, atol=3e-2)
    print("KERNEL_OK")
</pallas_src>

<mosaic_0001>
module attributes {stable_mosaic.version = 11 : i64} {
  func.func @_conv1_kernel(%arg0: i32, %arg1: memref<1x4x256xf32, #tpu.memory_space<vmem>>, %arg2: memref<1x4x256xf32, #tpu.memory_space<vmem>>, %arg3: memref<2x256xbf16, #tpu.memory_space<vmem>>, %arg4: memref<9x4x4xbf16, #tpu.memory_space<vmem>>, %arg5: memref<9x4x4xbf16, #tpu.memory_space<vmem>>, %arg6: memref<1x4x256xbf16, #tpu.memory_space<vmem>>, %arg7: memref<1x4x2xf32, #tpu.memory_space<vmem>>) attributes {dimension_semantics = [#tpu.dimension_semantics<parallel>], iteration_bounds = array<i64: 2>, scalar_prefetch = 0 : i64, scratch_operands = 0 : i64, tpu.core_type = #tpu.core_type<tc>, window_params = [{transform_indices = @transform_0, window_bounds = array<i64: 1, 4, 256>}, {transform_indices = @transform_1, window_bounds = array<i64: 1, 4, 256>}, {pipeline_mode = #tpu.pipeline_mode<synchronous>, transform_indices = @transform_2, window_bounds = array<i64: 2, 256>}, {pipeline_mode = #tpu.pipeline_mode<synchronous>, transform_indices = @transform_3, window_bounds = array<i64: 9, 4, 4>}, {pipeline_mode = #tpu.pipeline_mode<synchronous>, transform_indices = @transform_4, window_bounds = array<i64: 9, 4, 4>}, {transform_indices = @transform_5, window_bounds = array<i64: 1, 4, 256>}, {transform_indices = @transform_6, window_bounds = array<i64: 1, 4, 2>}]} {
    %c0 = arith.constant 0 : index
    %c0_0 = arith.constant 0 : index
    %0 = vector.load %arg3[%c0, %c0_0] : memref<2x256xbf16, #tpu.memory_space<vmem>>, vector<2x256xbf16>
    %c0_1 = arith.constant 0 : index
    %c0_2 = arith.constant 0 : index
    %c0_3 = arith.constant 0 : index
    %1 = vector.load %arg1[%c0_1, %c0_2, %c0_3] : memref<1x4x256xf32, #tpu.memory_space<vmem>>, vector<1x4x256xf32>
    %2 = vector.shape_cast %1 : vector<1x4x256xf32> to vector<4x256xf32>
    %3 = arith.truncf %2 : vector<4x256xf32> to vector<4x256xbf16>
    %4 = vector.extract_strided_slice %0 {offsets = [0, 0], sizes = [1, 256], strides = [1, 1]} : vector<2x256xbf16> to vector<1x256xbf16>
    %5 = vector.broadcast %4 : vector<1x256xbf16> to vector<4x256xbf16>
    %6 = arith.mulf %3, %5 : vector<4x256xbf16>
    %7 = vector.extract_strided_slice %0 {offsets = [1, 0], sizes = [1, 256], strides = [1, 1]} : vector<2x256xbf16> to vector<1x256xbf16>
    %8 = vector.broadcast %7 : vector<1x256xbf16> to vector<4x256xbf16>
    %9 = arith.mulf %3, %8 : vector<4x256xbf16>
    %cst = arith.constant 0.000000e+00 : bf16
    %10 = vector.broadcast %cst : bf16 to vector<4x17xbf16>
    %11 = vector.extract_strided_slice %6 {offsets = [0, 0], sizes = [4, 239], strides = [1, 1]} : vector<4x256xbf16> to vector<4x239xbf16>
    %12 = tpu.concatenate %10, %11 in 1 : vector<4x17xbf16>, vector<4x239xbf16> -> vector<4x256xbf16>
    %c0_4 = arith.constant 0 : index
    %c0_5 = arith.constant 0 : index
    %c0_6 = arith.constant 0 : index
    %13 = vector.load %arg4[%c0_4, %c0_5, %c0_6] : memref<9x4x4xbf16, #tpu.memory_space<vmem>>, vector<1x4x4xbf16>
    %14 = vector.shape_cast %13 : vector<1x4x4xbf16> to vector<4x4xbf16>
    %cst_7 = arith.constant dense<0.000000e+00> : vector<4x256xf32>
    %15 = tpu.matmul %14, %12, %cst_7 {dimension_numbers = #tpu.dot_dimension_numbers<[1], [0], [0], [1], [0, 0, 1, 1], [], []>} : vector<4x4xbf16>, vector<4x256xbf16>, vector<4x256xf32> -> vector<4x256xf32>
    %cst_8 = arith.constant 0.000000e+00 : bf16
    %16 = vector.broadcast %cst_8 : bf16 to vector<4x16xbf16>
    %17 = vector.extract_strided_slice %3 {offsets = [0, 0], sizes = [4, 240], strides = [1, 1]} : vector<4x256xbf16> to vector<4x240xbf16>
    %18 = tpu.concatenate %16, %17 in 1 : vector<4x16xbf16>, vector<4x240xbf16> -> vector<4x256xbf16>
    %c1 = arith.constant 1 : index
    %c0_9 = arith.constant 0 : index
    %c0_10 = arith.constant 0 : index
    %19 = vector.load %arg4[%c1, %c0_9, %c0_10] : memref<9x4x4xbf16, #tpu.memory_space<vmem>>, vector<1x4x4xbf16>
    %20 = vector.shape_cast %19 : vector<1x4x4xbf16> to vector<4x4xbf16>
    %cst_11 = arith.constant dense<0.000000e+00> : vector<4x256xf32>
    %21 = tpu.matmul %20, %18, %cst_11 {dimension_numbers = #tpu.dot_dimension_numbers<[1], [0], [0], [1], [0, 0, 1, 1], [], []>} : vector<4x4xbf16>, vector<4x256xbf16>, vector<4x256xf32> -> vector<4x256xf32>
    %22 = arith.addf %15, %21 : vector<4x256xf32>
    %cst_12 = arith.constant 0.000000e+00 : bf16
    %23 = vector.broadcast %cst_12 : bf16 to vector<4x15xbf16>
    %24 = vector.extract_strided_slice %9 {offsets = [0, 0], sizes = [4, 241], strides = [1, 1]} : vector<4x256xbf16> to vector<4x241xbf16>
    %25 = tpu.concatenate %23, %24 in 1 : vector<4x15xbf16>, vector<4x241xbf16> -> vector<4x256xbf16>
    %c2 = arith.constant 2 : index
    %c0_13 = arith.constant 0 : index
    %c0_14 = arith.constant 0 : index
    %26 = vector.load %arg4[%c2, %c0_13, %c0_14] : memref<9x4x4xbf16, #tpu.memory_space<vmem>>, vector<1x4x4xbf16>
    %27 = vector.shape_cast %26 : vector<1x4x4xbf16> to vector<4x4xbf16>
    %cst_15 = arith.constant dense<0.000000e+00> : vector<4x256xf32>
    %28 = tpu.matmul %27, %25, %cst_15 {dimension_numbers = #tpu.dot_dimension_numbers<[1], [0], [0], [1], [0, 0, 1, 1], [], []>} : vector<4x4xbf16>, vector<4x256xbf16>, vector<4x256xf32> -> vector<4x256xf32>
    %29 = arith.addf %22, %28 : vector<4x256xf32>
    %cst_16 = arith.constant 0.000000e+00 : bf16
    %30 = vector.broadcast %cst_16 : bf16 to vector<4x1xbf16>
    %31 = vector.extract_strided_slice %6 {offsets = [0, 0], sizes = [4, 255], strides = [1, 1]} : vector<4x256xbf16> to vector<4x255xbf16>
    %32 = tpu.concatenate %30, %31 in 1 : vector<4x1xbf16>, vector<4x255xbf16> -> vector<4x256xbf16>
    %c3 = arith.constant 3 : index
    %c0_17 = arith.constant 0 : index
    %c0_18 = arith.constant 0 : index
    %33 = vector.load %arg4[%c3, %c0_17, %c0_18] : memref<9x4x4xbf16, #tpu.memory_space<vmem>>, vector<1x4x4xbf16>
    %34 = vector.shape_cast %33 : vector<1x4x4xbf16> to vector<4x4xbf16>
    %cst_19 = arith.constant dense<0.000000e+00> : vector<4x256xf32>
    %35 = tpu.matmul %34, %32, %cst_19 {dimension_numbers = #tpu.dot_dimension_numbers<[1], [0], [0], [1], [0, 0, 1, 1], [], []>} : vector<4x4xbf16>, vector<4x256xbf16>, vector<4x256xf32> -> vector<4x256xf32>
    %36 = arith.addf %29, %35 : vector<4x256xf32>
    %c4 = arith.constant 4 : index
    %c0_20 = arith.constant 0 : index
    %c0_21 = arith.constant 0 : index
    %37 = vector.load %arg4[%c4, %c0_20, %c0_21] : memref<9x4x4xbf16, #tpu.memory_space<vmem>>, vector<1x4x4xbf16>
    %38 = vector.shape_cast %37 : vector<1x4x4xbf16> to vector<4x4xbf16>
    %cst_22 = arith.constant dense<0.000000e+00> : vector<4x256xf32>
    %39 = tpu.matmul %38, %3, %cst_22 {dimension_numbers = #tpu.dot_dimension_numbers<[1], [0], [0], [1], [0, 0, 1, 1], [], []>} : vector<4x4xbf16>, vector<4x256xbf16>, vector<4x256xf32> -> vector<4x256xf32>
    %40 = arith.addf %36, %39 : vector<4x256xf32>
    %41 = vector.extract_strided_slice %9 {offsets = [0, 1], sizes = [4, 255], strides = [1, 1]} : vector<4x256xbf16> to vector<4x255xbf16>
    %cst_23 = arith.constant 0.000000e+00 : bf16
    %42 = vector.broadcast %cst_23 : bf16 to vector<4x1xbf16>
    %43 = tpu.concatenate %41, %42 in 1 : vector<4x255xbf16>, vector<4x1xbf16> -> vector<4x256xbf16>
    %c5 = arith.constant 5 : index
    %c0_24 = arith.constant 0 : index
    %c0_25 = arith.constant 0 : index
    %44 = vector.load %arg4[%c5, %c0_24, %c0_25] : memref<9x4x4xbf16, #tpu.memory_space<vmem>>, vector<1x4x4xbf16>
    %45 = vector.shape_cast %44 : vector<1x4x4xbf16> to vector<4x4xbf16>
    %cst_26 = arith.constant dense<0.000000e+00> : vector<4x256xf32>
    %46 = tpu.matmul %45, %43, %cst_26 {dimension_numbers = #tpu.dot_dimension_numbers<[1], [0], [0], [1], [0, 0, 1, 1], [], []>} : vector<4x4xbf16>, vector<4x256xbf16>, vector<4x256xf32> -> vector<4x256xf32>
    %47 = arith.addf %40, %46 : vector<4x256xf32>
    %48 = vector.extract_strided_slice %6 {offsets = [0, 15], sizes = [4, 241], strides = [1, 1]} : vector<4x256xbf16> to vector<4x241xbf16>
    %cst_27 = arith.constant 0.000000e+00 : bf16
    %49 = vector.broadcast %cst_27 : bf16 to vector<4x15xbf16>
    %50 = tpu.concatenate %48, %49 in 1 : vector<4x241xbf16>, vector<4x15xbf16> -> vector<4x256xbf16>
    %c6 = arith.constant 6 : index
    %c0_28 = arith.constant 0 : index
    %c0_29 = arith.constant 0 : index
    %51 = vector.load %arg4[%c6, %c0_28, %c0_29] : memref<9x4x4xbf16, #tpu.memory_space<vmem>>, vector<1x4x4xbf16>
    %52 = vector.shape_cast %51 : vector<1x4x4xbf16> to vector<4x4xbf16>
    %cst_30 = arith.constant dense<0.000000e+00> : vector<4x256xf32>
    %53 = tpu.matmul %52, %50, %cst_30 {dimension_numbers = #tpu.dot_dimension_numbers<[1], [0], [0], [1], [0, 0, 1, 1], [], []>} : vector<4x4xbf16>, vector<4x256xbf16>, vector<4x256xf32> -> vector<4x256xf32>
    %54 = arith.addf %47, %53 : vector<4x256xf32>
    %55 = vector.extract_strided_slice %3 {offsets = [0, 16], sizes = [4, 240], strides = [1, 1]} : vector<4x256xbf16> to vector<4x240xbf16>
    %cst_31 = arith.constant 0.000000e+00 : bf16
    %56 = vector.broadcast %cst_31 : bf16 to vector<4x16xbf16>
    %57 = tpu.concatenate %55, %56 in 1 : vector<4x240xbf16>, vector<4x16xbf16> -> vector<4x256xbf16>
    %c7 = arith.constant 7 : index
    %c0_32 = arith.constant 0 : index
    %c0_33 = arith.constant 0 : index
    %58 = vector.load %arg4[%c7, %c0_32, %c0_33] : memref<9x4x4xbf16, #tpu.memory_space<vmem>>, vector<1x4x4xbf16>
    %59 = vector.shape_cast %58 : vector<1x4x4xbf16> to vector<4x4xbf16>
    %cst_34 = arith.constant dense<0.000000e+00> : vector<4x256xf32>
    %60 = tpu.matmul %59, %57, %cst_34 {dimension_numbers = #tpu.dot_dimension_numbers<[1], [0], [0], [1], [0, 0, 1, 1], [], []>} : vector<4x4xbf16>, vector<4x256xbf16>, vector<4x256xf32> -> vector<4x256xf32>
    %61 = arith.addf %54, %60 : vector<4x256xf32>
    %62 = vector.extract_strided_slice %9 {offsets = [0, 17], sizes = [4, 239], strides = [1, 1]} : vector<4x256xbf16> to vector<4x239xbf16>
    %cst_35 = arith.constant 0.000000e+00 : bf16
    %63 = vector.broadcast %cst_35 : bf16 to vector<4x17xbf16>
    %64 = tpu.concatenate %62, %63 in 1 : vector<4x239xbf16>, vector<4x17xbf16> -> vector<4x256xbf16>
    %c8 = arith.constant 8 : index
    %c0_36 = arith.constant 0 : index
    %c0_37 = arith.constant 0 : index
    %65 = vector.load %arg4[%c8, %c0_36, %c0_37] : memref<9x4x4xbf16, #tpu.memory_space<vmem>>, vector<1x4x4xbf16>
    %66 = vector.shape_cast %65 : vector<1x4x4xbf16> to vector<4x4xbf16>
    %cst_38 = arith.constant dense<0.000000e+00> : vector<4x256xf32>
    %67 = tpu.matmul %66, %64, %cst_38 {dimension_numbers = #tpu.dot_dimension_numbers<[1], [0], [0], [1], [0, 0, 1, 1], [], []>} : vector<4x4xbf16>, vector<4x256xbf16>, vector<4x256xf32> -> vector<4x256xf32>
    %68 = arith.addf %61, %67 : vector<4x256xf32>
    %c0_39 = arith.constant 0 : index
    %c0_40 = arith.constant 0 : index
    %c0_41 = arith.constant 0 : index
    %69 = vector.load %arg2[%c0_39, %c0_40, %c0_41] : memref<1x4x256xf32, #tpu.memory_space<vmem>>, vector<1x4x256xf32>
    %70 = vector.shape_cast %69 : vector<1x4x256xf32> to vector<4x256xf32>
    %71 = arith.truncf %70 : vector<4x256xf32> to vector<4x256xbf16>
    %72 = vector.extract_strided_slice %0 {offsets = [0, 0], sizes = [1, 256], strides = [1, 1]} : vector<2x256xbf16> to vector<1x256xbf16>
    %73 = vector.broadcast %72 : vector<1x256xbf16> to vector<4x256xbf16>
    %74 = arith.mulf %71, %73 : vector<4x256xbf16>
    %75 = vector.extract_strided_slice %0 {offsets = [1, 0], sizes = [1, 256], strides = [1, 1]} : vector<2x256xbf16> to vector<1x256xbf16>
    %76 = vector.broadcast %75 : vector<1x256xbf16> to vector<4x256xbf16>
    %77 = arith.mulf %71, %76 : vector<4x256xbf16>
    %cst_42 = arith.constant 0.000000e+00 : bf16
    %78 = vector.broadcast %cst_42 : bf16 to vector<4x17xbf16>
    %79 = vector.extract_strided_slice %74 {offsets = [0, 0], sizes = [4, 239], strides = [1, 1]} : vector<4x256xbf16> to vector<4x239xbf16>
    %80 = tpu.concatenate %78, %79 in 1 : vector<4x17xbf16>, vector<4x239xbf16> -> vector<4x256xbf16>
    %c0_43 = arith.constant 0 : index
    %c0_44 = arith.constant 0 : index
    %c0_45 = arith.constant 0 : index
    %81 = vector.load %arg5[%c0_43, %c0_44, %c0_45] : memref<9x4x4xbf16, #tpu.memory_space<vmem>>, vector<1x4x4xbf16>
    %82 = vector.shape_cast %81 : vector<1x4x4xbf16> to vector<4x4xbf16>
    %cst_46 = arith.constant dense<0.000000e+00> : vector<4x256xf32>
    %83 = tpu.matmul %82, %80, %cst_46 {dimension_numbers = #tpu.dot_dimension_numbers<[1], [0], [0], [1], [0, 0, 1, 1], [], []>} : vector<4x4xbf16>, vector<4x256xbf16>, vector<4x256xf32> -> vector<4x256xf32>
    %84 = arith.addf %68, %83 : vector<4x256xf32>
    %cst_47 = arith.constant 0.000000e+00 : bf16
    %85 = vector.broadcast %cst_47 : bf16 to vector<4x16xbf16>
    %86 = vector.extract_strided_slice %71 {offsets = [0, 0], sizes = [4, 240], strides = [1, 1]} : vector<4x256xbf16> to vector<4x240xbf16>
    %87 = tpu.concatenate %85, %86 in 1 : vector<4x16xbf16>, vector<4x240xbf16> -> vector<4x256xbf16>
    %c1_48 = arith.constant 1 : index
    %c0_49 = arith.constant 0 : index
    %c0_50 = arith.constant 0 : index
    %88 = vector.load %arg5[%c1_48, %c0_49, %c0_50] : memref<9x4x4xbf16, #tpu.memory_space<vmem>>, vector<1x4x4xbf16>
    %89 = vector.shape_cast %88 : vector<1x4x4xbf16> to vector<4x4xbf16>
    %cst_51 = arith.constant dense<0.000000e+00> : vector<4x256xf32>
    %90 = tpu.matmul %89, %87, %cst_51 {dimension_numbers = #tpu.dot_dimension_numbers<[1], [0], [0], [1], [0, 0, 1, 1], [], []>} : vector<4x4xbf16>, vector<4x256xbf16>, vector<4x256xf32> -> vector<4x256xf32>
    %91 = arith.addf %84, %90 : vector<4x256xf32>
    %cst_52 = arith.constant 0.000000e+00 : bf16
    %92 = vector.broadcast %cst_52 : bf16 to vector<4x15xbf16>
    %93 = vector.extract_strided_slice %77 {offsets = [0, 0], sizes = [4, 241], strides = [1, 1]} : vector<4x256xbf16> to vector<4x241xbf16>
    %94 = tpu.concatenate %92, %93 in 1 : vector<4x15xbf16>, vector<4x241xbf16> -> vector<4x256xbf16>
    %c2_53 = arith.constant 2 : index
    %c0_54 = arith.constant 0 : index
    %c0_55 = arith.constant 0 : index
    %95 = vector.load %arg5[%c2_53, %c0_54, %c0_55] : memref<9x4x4xbf16, #tpu.memory_space<vmem>>, vector<1x4x4xbf16>
    %96 = vector.shape_cast %95 : vector<1x4x4xbf16> to vector<4x4xbf16>
    %cst_56 = arith.constant dense<0.000000e+00> : vector<4x256xf32>
    %97 = tpu.matmul %96, %94, %cst_56 {dimension_numbers = #tpu.dot_dimension_numbers<[1], [0], [0], [1], [0, 0, 1, 1], [], []>} : vector<4x4xbf16>, vector<4x256xbf16>, vector<4x256xf32> -> vector<4x256xf32>
    %98 = arith.addf %91, %97 : vector<4x256xf32>
    %cst_57 = arith.constant 0.000000e+00 : bf16
    %99 = vector.broadcast %cst_57 : bf16 to vector<4x1xbf16>
    %100 = vector.extract_strided_slice %74 {offsets = [0, 0], sizes = [4, 255], strides = [1, 1]} : vector<4x256xbf16> to vector<4x255xbf16>
    %101 = tpu.concatenate %99, %100 in 1 : vector<4x1xbf16>, vector<4x255xbf16> -> vector<4x256xbf16>
    %c3_58 = arith.constant 3 : index
    %c0_59 = arith.constant 0 : index
    %c0_60 = arith.constant 0 : index
    %102 = vector.load %arg5[%c3_58, %c0_59, %c0_60] : memref<9x4x4xbf16, #tpu.memory_space<vmem>>, vector<1x4x4xbf16>
    %103 = vector.shape_cast %102 : vector<1x4x4xbf16> to vector<4x4xbf16>
    %cst_61 = arith.constant dense<0.000000e+00> : vector<4x256xf32>
    %104 = tpu.matmul %103, %101, %cst_61 {dimension_numbers = #tpu.dot_dimension_numbers<[1], [0], [0], [1], [0, 0, 1, 1], [], []>} : vector<4x4xbf16>, vector<4x256xbf16>, vector<4x256xf32> -> vector<4x256xf32>
    %105 = arith.addf %98, %104 : vector<4x256xf32>
    %c4_62 = arith.constant 4 : index
    %c0_63 = arith.constant 0 : index
    %c0_64 = arith.constant 0 : index
    %106 = vector.load %arg5[%c4_62, %c0_63, %c0_64] : memref<9x4x4xbf16, #tpu.memory_space<vmem>>, vector<1x4x4xbf16>
    %107 = vector.shape_cast %106 : vector<1x4x4xbf16> to vector<4x4xbf16>
    %cst_65 = arith.constant dense<0.000000e+00> : vector<4x256xf32>
    %108 = tpu.matmul %107, %71, %cst_65 {dimension_numbers = #tpu.dot_dimension_numbers<[1], [0], [0], [1], [0, 0, 1, 1], [], []>} : vector<4x4xbf16>, vector<4x256xbf16>, vector<4x256xf32> -> vector<4x256xf32>
    %109 = arith.addf %105, %108 : vector<4x256xf32>
    %110 = vector.extract_strided_slice %77 {offsets = [0, 1], sizes = [4, 255], strides = [1, 1]} : vector<4x256xbf16> to vector<4x255xbf16>
    %cst_66 = arith.constant 0.000000e+00 : bf16
    %111 = vector.broadcast %cst_66 : bf16 to vector<4x1xbf16>
    %112 = tpu.concatenate %110, %111 in 1 : vector<4x255xbf16>, vector<4x1xbf16> -> vector<4x256xbf16>
    %c5_67 = arith.constant 5 : index
    %c0_68 = arith.constant 0 : index
    %c0_69 = arith.constant 0 : index
    %113 = vector.load %arg5[%c5_67, %c0_68, %c0_69] : memref<9x4x4xbf16, #tpu.memory_space<vmem>>, vector<1x4x4xbf16>
    %114 = vector.shape_cast %113 : vector<1x4x4xbf16> to vector<4x4xbf16>
    %cst_70 = arith.constant dense<0.000000e+00> : vector<4x256xf32>
    %115 = tpu.matmul %114, %112, %cst_70 {dimension_numbers = #tpu.dot_dimension_numbers<[1], [0], [0], [1], [0, 0, 1, 1], [], []>} : vector<4x4xbf16>, vector<4x256xbf16>, vector<4x256xf32> -> vector<4x256xf32>
    %116 = arith.addf %109, %115 : vector<4x256xf32>
    %117 = vector.extract_strided_slice %74 {offsets = [0, 15], sizes = [4, 241], strides = [1, 1]} : vector<4x256xbf16> to vector<4x241xbf16>
    %cst_71 = arith.constant 0.000000e+00 : bf16
    %118 = vector.broadcast %cst_71 : bf16 to vector<4x15xbf16>
    %119 = tpu.concatenate %117, %118 in 1 : vector<4x241xbf16>, vector<4x15xbf16> -> vector<4x256xbf16>
    %c6_72 = arith.constant 6 : index
    %c0_73 = arith.constant 0 : index
    %c0_74 = arith.constant 0 : index
    %120 = vector.load %arg5[%c6_72, %c0_73, %c0_74] : memref<9x4x4xbf16, #tpu.memory_space<vmem>>, vector<1x4x4xbf16>
    %121 = vector.shape_cast %120 : vector<1x4x4xbf16> to vector<4x4xbf16>
    %cst_75 = arith.constant dense<0.000000e+00> : vector<4x256xf32>
    %122 = tpu.matmul %121, %119, %cst_75 {dimension_numbers = #tpu.dot_dimension_numbers<[1], [0], [0], [1], [0, 0, 1, 1], [], []>} : vector<4x4xbf16>, vector<4x256xbf16>, vector<4x256xf32> -> vector<4x256xf32>
    %123 = arith.addf %116, %122 : vector<4x256xf32>
    %124 = vector.extract_strided_slice %71 {offsets = [0, 16], sizes = [4, 240], strides = [1, 1]} : vector<4x256xbf16> to vector<4x240xbf16>
    %cst_76 = arith.constant 0.000000e+00 : bf16
    %125 = vector.broadcast %cst_76 : bf16 to vector<4x16xbf16>
    %126 = tpu.concatenate %124, %125 in 1 : vector<4x240xbf16>, vector<4x16xbf16> -> vector<4x256xbf16>
    %c7_77 = arith.constant 7 : index
    %c0_78 = arith.constant 0 : index
    %c0_79 = arith.constant 0 : index
    %127 = vector.load %arg5[%c7_77, %c0_78, %c0_79] : memref<9x4x4xbf16, #tpu.memory_space<vmem>>, vector<1x4x4xbf16>
    %128 = vector.shape_cast %127 : vector<1x4x4xbf16> to vector<4x4xbf16>
    %cst_80 = arith.constant dense<0.000000e+00> : vector<4x256xf32>
    %129 = tpu.matmul %128, %126, %cst_80 {dimension_numbers = #tpu.dot_dimension_numbers<[1], [0], [0], [1], [0, 0, 1, 1], [], []>} : vector<4x4xbf16>, vector<4x256xbf16>, vector<4x256xf32> -> vector<4x256xf32>
    %130 = arith.addf %123, %129 : vector<4x256xf32>
    %131 = vector.extract_strided_slice %77 {offsets = [0, 17], sizes = [4, 239], strides = [1, 1]} : vector<4x256xbf16> to vector<4x239xbf16>
    %cst_81 = arith.constant 0.000000e+00 : bf16
    %132 = vector.broadcast %cst_81 : bf16 to vector<4x17xbf16>
    %133 = tpu.concatenate %131, %132 in 1 : vector<4x239xbf16>, vector<4x17xbf16> -> vector<4x256xbf16>
    %c8_82 = arith.constant 8 : index
    %c0_83 = arith.constant 0 : index
    %c0_84 = arith.constant 0 : index
    %134 = vector.load %arg5[%c8_82, %c0_83, %c0_84] : memref<9x4x4xbf16, #tpu.memory_space<vmem>>, vector<1x4x4xbf16>
    %135 = vector.shape_cast %134 : vector<1x4x4xbf16> to vector<4x4xbf16>
    %cst_85 = arith.constant dense<0.000000e+00> : vector<4x256xf32>
    %136 = tpu.matmul %135, %133, %cst_85 {dimension_numbers = #tpu.dot_dimension_numbers<[1], [0], [0], [1], [0, 0, 1, 1], [], []>} : vector<4x4xbf16>, vector<4x256xbf16>, vector<4x256xf32> -> vector<4x256xf32>
    %137 = arith.addf %130, %136 : vector<4x256xf32>
    %cst_86 = arith.constant dense<0.000000e+00> : vector<4xf32>
    %138 = vector.multi_reduction <add>, %137, %cst_86 [1] : vector<4x256xf32> to vector<4xf32>
    %139 = vector.shape_cast %138 : vector<4xf32> to vector<4x1xf32>
    %cst_87 = arith.constant 3.906250e-03 : f32
    %140 = vector.broadcast %cst_87 : f32 to vector<4x1xf32>
    %141 = arith.mulf %139, %140 : vector<4x1xf32>
    %142 = vector.broadcast %141 : vector<4x1xf32> to vector<4x256xf32>
    %143 = arith.subf %137, %142 : vector<4x256xf32>
    %144 = arith.mulf %143, %143 : vector<4x256xf32>
    %cst_88 = arith.constant dense<0.000000e+00> : vector<4xf32>
    %145 = vector.multi_reduction <add>, %144, %cst_88 [1] : vector<4x256xf32> to vector<4xf32>
    %146 = vector.shape_cast %145 : vector<4xf32> to vector<4x1xf32>
    %147 = tpu.concatenate %141, %146 in 1 : vector<4x1xf32>, vector<4x1xf32> -> vector<4x2xf32>
    %c0_89 = arith.constant 0 : index
    %c0_90 = arith.constant 0 : index
    %c0_91 = arith.constant 0 : index
    %148 = vector.load %arg7[%c0_89, %c0_90, %c0_91] : memref<1x4x2xf32, #tpu.memory_space<vmem>>, vector<1x4x2xf32>
    %149 = vector.shape_cast %148 : vector<1x4x2xf32> to vector<4x2xf32>
    %150 = vector.shape_cast %147 : vector<4x2xf32> to vector<1x4x2xf32>
    tpu.vector_store %arg7[%c0_89, %c0_90, %c0_91], %150 {strides = array<i32>} : memref<1x4x2xf32, #tpu.memory_space<vmem>>, vector<1x4x2xf32>,
    %151 = arith.truncf %137 : vector<4x256xf32> to vector<4x256xbf16>
    %c0_92 = arith.constant 0 : index
    %c0_93 = arith.constant 0 : index
    %c0_94 = arith.constant 0 : index
    %152 = vector.load %arg6[%c0_92, %c0_93, %c0_94] : memref<1x4x256xbf16, #tpu.memory_space<vmem>>, vector<1x4x256xbf16>
    %153 = vector.shape_cast %152 : vector<1x4x256xbf16> to vector<4x256xbf16>
    %154 = vector.shape_cast %151 : vector<4x256xbf16> to vector<1x4x256xbf16>
    tpu.vector_store %arg6[%c0_92, %c0_93, %c0_94], %154 {strides = array<i32>} : memref<1x4x256xbf16, #tpu.memory_space<vmem>>, vector<1x4x256xbf16>,
    return
  }
  func.func @transform_0(%arg0: i32) -> (i32, i32, i32) {
    %c0_i32 = arith.constant 0 : i32
    %c0_i32_0 = arith.constant 0 : i32
    %c0_i32_1 = arith.constant 0 : i32
    return %arg0, %c0_i32, %c0_i32_0 : i32, i32, i32
  }
  func.func @transform_1(%arg0: i32) -> (i32, i32, i32) {
    %c0_i32 = arith.constant 0 : i32
    %c0_i32_0 = arith.constant 0 : i32
    %c0_i32_1 = arith.constant 0 : i32
    return %arg0, %c0_i32, %c0_i32_0 : i32, i32, i32
  }
  func.func @transform_2(%arg0: i32) -> (i32, i32) {
    %c0_i32 = arith.constant 0 : i32
    %c0_i32_0 = arith.constant 0 : i32
    %c0_i32_1 = arith.constant 0 : i32
    return %c0_i32, %c0_i32_0 : i32, i32
  }
  func.func @transform_3(%arg0: i32) -> (i32, i32, i32) {
    %c0_i32 = arith.constant 0 : i32
    %c0_i32_0 = arith.constant 0 : i32
    %c0_i32_1 = arith.constant 0 : i32
    %c0_i32_2 = arith.constant 0 : i32
    return %c0_i32, %c0_i32_0, %c0_i32_1 : i32, i32, i32
  }
  func.func @transform_4(%arg0: i32) -> (i32, i32, i32) {
    %c0_i32 = arith.constant 0 : i32
    %c0_i32_0 = arith.constant 0 : i32
    %c0_i32_1 = arith.constant 0 : i32
    %c0_i32_2 = arith.constant 0 : i32
    return %c0_i32, %c0_i32_0, %c0_i32_1 : i32, i32, i32
  }
  func.func @transform_5(%arg0: i32) -> (i32, i32, i32) {
    %c0_i32 = arith.constant 0 : i32
    %c0_i32_0 = arith.constant 0 : i32
    %c0_i32_1 = arith.constant 0 : i32
    return %arg0, %c0_i32, %c0_i32_0 : i32, i32, i32
  }
  func.func @transform_6(%arg0: i32) -> (i32, i32, i32) {
    %c0_i32 = arith.constant 0 : i32
    %c0_i32_0 = arith.constant 0 : i32
    %c0_i32_1 = arith.constant 0 : i32
    return %arg0, %c0_i32, %c0_i32_0 : i32, i32, i32
  }
}

module attributes {stable_mosaic.version = 11 : i64} {
  func.func @_bn_relu_conv2_kernel(%arg0: i32, %arg1: memref<1x4x256xbf16, #tpu.memory_space<vmem>>, %arg2: memref<4x1xf32, #tpu.memory_space<vmem>>, %arg3: memref<4x1xf32, #tpu.memory_space<vmem>>, %arg4: memref<2x256xbf16, #tpu.memory_space<vmem>>, %arg5: memref<9x8x4xbf16, #tpu.memory_space<vmem>>, %arg6: memref<1x8x256xbf16, #tpu.memory_space<vmem>>, %arg7: memref<1x8x2xf32, #tpu.memory_space<vmem>>) attributes {dimension_semantics = [#tpu.dimension_semantics<parallel>], iteration_bounds = array<i64: 2>, scalar_prefetch = 0 : i64, scratch_operands = 0 : i64, tpu.core_type = #tpu.core_type<tc>, window_params = [{transform_indices = @transform_0, window_bounds = array<i64: 1, 4, 256>}, {pipeline_mode = #tpu.pipeline_mode<synchronous>, transform_indices = @transform_1, window_bounds = array<i64: 4, 1>}, {pipeline_mode = #tpu.pipeline_mode<synchronous>, transform_indices = @transform_2, window_bounds = array<i64: 4, 1>}, {pipeline_mode = #tpu.pipeline_mode<synchronous>, transform_indices = @transform_3, window_bounds = array<i64: 2, 256>}, {pipeline_mode = #tpu.pipeline_mode<synchronous>, transform_indices = @transform_4, window_bounds = array<i64: 9, 8, 4>}, {transform_indices = @transform_5, window_bounds = array<i64: 1, 8, 256>}, {transform_indices = @transform_6, window_bounds = array<i64: 1, 8, 2>}]} {
    %c0 = arith.constant 0 : index
    %c0_0 = arith.constant 0 : index
    %c0_1 = arith.constant 0 : index
    %0 = vector.load %arg1[%c0, %c0_0, %c0_1] : memref<1x4x256xbf16, #tpu.memory_space<vmem>>, vector<1x4x256xbf16>
    %1 = vector.shape_cast %0 : vector<1x4x256xbf16> to vector<4x256xbf16>
    %2 = arith.extf %1 : vector<4x256xbf16> to vector<4x256xf32>
    %c0_2 = arith.constant 0 : index
    %c0_3 = arith.constant 0 : index
    %3 = vector.load %arg2[%c0_2, %c0_3] : memref<4x1xf32, #tpu.memory_space<vmem>>, vector<4x1xf32>
    %4 = vector.broadcast %3 : vector<4x1xf32> to vector<4x256xf32>
    %5 = arith.mulf %2, %4 : vector<4x256xf32>
    %c0_4 = arith.constant 0 : index
    %c0_5 = arith.constant 0 : index
    %6 = vector.load %arg3[%c0_4, %c0_5] : memref<4x1xf32, #tpu.memory_space<vmem>>, vector<4x1xf32>
    %7 = vector.broadcast %6 : vector<4x1xf32> to vector<4x256xf32>
    %8 = arith.addf %5, %7 : vector<4x256xf32>
    %cst = arith.constant 0.000000e+00 : f32
    %9 = vector.broadcast %cst : f32 to vector<4x256xf32>
    %10 = arith.maximumf %8, %9 : vector<4x256xf32>
    %11 = arith.truncf %10 : vector<4x256xf32> to vector<4x256xbf16>
    %c0_6 = arith.constant 0 : index
    %c0_7 = arith.constant 0 : index
    %12 = vector.load %arg4[%c0_6, %c0_7] : memref<2x256xbf16, #tpu.memory_space<vmem>>, vector<2x256xbf16>
    %13 = vector.extract_strided_slice %12 {offsets = [0, 0], sizes = [1, 256], strides = [1, 1]} : vector<2x256xbf16> to vector<1x256xbf16>
    %14 = vector.broadcast %13 : vector<1x256xbf16> to vector<4x256xbf16>
    %15 = arith.mulf %11, %14 : vector<4x256xbf16>
    %16 = vector.extract_strided_slice %12 {offsets = [1, 0], sizes = [1, 256], strides = [1, 1]} : vector<2x256xbf16> to vector<1x256xbf16>
    %17 = vector.broadcast %16 : vector<1x256xbf16> to vector<4x256xbf16>
    %18 = arith.mulf %11, %17 : vector<4x256xbf16>
    %cst_8 = arith.constant 0.000000e+00 : bf16
    %19 = vector.broadcast %cst_8 : bf16 to vector<4x17xbf16>
    %20 = vector.extract_strided_slice %15 {offsets = [0, 0], sizes = [4, 239], strides = [1, 1]} : vector<4x256xbf16> to vector<4x239xbf16>
    %21 = tpu.concatenate %19, %20 in 1 : vector<4x17xbf16>, vector<4x239xbf16> -> vector<4x256xbf16>
    %c0_9 = arith.constant 0 : index
    %c0_10 = arith.constant 0 : index
    %c0_11 = arith.constant 0 : index
    %22 = vector.load %arg5[%c0_9, %c0_10, %c0_11] : memref<9x8x4xbf16, #tpu.memory_space<vmem>>, vector<1x8x4xbf16>
    %23 = vector.shape_cast %22 : vector<1x8x4xbf16> to vector<8x4xbf16>
    %cst_12 = arith.constant dense<0.000000e+00> : vector<8x256xf32>
    %24 = tpu.matmul %23, %21, %cst_12 {dimension_numbers = #tpu.dot_dimension_numbers<[1], [0], [0], [1], [0, 0, 1, 1], [], []>} : vector<8x4xbf16>, vector<4x256xbf16>, vector<8x256xf32> -> vector<8x256xf32>
    %cst_13 = arith.constant 0.000000e+00 : bf16
    %25 = vector.broadcast %cst_13 : bf16 to vector<4x16xbf16>
    %26 = vector.extract_strided_slice %11 {offsets = [0, 0], sizes = [4, 240], strides = [1, 1]} : vector<4x256xbf16> to vector<4x240xbf16>
    %27 = tpu.concatenate %25, %26 in 1 : vector<4x16xbf16>, vector<4x240xbf16> -> vector<4x256xbf16>
    %c1 = arith.constant 1 : index
    %c0_14 = arith.constant 0 : index
    %c0_15 = arith.constant 0 : index
    %28 = vector.load %arg5[%c1, %c0_14, %c0_15] : memref<9x8x4xbf16, #tpu.memory_space<vmem>>, vector<1x8x4xbf16>
    %29 = vector.shape_cast %28 : vector<1x8x4xbf16> to vector<8x4xbf16>
    %cst_16 = arith.constant dense<0.000000e+00> : vector<8x256xf32>
    %30 = tpu.matmul %29, %27, %cst_16 {dimension_numbers = #tpu.dot_dimension_numbers<[1], [0], [0], [1], [0, 0, 1, 1], [], []>} : vector<8x4xbf16>, vector<4x256xbf16>, vector<8x256xf32> -> vector<8x256xf32>
    %31 = arith.addf %24, %30 : vector<8x256xf32>
    %cst_17 = arith.constant 0.000000e+00 : bf16
    %32 = vector.broadcast %cst_17 : bf16 to vector<4x15xbf16>
    %33 = vector.extract_strided_slice %18 {offsets = [0, 0], sizes = [4, 241], strides = [1, 1]} : vector<4x256xbf16> to vector<4x241xbf16>
    %34 = tpu.concatenate %32, %33 in 1 : vector<4x15xbf16>, vector<4x241xbf16> -> vector<4x256xbf16>
    %c2 = arith.constant 2 : index
    %c0_18 = arith.constant 0 : index
    %c0_19 = arith.constant 0 : index
    %35 = vector.load %arg5[%c2, %c0_18, %c0_19] : memref<9x8x4xbf16, #tpu.memory_space<vmem>>, vector<1x8x4xbf16>
    %36 = vector.shape_cast %35 : vector<1x8x4xbf16> to vector<8x4xbf16>
    %cst_20 = arith.constant dense<0.000000e+00> : vector<8x256xf32>
    %37 = tpu.matmul %36, %34, %cst_20 {dimension_numbers = #tpu.dot_dimension_numbers<[1], [0], [0], [1], [0, 0, 1, 1], [], []>} : vector<8x4xbf16>, vector<4x256xbf16>, vector<8x256xf32> -> vector<8x256xf32>
    %38 = arith.addf %31, %37 : vector<8x256xf32>
    %cst_21 = arith.constant 0.000000e+00 : bf16
    %39 = vector.broadcast %cst_21 : bf16 to vector<4x1xbf16>
    %40 = vector.extract_strided_slice %15 {offsets = [0, 0], sizes = [4, 255], strides = [1, 1]} : vector<4x256xbf16> to vector<4x255xbf16>
    %41 = tpu.concatenate %39, %40 in 1 : vector<4x1xbf16>, vector<4x255xbf16> -> vector<4x256xbf16>
    %c3 = arith.constant 3 : index
    %c0_22 = arith.constant 0 : index
    %c0_23 = arith.constant 0 : index
    %42 = vector.load %arg5[%c3, %c0_22, %c0_23] : memref<9x8x4xbf16, #tpu.memory_space<vmem>>, vector<1x8x4xbf16>
    %43 = vector.shape_cast %42 : vector<1x8x4xbf16> to vector<8x4xbf16>
    %cst_24 = arith.constant dense<0.000000e+00> : vector<8x256xf32>
    %44 = tpu.matmul %43, %41, %cst_24 {dimension_numbers = #tpu.dot_dimension_numbers<[1], [0], [0], [1], [0, 0, 1, 1], [], []>} : vector<8x4xbf16>, vector<4x256xbf16>, vector<8x256xf32> -> vector<8x256xf32>
    %45 = arith.addf %38, %44 : vector<8x256xf32>
    %c4 = arith.constant 4 : index
    %c0_25 = arith.constant 0 : index
    %c0_26 = arith.constant 0 : index
    %46 = vector.load %arg5[%c4, %c0_25, %c0_26] : memref<9x8x4xbf16, #tpu.memory_space<vmem>>, vector<1x8x4xbf16>
    %47 = vector.shape_cast %46 : vector<1x8x4xbf16> to vector<8x4xbf16>
    %cst_27 = arith.constant dense<0.000000e+00> : vector<8x256xf32>
    %48 = tpu.matmul %47, %11, %cst_27 {dimension_numbers = #tpu.dot_dimension_numbers<[1], [0], [0], [1], [0, 0, 1, 1], [], []>} : vector<8x4xbf16>, vector<4x256xbf16>, vector<8x256xf32> -> vector<8x256xf32>
    %49 = arith.addf %45, %48 : vector<8x256xf32>
    %50 = vector.extract_strided_slice %18 {offsets = [0, 1], sizes = [4, 255], strides = [1, 1]} : vector<4x256xbf16> to vector<4x255xbf16>
    %cst_28 = arith.constant 0.000000e+00 : bf16
    %51 = vector.broadcast %cst_28 : bf16 to vector<4x1xbf16>
    %52 = tpu.concatenate %50, %51 in 1 : vector<4x255xbf16>, vector<4x1xbf16> -> vector<4x256xbf16>
    %c5 = arith.constant 5 : index
    %c0_29 = arith.constant 0 : index
    %c0_30 = arith.constant 0 : index
    %53 = vector.load %arg5[%c5, %c0_29, %c0_30] : memref<9x8x4xbf16, #tpu.memory_space<vmem>>, vector<1x8x4xbf16>
    %54 = vector.shape_cast %53 : vector<1x8x4xbf16> to vector<8x4xbf16>
    %cst_31 = arith.constant dense<0.000000e+00> : vector<8x256xf32>
    %55 = tpu.matmul %54, %52, %cst_31 {dimension_numbers = #tpu.dot_dimension_numbers<[1], [0], [0], [1], [0, 0, 1, 1], [], []>} : vector<8x4xbf16>, vector<4x256xbf16>, vector<8x256xf32> -> vector<8x256xf32>
    %56 = arith.addf %49, %55 : vector<8x256xf32>
    %57 = vector.extract_strided_slice %15 {offsets = [0, 15], sizes = [4, 241], strides = [1, 1]} : vector<4x256xbf16> to vector<4x241xbf16>
    %cst_32 = arith.constant 0.000000e+00 : bf16
    %58 = vector.broadcast %cst_32 : bf16 to vector<4x15xbf16>
    %59 = tpu.concatenate %57, %58 in 1 : vector<4x241xbf16>, vector<4x15xbf16> -> vector<4x256xbf16>
    %c6 = arith.constant 6 : index
    %c0_33 = arith.constant 0 : index
    %c0_34 = arith.constant 0 : index
    %60 = vector.load %arg5[%c6, %c0_33, %c0_34] : memref<9x8x4xbf16, #tpu.memory_space<vmem>>, vector<1x8x4xbf16>
    %61 = vector.shape_cast %60 : vector<1x8x4xbf16> to vector<8x4xbf16>
    %cst_35 = arith.constant dense<0.000000e+00> : vector<8x256xf32>
    %62 = tpu.matmul %61, %59, %cst_35 {dimension_numbers = #tpu.dot_dimension_numbers<[1], [0], [0], [1], [0, 0, 1, 1], [], []>} : vector<8x4xbf16>, vector<4x256xbf16>, vector<8x256xf32> -> vector<8x256xf32>
    %63 = arith.addf %56, %62 : vector<8x256xf32>
    %64 = vector.extract_strided_slice %11 {offsets = [0, 16], sizes = [4, 240], strides = [1, 1]} : vector<4x256xbf16> to vector<4x240xbf16>
    %cst_36 = arith.constant 0.000000e+00 : bf16
    %65 = vector.broadcast %cst_36 : bf16 to vector<4x16xbf16>
    %66 = tpu.concatenate %64, %65 in 1 : vector<4x240xbf16>, vector<4x16xbf16> -> vector<4x256xbf16>
    %c7 = arith.constant 7 : index
    %c0_37 = arith.constant 0 : index
    %c0_38 = arith.constant 0 : index
    %67 = vector.load %arg5[%c7, %c0_37, %c0_38] : memref<9x8x4xbf16, #tpu.memory_space<vmem>>, vector<1x8x4xbf16>
    %68 = vector.shape_cast %67 : vector<1x8x4xbf16> to vector<8x4xbf16>
    %cst_39 = arith.constant dense<0.000000e+00> : vector<8x256xf32>
    %69 = tpu.matmul %68, %66, %cst_39 {dimension_numbers = #tpu.dot_dimension_numbers<[1], [0], [0], [1], [0, 0, 1, 1], [], []>} : vector<8x4xbf16>, vector<4x256xbf16>, vector<8x256xf32> -> vector<8x256xf32>
    %70 = arith.addf %63, %69 : vector<8x256xf32>
    %71 = vector.extract_strided_slice %18 {offsets = [0, 17], sizes = [4, 239], strides = [1, 1]} : vector<4x256xbf16> to vector<4x239xbf16>
    %cst_40 = arith.constant 0.000000e+00 : bf16
    %72 = vector.broadcast %cst_40 : bf16 to vector<4x17xbf16>
    %73 = tpu.concatenate %71, %72 in 1 : vector<4x239xbf16>, vector<4x17xbf16> -> vector<4x256xbf16>
    %c8 = arith.constant 8 : index
    %c0_41 = arith.constant 0 : index
    %c0_42 = arith.constant 0 : index
    %74 = vector.load %arg5[%c8, %c0_41, %c0_42] : memref<9x8x4xbf16, #tpu.memory_space<vmem>>, vector<1x8x4xbf16>
    %75 = vector.shape_cast %74 : vector<1x8x4xbf16> to vector<8x4xbf16>
    %cst_43 = arith.constant dense<0.000000e+00> : vector<8x256xf32>
    %76 = tpu.matmul %75, %73, %cst_43 {dimension_numbers = #tpu.dot_dimension_numbers<[1], [0], [0], [1], [0, 0, 1, 1], [], []>} : vector<8x4xbf16>, vector<4x256xbf16>, vector<8x256xf32> -> vector<8x256xf32>
    %77 = arith.addf %70, %76 : vector<8x256xf32>
    %cst_44 = arith.constant dense<0.000000e+00> : vector<8xf32>
    %78 = vector.multi_reduction <add>, %77, %cst_44 [1] : vector<8x256xf32> to vector<8xf32>
    %79 = vector.shape_cast %78 : vector<8xf32> to vector<8x1xf32>
    %cst_45 = arith.constant 3.906250e-03 : f32
    %80 = vector.broadcast %cst_45 : f32 to vector<8x1xf32>
    %81 = arith.mulf %79, %80 : vector<8x1xf32>
    %82 = vector.broadcast %81 : vector<8x1xf32> to vector<8x256xf32>
    %83 = arith.subf %77, %82 : vector<8x256xf32>
    %84 = arith.mulf %83, %83 : vector<8x256xf32>
    %cst_46 = arith.constant dense<0.000000e+00> : vector<8xf32>
    %85 = vector.multi_reduction <add>, %84, %cst_46 [1] : vector<8x256xf32> to vector<8xf32>
    %86 = vector.shape_cast %85 : vector<8xf32> to vector<8x1xf32>
    %87 = tpu.concatenate %81, %86 in 1 : vector<8x1xf32>, vector<8x1xf32> -> vector<8x2xf32>
    %c0_47 = arith.constant 0 : index
    %c0_48 = arith.constant 0 : index
    %c0_49 = arith.constant 0 : index
    %88 = vector.load %arg7[%c0_47, %c0_48, %c0_49] : memref<1x8x2xf32, #tpu.memory_space<vmem>>, vector<1x8x2xf32>
    %89 = vector.shape_cast %88 : vector<1x8x2xf32> to vector<8x2xf32>
    %90 = vector.shape_cast %87 : vector<8x2xf32> to vector<1x8x2xf32>
    tpu.vector_store %arg7[%c0_47, %c0_48, %c0_49], %90 {strides = array<i32>} : memref<1x8x2xf32, #tpu.memory_space<vmem>>, vector<1x8x2xf32>,
    %91 = arith.truncf %77 : vector<8x256xf32> to vector<8x256xbf16>
    %c0_50 = arith.constant 0 : index
    %c0_51 = arith.constant 0 : index
    %c0_52 = arith.constant 0 : index
    %92 = vector.load %arg6[%c0_50, %c0_51, %c0_52] : memref<1x8x256xbf16, #tpu.memory_space<vmem>>, vector<1x8x256xbf16>
    %93 = vector.shape_cast %92 : vector<1x8x256xbf16> to vector<8x256xbf16>
    %94 = vector.shape_cast %91 : vector<8x256xbf16> to vector<1x8x256xbf16>
    tpu.vector_store %arg6[%c0_50, %c0_51, %c0_52], %94 {strides = array<i32>} : memref<1x8x256xbf16, #tpu.memory_space<vmem>>, vector<1x8x256xbf16>,
    return
  }
  func.func @transform_0(%arg0: i32) -> (i32, i32, i32) {
    %c0_i32 = arith.constant 0 : i32
    %c0_i32_0 = arith.constant 0 : i32
    %c0_i32_1 = arith.constant 0 : i32
    return %arg0, %c0_i32, %c0_i32_0 : i32, i32, i32
  }
  func.func @transform_1(%arg0: i32) -> (i32, i32) {
    %c0_i32 = arith.constant 0 : i32
    %c0_i32_0 = arith.constant 0 : i32
    %c0_i32_1 = arith.constant 0 : i32
    return %c0_i32, %c0_i32_0 : i32, i32
  }
  func.func @transform_2(%arg0: i32) -> (i32, i32) {
    %c0_i32 = arith.constant 0 : i32
    %c0_i32_0 = arith.constant 0 : i32
    %c0_i32_1 = arith.constant 0 : i32
    return %c0_i32, %c0_i32_0 : i32, i32
  }
  func.func @transform_3(%arg0: i32) -> (i32, i32) {
    %c0_i32 = arith.constant 0 : i32
    %c0_i32_0 = arith.constant 0 : i32
    %c0_i32_1 = arith.constant 0 : i32
    return %c0_i32, %c0_i32_0 : i32, i32
  }
  func.func @transform_4(%arg0: i32) -> (i32, i32, i32) {
    %c0_i32 = arith.constant 0 : i32
    %c0_i32_0 = arith.constant 0 : i32
    %c0_i32_1 = arith.constant 0 : i32
    %c0_i32_2 = arith.constant 0 : i32
    return %c0_i32, %c0_i32_0, %c0_i32_1 : i32, i32, i32
  }
  func.func @transform_5(%arg0: i32) -> (i32, i32, i32) {
    %c0_i32 = arith.constant 0 : i32
    %c0_i32_0 = arith.constant 0 : i32
    %c0_i32_1 = arith.constant 0 : i32
    return %arg0, %c0_i32, %c0_i32_0 : i32, i32, i32
  }
  func.func @transform_6(%arg0: i32) -> (i32, i32, i32) {
    %c0_i32 = arith.constant 0 : i32
    %c0_i32_0 = arith.constant 0 : i32
    %c0_i32_1 = arith.constant 0 : i32
    return %arg0, %c0_i32, %c0_i32_0 : i32, i32, i32
  }
}

module attributes {stable_mosaic.version = 11 : i64} {
  func.func @_bn_relu_kernel(%arg0: i32, %arg1: memref<1x8x256xbf16, #tpu.memory_space<vmem>>, %arg2: memref<8x1xf32, #tpu.memory_space<vmem>>, %arg3: memref<8x1xf32, #tpu.memory_space<vmem>>, %arg4: memref<1x8x256xf32, #tpu.memory_space<vmem>>) attributes {dimension_semantics = [#tpu.dimension_semantics<parallel>], iteration_bounds = array<i64: 2>, scalar_prefetch = 0 : i64, scratch_operands = 0 : i64, tpu.core_type = #tpu.core_type<tc>, window_params = [{transform_indices = @transform_0, window_bounds = array<i64: 1, 8, 256>}, {pipeline_mode = #tpu.pipeline_mode<synchronous>, transform_indices = @transform_1, window_bounds = array<i64: 8, 1>}, {pipeline_mode = #tpu.pipeline_mode<synchronous>, transform_indices = @transform_2, window_bounds = array<i64: 8, 1>}, {transform_indices = @transform_3, window_bounds = array<i64: 1, 8, 256>}]} {
    %c0 = arith.constant 0 : index
    %c0_0 = arith.constant 0 : index
    %c0_1 = arith.constant 0 : index
    %0 = vector.load %arg1[%c0, %c0_0, %c0_1] : memref<1x8x256xbf16, #tpu.memory_space<vmem>>, vector<1x8x256xbf16>
    %1 = vector.shape_cast %0 : vector<1x8x256xbf16> to vector<8x256xbf16>
    %2 = arith.extf %1 : vector<8x256xbf16> to vector<8x256xf32>
    %c0_2 = arith.constant 0 : index
    %c0_3 = arith.constant 0 : index
    %3 = vector.load %arg2[%c0_2, %c0_3] : memref<8x1xf32, #tpu.memory_space<vmem>>, vector<8x1xf32>
    %4 = vector.broadcast %3 : vector<8x1xf32> to vector<8x256xf32>
    %5 = arith.mulf %2, %4 : vector<8x256xf32>
    %c0_4 = arith.constant 0 : index
    %c0_5 = arith.constant 0 : index
    %6 = vector.load %arg3[%c0_4, %c0_5] : memref<8x1xf32, #tpu.memory_space<vmem>>, vector<8x1xf32>
    %7 = vector.broadcast %6 : vector<8x1xf32> to vector<8x256xf32>
    %8 = arith.addf %5, %7 : vector<8x256xf32>
    %cst = arith.constant 0.000000e+00 : f32
    %9 = vector.broadcast %cst : f32 to vector<8x256xf32>
    %10 = arith.maximumf %8, %9 : vector<8x256xf32>
    %c0_6 = arith.constant 0 : index
    %c0_7 = arith.constant 0 : index
    %c0_8 = arith.constant 0 : index
    %11 = vector.load %arg4[%c0_6, %c0_7, %c0_8] : memref<1x8x256xf32, #tpu.memory_space<vmem>>, vector<1x8x256xf32>
    %12 = vector.shape_cast %11 : vector<1x8x256xf32> to vector<8x256xf32>
    %13 = vector.shape_cast %10 : vector<8x256xf32> to vector<1x8x256xf32>
    tpu.vector_store %arg4[%c0_6, %c0_7, %c0_8], %13 {strides = array<i32>} : memref<1x8x256xf32, #tpu.memory_space<vmem>>, vector<1x8x256xf32>,
    return
  }
  func.func @transform_0(%arg0: i32) -> (i32, i32, i32) {
    %c0_i32 = arith.constant 0 : i32
    %c0_i32_0 = arith.constant 0 : i32
    %c0_i32_1 = arith.constant 0 : i32
    return %arg0, %c0_i32, %c0_i32_0 : i32, i32, i32
  }
  func.func @transform_1(%arg0: i32) -> (i32, i32) {
    %c0_i32 = arith.constant 0 : i32
    %c0_i32_0 = arith.constant 0 : i32
    %c0_i32_1 = arith.constant 0 : i32
    return %c0_i32, %c0_i32_0 : i32, i32
  }
  func.func @transform_2(%arg0: i32) -> (i32, i32) {
    %c0_i32 = arith.constant 0 : i32
    %c0_i32_0 = arith.constant 0 : i32
    %c0_i32_1 = arith.constant 0 : i32
    return %c0_i32, %c0_i32_0 : i32, i32
  }
  func.func @transform_3(%arg0: i32) -> (i32, i32, i32) {
    %c0_i32 = arith.constant 0 : i32
    %c0_i32_0 = arith.constant 0 : i32
    %c0_i32_1 = arith.constant 0 : i32
    return %arg0, %c0_i32, %c0_i32_0 : i32, i32, i32
  }
}

</mosaic_0001>

<llo_original>
// kernel: up_forward.5
$region0: #{up_forward.5}
  #allocation0 [shape = 'u32[]', space=smem, size = 0x4, offset = 0x4, fixed_abs, tag = 'smem constant byte address 0x4 - core index']
  #allocation1 [shape = 'u32[144,128]{1,0:T(1,128)}', space=vmem, size = 0x12000, scoped, tag = 'internal scratch']
  %s0 = inlined_call_operand.vmem [shape: bf16[2,8,256], index: 0, kind: input, shape index: {}]
  %s1 = inlined_call_operand.vmem [shape: f32[8,1], index: 1, kind: input, shape index: {}]
  %s2 = inlined_call_operand.vmem [shape: f32[8,1], index: 2, kind: input, shape index: {}]
  %s3 = inlined_call_operand.vmem [shape: f32[2,8,256], index: 3, kind: output, shape index: {}]
  %s4 = sld [smem:[#allocation0]]
  $region45: #{up_forward.5} parent=0
    _
  %s6 = ssub.s32 1, %s4
  %s7 = scalar_select 0, %s6, %s4
  loop: start=0, step=1, limit=4
  $region2: #{up_forward.5} parent=0 // loop_pre_header
    _
  $region3: #{up_forward.5} parent=0 // loop_header
    %s9 = sphi 0, %s13
    %p10 = scmp.ge.s32.totalorder %s9, 4
    %s19 = sphi 0, %s21
    %s22 = sphi 0, %s19
    %s23 = sphi 0, %s22
    %s39 = sphi 0, %s23
    %s43 = sphi 0, %s43
    %s45 = sphi 0, %s43
    %s46 = sphi 0, %s45
    %s60 = sphi 0, %s46
    %s64 = sphi 0, %s64
    %s66 = sphi 0, %s64
    %s67 = sphi 0, %s66
    %s81 = sphi 0, %s67
    %s87 = sphi 0, %s89
    %s90 = sphi 0, %s87
    %s91 = sphi 0, %s90
    %s107 = sphi 0, %s91
  $region4: #{up_forward.5} parent=0 // loop_header_branch
    %12 = sbr.rel (%p10) target = $region8
  $region5: #{up_forward.5} parent=0 // loop_body
    %s14 = ssub.s32 %s9, 1
    %s15 = ssub.s32 %s9, 2
    %s16 = sadd.s32 %s9, 1
    %s17 = ssub.s32 %s9, %s16
    %p18 = scmp.eq.s32.totalorder %s17, 0
    %s20 = sadd.s32 %s19, 1
    %s21 = scalar_select %p18, %s19, %s20
    %p24 = pneg %p18
    %p25 = scmp.eq.s32.totalorder %s9, 1
    %p26 = por %p24, %p25
    %p27 = scmp.ne.s32.totalorder %s19, %s22
    %p28 = scmp.eq.s32.totalorder %s9, 0
    %p29 = por %p27, %p28
    %p30 = scmp.ne.s32.totalorder %s19, %s22
    %p31 = scmp.eq.s32.totalorder %s14, 1
    %p32 = por %p30, %p31
    %p33 = scmp.ne.s32.totalorder %s22, %s23
    %p34 = scmp.eq.s32.totalorder %s14, 0
    %p35 = por %p33, %p34
    %p36 = scmp.ne.s32.totalorder %s22, %s23
    %p37 = scmp.eq.s32.totalorder %s15, 1
    %p38 = por %p36, %p37
    %p40 = scmp.ne.s32.totalorder %s23, %s39
    %p41 = scmp.eq.s32.totalorder %s15, 0
    %p42 = por %p40, %p41
    %s44 = sadd.s32 %s43, 1
    %p47 = scmp.eq.s32.totalorder %s9, 1
    %p48 = scmp.ne.s32.totalorder %s43, %s45
    %p49 = scmp.eq.s32.totalorder %s9, 0
    %p50 = por %p48, %p49
    %p51 = scmp.ne.s32.totalorder %s43, %s45
    %p52 = scmp.eq.s32.totalorder %s14, 1
    %p53 = por %p51, %p52
    %p54 = scmp.ne.s32.totalorder %s45, %s46
    %p55 = scmp.eq.s32.totalorder %s14, 0
    %p56 = por %p54, %p55
    %p57 = scmp.ne.s32.totalorder %s45, %s46
    %p58 = scmp.eq.s32.totalorder %s15, 1
    %p59 = por %p57, %p58
    %p61 = scmp.ne.s32.totalorder %s46, %s60
    %p62 = scmp.eq.s32.totalorder %s15, 0
    %p63 = por %p61, %p62
    %s65 = sadd.s32 %s64, 1
    %p68 = scmp.eq.s32.totalorder %s9, 1
    %p69 = scmp.ne.s32.totalorder %s64, %s66
    %p70 = scmp.eq.s32.totalorder %s9, 0
    %p71 = por %p69, %p70
    %p72 = scmp.ne.s32.totalorder %s64, %s66
    %p73 = scmp.eq.s32.totalorder %s14, 1
    %p74 = por %p72, %p73
    %p75 = scmp.ne.s32.totalorder %s66, %s67
    %p76 = scmp.eq.s32.totalorder %s14, 0
    %p77 = por %p75, %p76
    %p78 = scmp.ne.s32.totalorder %s66, %s67
    %p79 = scmp.eq.s32.totalorder %s15, 1
    %p80 = por %p78, %p79
    %p82 = scmp.ne.s32.totalorder %s67, %s81
    %p83 = scmp.eq.s32.totalorder %s15, 0
    %p84 = por %p82, %p83
    %s85 = ssub.s32 %s9, %s16
    %p86 = scmp.eq.s32.totalorder %s85, 0
    %s88 = sadd.s32 %s87, 1
    %s89 = scalar_select %p86, %s87, %s88
    %p92 = pneg %p86
    %p93 = scmp.eq.s32.totalorder %s9, 1
    %p94 = por %p92, %p93
    %p95 = scmp.ne.s32.totalorder %s87, %s90
    %p96 = scmp.eq.s32.totalorder %s9, 0
    %p97 = por %p95, %p96
    %p98 = scmp.ne.s32.totalorder %s87, %s90
    %p99 = scmp.eq.s32.totalorder %s14, 1
    %p100 = por %p98, %p99
    %p101 = scmp.ne.s32.totalorder %s90, %s91
    %p102 = scmp.eq.s32.totalorder %s14, 0
    %p103 = por %p101, %p102
    %p104 = scmp.ne.s32.totalorder %s90, %s91
    %p105 = scmp.eq.s32.totalorder %s15, 1
    %p106 = por %p104, %p105
    %p108 = scmp.ne.s32.totalorder %s91, %s107
    %p109 = scmp.eq.s32.totalorder %s15, 0
    %p110 = por %p108, %p109
    %p111 = scmp.le.s32.totalorder 1, %s9
    %p112 = scmp.lt.s32.totalorder %s9, 3
    %p113 = pnand %p111, %p112
    %p114 = pneg %p113
    // Predicated region
    $region9: #{up_forward.5} parent=5 // pred_check
      _
    $region10: #{up_forward.5} parent=5 // pred_check_branch
      %116 = sbr.rel (%p113) target = $region12
    $region11: #{up_forward.5} parent=5 // pred_region
      %s117 = ssub.s32 %s9, 1
      // Predicated region
      $region13: #{up_forward.5} parent=11 // pred_check
        %p118 = pneg %p56
      $region14: #{up_forward.5} parent=11 // pred_check_branch
        %120 = sbr.rel (%p118) target = $region16
      $region15: #{up_forward.5} parent=11 // pred_region
        _
      $region16: #{up_forward.5} parent=11 // pred_fallthru
        _
      // Predicated region
      $region17: #{up_forward.5} parent=11 // pred_check
        %p121 = pneg %p77
      $region18: #{up_forward.5} parent=11 // pred_check_branch
        %123 = sbr.rel (%p121) target = $region20
      $region19: #{up_forward.5} parent=11 // pred_region
        _
      $region20: #{up_forward.5} parent=11 // pred_fallthru
        _
    $region12: #{up_forward.5} parent=5 // pred_fallthru
      _
    %p124 = scmp.lt.s32.totalorder %s9, 2
    // Predicated region
    $region21: #{up_forward.5} parent=5 // pred_check
      %p125 = pneg %p124
    $region22: #{up_forward.5} parent=5 // pred_check_branch
      %127 = sbr.rel (%p125) target = $region24
    $region23: #{up_forward.5} parent=5 // pred_region
      // Predicated region
      $region25: #{up_forward.5} parent=23 // pred_check
        %p128 = pneg %p29
      $region26: #{up_forward.5} parent=23 // pred_check_branch
        %130 = sbr.rel (%p128) target = $region28
      $region27: #{up_forward.5} parent=23 // pred_region
        %p131 = scmp.lt.s32.totalorder %s9, 1
        %s132 = scalar_select %p131, %s9, 1
        %s133 = smul.addr %s132, 2
        %s134 = smul.addr %s133, 4
        %s135 = scalar_lea.vmem %s0, %s134
      $region28: #{up_forward.5} parent=23 // pred_fallthru
        _
    $region24: #{up_forward.5} parent=5 // pred_fallthru
      _
    %p136 = scmp.le.s32.totalorder 1, %s9
    %p137 = scmp.lt.s32.totalorder %s9, 3
    %p138 = pnand %p136, %p137
    %p139 = pneg %p138
    // Predicated region
    $region29: #{up_forward.5} parent=5 // pred_check
      _
    $region30: #{up_forward.5} parent=5 // pred_check_branch
      %141 = sbr.rel (%p138) target = $region32
    $region31: #{up_forward.5} parent=5 // pred_region
      %s142 = ssub.s32 %s9, 1
      %p143 = scmp.lt.s32.totalorder %s14, 1
      %s144 = scalar_select %p143, %s14, 1
      %s145 = smul.addr %s144, 2
      %s146 = smul.addr %s145, 4
      %s147 = scalar_lea.vmem %s0, %s146
      %p148 = pneg %p35
      %p149 = pneg %p32
      %p150 = pneg %p56
      %p151 = pneg %p53
      %p152 = pneg %p77
      %p153 = pneg %p74
      %p154 = pneg %p103
      %p155 = pneg %p100
      %p156 = scmp.lt.s32.totalorder %s14, 1
      %s157 = scalar_select %p156, %s14, 1
      %s158 = smul.addr %s157, 2
      %s159 = smul.addr %s158, 8
      %s160 = scalar_lea.vmem %s3, %s159
      %p161 = scmp.lt.s32.totalorder %s14, 1
      %s162 = scalar_select %p161, %s14, 1
      %s163 = smul.addr %s162, 2
      %s164 = smul.addr %s163, 4
      %s165 = scalar_lea.vmem %s0, %s164
      %p166 = scmp.lt.s32.totalorder %s14, 1
      %s167 = scalar_select %p166, %s14, 1
      %s168 = smul.addr %s167, 2
      %s169 = smul.addr %s168, 8
      %s170 = scalar_lea.vmem %s3, %s169
      %v171 = vld [vmem:[%s165] sm:$0xff]
      %v172 = vunpack.c.l.bf16 %v171
      %v173 = vunpack.c.h.bf16 %v171
      %v174 = vld [vmem:[%s1] sm:$0xff]
      %176 = vset.pattern.permute.xlu0 0
      %177 = vperm.xlu0 %176, %v174
      %v178 = vpop.permute.xlu0 %177
      %v180 = vmul.f32 %v172, %v178
      %v181 = vmul.f32 %v173, %v178
      %v182 = vld [vmem:[%s2] sm:$0xff]
      %184 = vset.pattern.permute.xlu0 0
      %185 = vperm.xlu0 %184, %v182
      %v186 = vpop.permute.xlu0 %185
      %v188 = vadd.f32 %v180, %v186
      %v189 = vadd.f32 %v181, %v186
      %v190 = vmax.f32 %v188, 0.0
      %v191 = vmax.f32 %v189, 0.0
      %192 = vst [vmem:[%s170] sm:$0xff] %v190
      %193 = vst [vmem:[%s170 + $0x8] sm:$0xff] %v191
      %p194 = scmp.lt.s32.totalorder %s14, 1
      %s195 = scalar_select %p194, %s14, 1
      %s196 = smul.addr %s195, 2
      %s197 = smul.addr %s196, 8
      %s198 = scalar_lea.vmem %s3, %s197
      // Predicated region
      $region33: #{up_forward.5} parent=31 // pred_check
        %p199 = pneg %p100
      $region34: #{up_forward.5} parent=31 // pred_check_branch
        %201 = sbr.rel (%p199) target = $region36
      $region35: #{up_forward.5} parent=31 // pred_region
        _
      $region36: #{up_forward.5} parent=31 // pred_fallthru
        _
    $region32: #{up_forward.5} parent=5 // pred_fallthru
      _
    %p202 = scmp.le.s32.totalorder 2, %s9
    // Predicated region
    $region37: #{up_forward.5} parent=5 // pred_check
      %p203 = pneg %p202
    $region38: #{up_forward.5} parent=5 // pred_check_branch
      %205 = sbr.rel (%p203) target = $region40
    $region39: #{up_forward.5} parent=5 // pred_region
      %s206 = ssub.s32 %s9, 2
      // Predicated region
      $region41: #{up_forward.5} parent=39 // pred_check
        %p207 = pneg %p106
      $region42: #{up_forward.5} parent=39 // pred_check_branch
        %209 = sbr.rel (%p207) target = $region44
      $region43: #{up_forward.5} parent=39 // pred_region
        %p210 = scmp.lt.s32.totalorder %s15, 1
        %s211 = scalar_select %p210, %s15, 1
        %s212 = smul.addr %s211, 2
        %s213 = smul.addr %s212, 8
        %s214 = scalar_lea.vmem %s3, %s213
      $region44: #{up_forward.5} parent=39 // pred_fallthru
        _
    $region40: #{up_forward.5} parent=5 // pred_fallthru
      _
  $region6: #{up_forward.5} parent=0 // loop_footer
    %s13 = sadd.s32 1, %s9
  $region7: #{up_forward.5} parent=0 // loop_footer_branch
    %8 = sbr.rel target = $region3
  $region8: #{up_forward.5} parent=0 // loop_exit
    _

// kernel: up_forward.4
$region0: #{up_forward.4}
  #allocation0 [shape = 'u32[]', space=smem, size = 0x4, offset = 0x4, fixed_abs, tag = 'smem constant byte address 0x4 - core index']
  #allocation1 [shape = 'u32[144,128]{1,0:T(1,128)}', space=vmem, size = 0x12000, scoped, tag = 'internal scratch']
  %s0 = inlined_call_operand.vmem [shape: bf16[2,4,256], index: 0, kind: input, shape index: {}]
  %s1 = inlined_call_operand.vmem [shape: f32[4,1], index: 1, kind: input, shape index: {}]
  %s2 = inlined_call_operand.vmem [shape: f32[4,1], index: 2, kind: input, shape index: {}]
  %s3 = inlined_call_operand.vmem [shape: bf16[2,256], index: 3, kind: input, shape index: {}]
  %s4 = inlined_call_operand.vmem [shape: bf16[9,8,4], index: 4, kind: input, shape index: {}]
  %s5 = inlined_call_operand.vmem [shape: bf16[2,8,256], index: 5, kind: output, shape index: {0}]
  %s6 = inlined_call_operand.vmem [shape: f32[2,8,2], index: 6, kind: output, shape index: {1}]
  %7 = xla_tuple %s5, %s6
  %s8 = sld [smem:[#allocation0]]
  $region61: #{up_forward.4} parent=0
    _
  %s10 = ssub.s32 1, %s8
  %s11 = scalar_select 0, %s10, %s8
  loop: start=0, step=1, limit=4
  $region2: #{up_forward.4} parent=0 // loop_pre_header
    _
  $region3: #{up_forward.4} parent=0 // loop_header
    %s13 = sphi 0, %s17
    %p14 = scmp.ge.s32.totalorder %s13, 4
    %s23 = sphi 0, %s25
    %s26 = sphi 0, %s23
    %s27 = sphi 0, %s26
    %s43 = sphi 0, %s27
    %s47 = sphi 0, %s47
    %s49 = sphi 0, %s47
    %s50 = sphi 0, %s49
    %s64 = sphi 0, %s50
    %s68 = sphi 0, %s68
    %s70 = sphi 0, %s68
    %s71 = sphi 0, %s70
    %s85 = sphi 0, %s71
    %s89 = sphi 0, %s89
    %s91 = sphi 0, %s89
    %s92 = sphi 0, %s91
    %s106 = sphi 0, %s92
    %s110 = sphi 0, %s110
    %s112 = sphi 0, %s110
    %s113 = sphi 0, %s112
    %s127 = sphi 0, %s113
    %s133 = sphi 0, %s135
    %s136 = sphi 0, %s133
    %s137 = sphi 0, %s136
    %s153 = sphi 0, %s137
    %s159 = sphi 0, %s161
    %s162 = sphi 0, %s159
    %s163 = sphi 0, %s162
    %s179 = sphi 0, %s163
  $region4: #{up_forward.4} parent=0 // loop_header_branch
    %16 = sbr.rel (%p14) target = $region8
  $region5: #{up_forward.4} parent=0 // loop_body
    %s18 = ssub.s32 %s13, 1
    %s19 = ssub.s32 %s13, 2
    %s20 = sadd.s32 %s13, 1
    %s21 = ssub.s32 %s13, %s20
    %p22 = scmp.eq.s32.totalorder %s21, 0
    %s24 = sadd.s32 %s23, 1
    %s25 = scalar_select %p22, %s23, %s24
    %p28 = pneg %p22
    %p29 = scmp.eq.s32.totalorder %s13, 1
    %p30 = por %p28, %p29
    %p31 = scmp.ne.s32.totalorder %s23, %s26
    %p32 = scmp.eq.s32.totalorder %s13, 0
    %p33 = por %p31, %p32
    %p34 = scmp.ne.s32.totalorder %s23, %s26
    %p35 = scmp.eq.s32.totalorder %s18, 1
    %p36 = por %p34, %p35
    %p37 = scmp.ne.s32.totalorder %s26, %s27
    %p38 = scmp.eq.s32.totalorder %s18, 0
    %p39 = por %p37, %p38
    %p40 = scmp.ne.s32.totalorder %s26, %s27
    %p41 = scmp.eq.s32.totalorder %s19, 1
    %p42 = por %p40, %p41
    %p44 = scmp.ne.s32.totalorder %s27, %s43
    %p45 = scmp.eq.s32.totalorder %s19, 0
    %p46 = por %p44, %p45
    %s48 = sadd.s32 %s47, 1
    %p51 = scmp.eq.s32.totalorder %s13, 1
    %p52 = scmp.ne.s32.totalorder %s47, %s49
    %p53 = scmp.eq.s32.totalorder %s13, 0
    %p54 = por %p52, %p53
    %p55 = scmp.ne.s32.totalorder %s47, %s49
    %p56 = scmp.eq.s32.totalorder %s18, 1
    %p57 = por %p55, %p56
    %p58 = scmp.ne.s32.totalorder %s49, %s50
    %p59 = scmp.eq.s32.totalorder %s18, 0
    %p60 = por %p58, %p59
    %p61 = scmp.ne.s32.totalorder %s49, %s50
    %p62 = scmp.eq.s32.totalorder %s19, 1
    %p63 = por %p61, %p62
    %p65 = scmp.ne.s32.totalorder %s50, %s64
    %p66 = scmp.eq.s32.totalorder %s19, 0
    %p67 = por %p65, %p66
    %s69 = sadd.s32 %s68, 1
    %p72 = scmp.eq.s32.totalorder %s13, 1
    %p73 = scmp.ne.s32.totalorder %s68, %s70
    %p74 = scmp.eq.s32.totalorder %s13, 0
    %p75 = por %p73, %p74
    %p76 = scmp.ne.s32.totalorder %s68, %s70
    %p77 = scmp.eq.s32.totalorder %s18, 1
    %p78 = por %p76, %p77
    %p79 = scmp.ne.s32.totalorder %s70, %s71
    %p80 = scmp.eq.s32.totalorder %s18, 0
    %p81 = por %p79, %p80
    %p82 = scmp.ne.s32.totalorder %s70, %s71
    %p83 = scmp.eq.s32.totalorder %s19, 1
    %p84 = por %p82, %p83
    %p86 = scmp.ne.s32.totalorder %s71, %s85
    %p87 = scmp.eq.s32.totalorder %s19, 0
    %p88 = por %p86, %p87
    %s90 = sadd.s32 %s89, 1
    %p93 = scmp.eq.s32.totalorder %s13, 1
    %p94 = scmp.ne.s32.totalorder %s89, %s91
    %p95 = scmp.eq.s32.totalorder %s13, 0
    %p96 = por %p94, %p95
    %p97 = scmp.ne.s32.totalorder %s89, %s91
    %p98 = scmp.eq.s32.totalorder %s18, 1
    %p99 = por %p97, %p98
    %p100 = scmp.ne.s32.totalorder %s91, %s92
    %p101 = scmp.eq.s32.totalorder %s18, 0
    %p102 = por %p100, %p101
    %p103 = scmp.ne.s32.totalorder %s91, %s92
    %p104 = scmp.eq.s32.totalorder %s19, 1
    %p105 = por %p103, %p104
    %p107 = scmp.ne.s32.totalorder %s92, %s106
    %p108 = scmp.eq.s32.totalorder %s19, 0
    %p109 = por %p107, %p108
    %s111 = sadd.s32 %s110, 1
    %p114 = scmp.eq.s32.totalorder %s13, 1
    %p115 = scmp.ne.s32.totalorder %s110, %s112
    %p116 = scmp.eq.s32.totalorder %s13, 0
    %p117 = por %p115, %p116
    %p118 = scmp.ne.s32.totalorder %s110, %s112
    %p119 = scmp.eq.s32.totalorder %s18, 1
    %p120 = por %p118, %p119
    %p121 = scmp.ne.s32.totalorder %s112, %s113
    %p122 = scmp.eq.s32.totalorder %s18, 0
    %p123 = por %p121, %p122
    %p124 = scmp.ne.s32.totalorder %s112, %s113
    %p125 = scmp.eq.s32.totalorder %s19, 1
    %p126 = por %p124, %p125
    %p128 = scmp.ne.s32.totalorder %s113, %s127
    %p129 = scmp.eq.s32.totalorder %s19, 0
    %p130 = por %p128, %p129
    %s131 = ssub.s32 %s13, %s20
    %p132 = scmp.eq.s32.totalorder %s131, 0
    %s134 = sadd.s32 %s133, 1
    %s135 = scalar_select %p132, %s133, %s134
    %p138 = pneg %p132
    %p139 = scmp.eq.s32.totalorder %s13, 1
    %p140 = por %p138, %p139
    %p141 = scmp.ne.s32.totalorder %s133, %s136
    %p142 = scmp.eq.s32.totalorder %s13, 0
    %p143 = por %p141, %p142
    %p144 = scmp.ne.s32.totalorder %s133, %s136
    %p145 = scmp.eq.s32.totalorder %s18, 1
    %p146 = por %p144, %p145
    %p147 = scmp.ne.s32.totalorder %s136, %s137
    %p148 = scmp.eq.s32.totalorder %s18, 0
    %p149 = por %p147, %p148
    %p150 = scmp.ne.s32.totalorder %s136, %s137
    %p151 = scmp.eq.s32.totalorder %s19, 1
    %p152 = por %p150, %p151
    %p154 = scmp.ne.s32.totalorder %s137, %s153
    %p155 = scmp.eq.s32.totalorder %s19, 0
    %p156 = por %p154, %p155
    %s157 = ssub.s32 %s13, %s20
    %p158 = scmp.eq.s32.totalorder %s157, 0
    %s160 = sadd.s32 %s159, 1
    %s161 = scalar_select %p158, %s159, %s160
    %p164 = pneg %p158
    %p165 = scmp.eq.s32.totalorder %s13, 1
    %p166 = por %p164, %p165
    %p167 = scmp.ne.s32.totalorder %s159, %s162
    %p168 = scmp.eq.s32.totalorder %s13, 0
    %p169 = por %p167, %p168
    %p170 = scmp.ne.s32.totalorder %s159, %s162
    %p171 = scmp.eq.s32.totalorder %s18, 1
    %p172 = por %p170, %p171
    %p173 = scmp.ne.s32.totalorder %s162, %s163
    %p174 = scmp.eq.s32.totalorder %s18, 0
    %p175 = por %p173, %p174
    %p176 = scmp.ne.s32.totalorder %s162, %s163
    %p177 = scmp.eq.s32.totalorder %s19, 1
    %p178 = por %p176, %p177
    %p180 = scmp.ne.s32.totalorder %s163, %s179
    %p181 = scmp.eq.s32.totalorder %s19, 0
    %p182 = por %p180, %p181
    %p183 = scmp.le.s32.totalorder 1, %s13
    %p184 = scmp.lt.s32.totalorder %s13, 3
    %p185 = pnand %p183, %p184
    %p186 = pneg %p185
    // Predicated region
    $region9: #{up_forward.4} parent=5 // pred_check
      _
    $region10: #{up_forward.4} parent=5 // pred_check_branch
      %188 = sbr.rel (%p185) target = $region12
    $region11: #{up_forward.4} parent=5 // pred_region
      %s189 = ssub.s32 %s13, 1
      // Predicated region
      $region13: #{up_forward.4} parent=11 // pred_check
        %p190 = pneg %p60
      $region14: #{up_forward.4} parent=11 // pred_check_branch
        %192 = sbr.rel (%p190) target = $region16
      $region15: #{up_forward.4} parent=11 // pred_region
        _
      $region16: #{up_forward.4} parent=11 // pred_fallthru
        _
      // Predicated region
      $region17: #{up_forward.4} parent=11 // pred_check
        %p193 = pneg %p81
      $region18: #{up_forward.4} parent=11 // pred_check_branch
        %195 = sbr.rel (%p193) target = $region20
      $region19: #{up_forward.4} parent=11 // pred_region
        _
      $region20: #{up_forward.4} parent=11 // pred_fallthru
        _
      // Predicated region
      $region21: #{up_forward.4} parent=11 // pred_check
        %p196 = pneg %p102
      $region22: #{up_forward.4} parent=11 // pred_check_branch
        %198 = sbr.rel (%p196) target = $region24
      $region23: #{up_forward.4} parent=11 // pred_region
        _
      $region24: #{up_forward.4} parent=11 // pred_fallthru
        _
      // Predicated region
      $region25: #{up_forward.4} parent=11 // pred_check
        %p199 = pneg %p123
      $region26: #{up_forward.4} parent=11 // pred_check_branch
        %201 = sbr.rel (%p199) target = $region28
      $region27: #{up_forward.4} parent=11 // pred_region
        _
      $region28: #{up_forward.4} parent=11 // pred_fallthru
        _
    $region12: #{up_forward.4} parent=5 // pred_fallthru
      _
    %p202 = scmp.lt.s32.totalorder %s13, 2
    // Predicated region
    $region29: #{up_forward.4} parent=5 // pred_check
      %p203 = pneg %p202
    $region30: #{up_forward.4} parent=5 // pred_check_branch
      %205 = sbr.rel (%p203) target = $region32
    $region31: #{up_forward.4} parent=5 // pred_region
      // Predicated region
      $region33: #{up_forward.4} parent=31 // pred_check
        %p206 = pneg %p33
      $region34: #{up_forward.4} parent=31 // pred_check_branch
        %208 = sbr.rel (%p206) target = $region36
      $region35: #{up_forward.4} parent=31 // pred_region
        %p209 = scmp.lt.s32.totalorder %s13, 1
        %s210 = scalar_select %p209, %s13, 1
        %s211 = smul.addr %s210, 2
        %s212 = smul.addr %s211, 2
        %s213 = scalar_lea.vmem %s0, %s212
      $region36: #{up_forward.4} parent=31 // pred_fallthru
        _
    $region32: #{up_forward.4} parent=5 // pred_fallthru
      _
    %p214 = scmp.le.s32.totalorder 1, %s13
    %p215 = scmp.lt.s32.totalorder %s13, 3
    %p216 = pnand %p214, %p215
    %p217 = pneg %p216
    // Predicated region
    $region37: #{up_forward.4} parent=5 // pred_check
      _
    $region38: #{up_forward.4} parent=5 // pred_check_branch
      %219 = sbr.rel (%p216) target = $region40
    $region39: #{up_forward.4} parent=5 // pred_region
      %s220 = ssub.s32 %s13, 1
      %p221 = scmp.lt.s32.totalorder %s18, 1
      %s222 = scalar_select %p221, %s18, 1
      %s223 = smul.addr %s222, 2
      %s224 = smul.addr %s223, 2
      %s225 = scalar_lea.vmem %s0, %s224
      %p226 = pneg %p39
      %p227 = pneg %p36
      %p228 = pneg %p60
      %p229 = pneg %p57
      %p230 = pneg %p81
      %p231 = pneg %p78
      %p232 = pneg %p102
      %p233 = pneg %p99
      %p234 = pneg %p123
      %p235 = pneg %p120
      %p236 = pneg %p149
      %p237 = pneg %p146
      %p238 = scmp.lt.s32.totalorder %s18, 1
      %s239 = scalar_select %p238, %s18, 1
      %s240 = smul.addr %s239, 2
      %s241 = smul.addr %s240, 4
      %s242 = scalar_lea.vmem %s5, %s241
      %p243 = pneg %p175
      %p244 = pneg %p172
      %p245 = scmp.lt.s32.totalorder %s18, 1
      %s246 = scalar_select %p245, %s18, 1
      %s247 = smul.addr %s246, 8
      %s248 = scalar_lea.vmem %s6, %s247
      %p249 = scmp.lt.s32.totalorder %s18, 1
      %s250 = scalar_select %p249, %s18, 1
      %s251 = smul.addr %s250, 2
      %s252 = smul.addr %s251, 2
      %s253 = scalar_lea.vmem %s0, %s252
      %p254 = scmp.lt.s32.totalorder %s18, 1
      %s255 = scalar_select %p254, %s18, 1
      %s256 = smul.addr %s255, 2
      %s257 = smul.addr %s256, 4
      %s258 = scalar_lea.vmem %s5, %s257
      %p259 = scmp.lt.s32.totalorder %s18, 1
      %s260 = scalar_select %p259, %s18, 1
      %s261 = smul.addr %s260, 8
      %s262 = scalar_lea.vmem %s6, %s261
      %v264 = vld [vmem:[%s253] sm:$0xf]
      %v265 = vunpack.c.l.bf16 %v264
      %v266 = vld [vmem:[%s1] sm:$0xf]
      %268 = vset.pattern.permute.xlu0 0
      %269 = vperm.xlu0 %268, %v266
      %v270 = vpop.permute.xlu0 %269
      %v272 = vunpack.c.l.s4 839922192
      %v273 = vunpack.c.0.s8 %v272
      %v274 = vlaneseq
      %v275 = vshrl.u32 %v274, 7
      %v276 = vsub.s32 %v273, %v275
      %v277 = vrot.slane %v270, %v276
      %v279 = vmul.f32 %v265, %v277
      %v280 = vld [vmem:[%s2] sm:$0xf]
      %282 = vset.pattern.permute.xlu0 0
      %283 = vperm.xlu0 %282, %v280
      %v284 = vpop.permute.xlu0 %283
      %v286 = vunpack.c.l.s4 839922192
      %v287 = vunpack.c.0.s8 %v286
      %v288 = vlaneseq
      %v289 = vshrl.u32 %v288, 7
      %v290 = vsub.s32 %v287, %v289
      %v291 = vrot.slane %v284, %v290
      %v293 = vadd.f32 %v279, %v291
      %v294 = vmax.f32 %v293, 0.0
      %v296 = vcombine.high %v294, %v294
      %v298 = vpack.c.bf16 %v294, %v294
      %v299 = vpack.c.bf16 %v296, %v296
      %v300 = vld [vmem:[%s3] sm:$0x3]
      %v303 = vunpack.c.l.s4 1966171168
      %v304 = vunpack.c.0.s8 %v303
      %v305 = vlaneseq
      %v306 = vshrl.u32 %v305, 7
      %v307 = vsub.s32 %v304, %v306
      %v308 = vrot.slane %v300, %v307
      %v309 = vcombine.high %v308, %v308
      %v311 = vunpack.c.l.s4 1966171168
      %v312 = vunpack.c.0.s8 %v311
      %v313 = vlaneseq
      %v314 = vshrl.u32 %v313, 7
      %v315 = vsub.s32 %v312, %v314
      %v316 = vrot.slane %v308, %v315
      %v318 = vunpack.c.l.s4 1966171168
      %v319 = vunpack.c.0.s8 %v318
      %v320 = vlaneseq
      %v321 = vshrl.u32 %v320, 7
      %v322 = vsub.s32 %v319, %v321
      %v323 = vrot.slane %v309, %v322
      %v325 = vpack.i.b16 %v316, %v316
      %v327 = vlaneseq
      %v328 = vshrl.u32 %v327, 7
      %v329 = vsub.s32 0, %v328
      %v330 = vrot.slane %v325, %v329
      %v332 = vpack.i.b16 %v323, %v323
      %v334 = vlaneseq
      %v335 = vshrl.u32 %v334, 7
      %v336 = vsub.s32 0, %v335
      %v337 = vrot.slane %v332, %v336
      %v338 = vmul.bf16 %v298, %v330
      %v339 = vmul.bf16 %v299, %v337
      %v340 = vshrl.u32 %v316, 16
      %v341 = vpack.i.b16 %v340, %v340
      %v343 = vlaneseq
      %v344 = vshrl.u32 %v343, 7
      %v345 = vsub.s32 0, %v344
      %v346 = vrot.slane %v341, %v345
      %v347 = vshrl.u32 %v323, 16
      %v348 = vpack.i.b16 %v347, %v347
      %v350 = vlaneseq
      %v351 = vshrl.u32 %v350, 7
      %v352 = vsub.s32 0, %v351
      %v353 = vrot.slane %v348, %v352
      %v354 = vmul.bf16 %v298, %v346
      %v355 = vmul.bf16 %v299, %v353
      %358 = vrot.lane.b32.xlu0 %v338, 17
      %v359 = vpop.permute.xlu0 %358
      %360 = vrot.lane.b32.xlu0 %v339, 17
      %v361 = vpop.permute.xlu0 %360
      %vm362 = vcmask 138240
      %v363 = vsel %vm362, %v359, %v361
      %vm364 = vcmask 138240
      %v367 = vsel %vm364, 0, %v359
      %v368 = vld [vmem:[%s4] sm:$0xf]
      %371 = vrot.lane.b32.xlu0 %v298, 16
      %v372 = vpop.permute.xlu0 %371
      %373 = vrot.lane.b32.xlu0 %v299, 16
      %v374 = vpop.permute.xlu0 %373
      %vm375 = vcmask 130048
      %v376 = vsel %vm375, %v372, %v374
      %vm377 = vcmask 130048
      %v379 = vsel %vm377, 0, %v372
      %s380 = scalar_lea.vmem %s4, 4
      %v381 = vld [vmem:[%s380] sm:$0xf]
      %vm382 = vcmask 31744
      %v384 = vsel %vm382, %v381, 0
      %vm386 = vcmask 1041408
      %v387 = vsel %vm386, %v379, 0
      %v390 = vsel %vm386, %v376, 0
      %392 = vmatprep.subr.bf16.mxu0 0
      %393 = vmatpush1.bf16.msra.mxu0 0
      %394 = vmatprep.subr.bf16.mxu0 0
      %395 = vmatpush1.bf16.msra.mxu0 0
      %396 = vmatprep.subr.bf16.mxu0 0
      %397 = vmatpush1.bf16.msra.mxu0 0
      %398 = vmatprep.subr.bf16.mxu0 0
      %399 = vmatpush1.bf16.msra.mxu0 0
      %400 = vmatprep.subr.bf16.mxu0 0
      %401 = vmatpush1.bf16.msra.mxu0 0
      %402 = vmatprep.subr.bf16.mxu0 0
      %403 = vmatpush1.bf16.msra.mxu0 0
      %404 = vmatprep.subr.bf16.mxu0 0
      %405 = vmatpush1.bf16.msra.mxu0 0
      %406 = vmatprep.subr.bf16.mxu0 %v390
      %407 = vmatpush1.bf16.msra.mxu0 %v387
      %408 = vmatprep.subr.bf16.mxu0 0
      %409 = vmatpush2.bf16.msra.mxu0 0
      %410 = vmatprep.subr.bf16.mxu0 0
      %411 = vmatpush2.bf16.msra.mxu0 0
      %412 = vmatprep.subr.bf16.mxu0 0
      %413 = vmatpush2.bf16.msra.mxu0 0
      %414 = vmatprep.subr.bf16.mxu0 0
      %415 = vmatpush2.bf16.msra.mxu0 0
      %416 = vmatprep.subr.bf16.mxu0 0
      %417 = vmatpush2.bf16.msra.mxu0 0
      %418 = vmatprep.subr.bf16.mxu0 0
      %419 = vmatpush2.bf16.msra.mxu0 0
      %420 = vmatprep.subr.bf16.mxu0 0
      %421 = vmatpush2.bf16.msra.mxu0 0
      %422 = vmatprep.subr.bf16.mxu0 0
      %423 = vmatpush2.bf16.msra.mxu0 0
      %424 = vmatprep.mubr.bf16.mxu0 0
      %425 = vmatmul.mubr.bf16.gmra.mxu0 %v384
      %v426 = vpop.f32.mrf.mxu0
      %v427 = vadd.f32 0.0, %v426
      %v428 = vpop.f32.mrf.mxu0
      %v429 = vadd.f32 0.0, %v428
      %v430 = vpop.f32.mrf.mxu0
      %v431 = vpop.f32.mrf.mxu0
      %432 = vdwg.mxu0
      %v434 = vsel %vm382, %v368, 0
      %v436 = vsel %vm386, %v367, 0
      %v439 = vsel %vm386, %v363, 0
      %441 = vmatprep.subr.bf16.mxu0 0
      %442 = vmatpush1.bf16.msra.mxu0 0
      %443 = vmatprep.subr.bf16.mxu0 0
      %444 = vmatpush1.bf16.msra.mxu0 0
      %445 = vmatprep.subr.bf16.mxu0 0
      %446 = vmatpush1.bf16.msra.mxu0 0
      %447 = vmatprep.subr.bf16.mxu0 0
      %448 = vmatpush1.bf16.msra.mxu0 0
      %449 = vmatprep.subr.bf16.mxu0 0
      %450 = vmatpush1.bf16.msra.mxu0 0
      %451 = vmatprep.subr.bf16.mxu0 0
      %452 = vmatpush1.bf16.msra.mxu0 0
      %453 = vmatprep.subr.bf16.mxu0 0
      %454 = vmatpush1.bf16.msra.mxu0 0
      %455 = vmatprep.subr.bf16.mxu0 %v439
      %456 = vmatpush1.bf16.msra.mxu0 %v436
      %457 = vmatprep.subr.bf16.mxu0 0
      %458 = vmatpush2.bf16.msra.mxu0 0
      %459 = vmatprep.subr.bf16.mxu0 0
      %460 = vmatpush2.bf16.msra.mxu0 0
      %461 = vmatprep.subr.bf16.mxu0 0
      %462 = vmatpush2.bf16.msra.mxu0 0
      %463 = vmatprep.subr.bf16.mxu0 0
      %464 = vmatpush2.bf16.msra.mxu0 0
      %465 = vmatprep.subr.bf16.mxu0 0
      %466 = vmatpush2.bf16.msra.mxu0 0
      %467 = vmatprep.subr.bf16.mxu0 0
      %468 = vmatpush2.bf16.msra.mxu0 0
      %469 = vmatprep.subr.bf16.mxu0 0
      %470 = vmatpush2.bf16.msra.mxu0 0
      %471 = vmatprep.subr.bf16.mxu0 0
      %472 = vmatpush2.bf16.msra.mxu0 0
      %473 = vmatprep.mubr.bf16.mxu0 0
      %474 = vmatmul.mubr.bf16.gmra.mxu0 %v434
      %v475 = vpop.f32.mrf.mxu0
      %v476 = vadd.f32 %v427, %v475
      %v477 = vpop.f32.mrf.mxu0
      %v478 = vadd.f32 %v429, %v477
      %v479 = vpop.f32.mrf.mxu0
      %v480 = vpop.f32.mrf.mxu0
      %481 = vdwg.mxu0
      %484 = vrot.lane.b32.xlu0 %v354, 15
      %v485 = vpop.permute.xlu0 %484
      %486 = vrot.lane.b32.xlu0 %v355, 15
      %v487 = vpop.permute.xlu0 %486
      %vm488 = vcmask 121856
      %v489 = vsel %vm488, %v485, %v487
      %vm490 = vcmask 121856
      %v492 = vsel %vm490, 0, %v485
      %s493 = scalar_lea.vmem %s4, 8
      %v494 = vld [vmem:[%s493] sm:$0xf]
      %v496 = vsel %vm382, %v494, 0
      %v498 = vsel %vm386, %v492, 0
      %v501 = vsel %vm386, %v489, 0
      %503 = vmatprep.subr.bf16.mxu0 0
      %504 = vmatpush1.bf16.msra.mxu0 0
      %505 = vmatprep.subr.bf16.mxu0 0
      %506 = vmatpush1.bf16.msra.mxu0 0
      %507 = vmatprep.subr.bf16.mxu0 0
      %508 = vmatpush1.bf16.msra.mxu0 0
      %509 = vmatprep.subr.bf16.mxu0 0
      %510 = vmatpush1.bf16.msra.mxu0 0
      %511 = vmatprep.subr.bf16.mxu0 0
      %512 = vmatpush1.bf16.msra.mxu0 0
      %513 = vmatprep.subr.bf16.mxu0 0
      %514 = vmatpush1.bf16.msra.mxu0 0
      %515 = vmatprep.subr.bf16.mxu0 0
      %516 = vmatpush1.bf16.msra.mxu0 0
      %517 = vmatprep.subr.bf16.mxu0 %v501
      %518 = vmatpush1.bf16.msra.mxu0 %v498
      %519 = vmatprep.subr.bf16.mxu0 0
      %520 = vmatpush2.bf16.msra.mxu0 0
      %521 = vmatprep.subr.bf16.mxu0 0
      %522 = vmatpush2.bf16.msra.mxu0 0
      %523 = vmatprep.subr.bf16.mxu0 0
      %524 = vmatpush2.bf16.msra.mxu0 0
      %525 = vmatprep.subr.bf16.mxu0 0
      %526 = vmatpush2.bf16.msra.mxu0 0
      %527 = vmatprep.subr.bf16.mxu0 0
      %528 = vmatpush2.bf16.msra.mxu0 0
      %529 = vmatprep.subr.bf16.mxu0 0
      %530 = vmatpush2.bf16.msra.mxu0 0
      %531 = vmatprep.subr.bf16.mxu0 0
      %532 = vmatpush2.bf16.msra.mxu0 0
      %533 = vmatprep.subr.bf16.mxu0 0
      %534 = vmatpush2.bf16.msra.mxu0 0
      %535 = vmatprep.mubr.bf16.mxu0 0
      %536 = vmatmul.mubr.bf16.gmra.mxu0 %v496
      %v537 = vpop.f32.mrf.mxu0
      %v538 = vadd.f32 0.0, %v537
      %v539 = vpop.f32.mrf.mxu0
      %v540 = vadd.f32 0.0, %v539
      %v541 = vpop.f32.mrf.mxu0
      %v542 = vpop.f32.mrf.mxu0
      %543 = vdwg.mxu0
      %v544 = vadd.f32 %v476, %v538
      %v545 = vadd.f32 %v478, %v540
      %546 = vrot.lane.b32.xlu0 %v338, 1
      %v547 = vpop.permute.xlu0 %546
      %548 = vrot.lane.b32.xlu0 %v339, 1
      %v549 = vpop.permute.xlu0 %548
      %vm550 = vcmask 7168
      %v551 = vsel %vm550, %v547, %v549
      %vm552 = vcmask 7168
      %v554 = vsel %vm552, 0, %v547
      %s555 = scalar_lea.vmem %s4, 12
      %v556 = vld [vmem:[%s555] sm:$0xf]
      %v558 = vsel %vm382, %v556, 0
      %v560 = vsel %vm386, %v554, 0
      %v563 = vsel %vm386, %v551, 0
      %565 = vmatprep.subr.bf16.mxu0 0
      %566 = vmatpush1.bf16.msra.mxu0 0
      %567 = vmatprep.subr.bf16.mxu0 0
      %568 = vmatpush1.bf16.msra.mxu0 0
      %569 = vmatprep.subr.bf16.mxu0 0
      %570 = vmatpush1.bf16.msra.mxu0 0
      %571 = vmatprep.subr.bf16.mxu0 0
      %572 = vmatpush1.bf16.msra.mxu0 0
      %573 = vmatprep.subr.bf16.mxu0 0
      %574 = vmatpush1.bf16.msra.mxu0 0
      %575 = vmatprep.subr.bf16.mxu0 0
      %576 = vmatpush1.bf16.msra.mxu0 0
      %577 = vmatprep.subr.bf16.mxu0 0
      %578 = vmatpush1.bf16.msra.mxu0 0
      %579 = vmatprep.subr.bf16.mxu0 %v563
      %580 = vmatpush1.bf16.msra.mxu0 %v560
      %581 = vmatprep.subr.bf16.mxu0 0
      %582 = vmatpush2.bf16.msra.mxu0 0
      %583 = vmatprep.subr.bf16.mxu0 0
      %584 = vmatpush2.bf16.msra.mxu0 0
      %585 = vmatprep.subr.bf16.mxu0 0
      %586 = vmatpush2.bf16.msra.mxu0 0
      %587 = vmatprep.subr.bf16.mxu0 0
      %588 = vmatpush2.bf16.msra.mxu0 0
      %589 = vmatprep.subr.bf16.mxu0 0
      %590 = vmatpush2.bf16.msra.mxu0 0
      %591 = vmatprep.subr.bf16.mxu0 0
      %592 = vmatpush2.bf16.msra.mxu0 0
      %593 = vmatprep.subr.bf16.mxu0 0
      %594 = vmatpush2.bf16.msra.mxu0 0
      %595 = vmatprep.subr.bf16.mxu0 0
      %596 = vmatpush2.bf16.msra.mxu0 0
      %597 = vmatprep.mubr.bf16.mxu0 0
      %598 = vmatmul.mubr.bf16.gmra.mxu0 %v558
      %v599 = vpop.f32.mrf.mxu0
      %v600 = vadd.f32 0.0, %v599
      %v601 = vpop.f32.mrf.mxu0
      %v602 = vadd.f32 0.0, %v601
      %v603 = vpop.f32.mrf.mxu0
      %v604 = vpop.f32.mrf.mxu0
      %605 = vdwg.mxu0
      %v606 = vadd.f32 %v544, %v600
      %v607 = vadd.f32 %v545, %v602
      %s608 = scalar_lea.vmem %s4, 16
      %v609 = vld [vmem:[%s608] sm:$0xf]
      %v611 = vsel %vm382, %v609, 0
      %v614 = vsel %vm386, %v298, 0
      %v617 = vsel %vm386, %v299, 0
      %619 = vmatprep.subr.bf16.mxu0 0
      %620 = vmatpush1.bf16.msra.mxu0 0
      %621 = vmatprep.subr.bf16.mxu0 0
      %622 = vmatpush1.bf16.msra.mxu0 0
      %623 = vmatprep.subr.bf16.mxu0 0
      %624 = vmatpush1.bf16.msra.mxu0 0
      %625 = vmatprep.subr.bf16.mxu0 0
      %626 = vmatpush1.bf16.msra.mxu0 0
      %627 = vmatprep.subr.bf16.mxu0 0
      %628 = vmatpush1.bf16.msra.mxu0 0
      %629 = vmatprep.subr.bf16.mxu0 0
      %630 = vmatpush1.bf16.msra.mxu0 0
      %631 = vmatprep.subr.bf16.mxu0 0
      %632 = vmatpush1.bf16.msra.mxu0 0
      %633 = vmatprep.subr.bf16.mxu0 %v617
      %634 = vmatpush1.bf16.msra.mxu0 %v614
      %635 = vmatprep.subr.bf16.mxu0 0
      %636 = vmatpush2.bf16.msra.mxu0 0
      %637 = vmatprep.subr.bf16.mxu0 0
      %638 = vmatpush2.bf16.msra.mxu0 0
      %639 = vmatprep.subr.bf16.mxu0 0
      %640 = vmatpush2.bf16.msra.mxu0 0
      %641 = vmatprep.subr.bf16.mxu0 0
      %642 = vmatpush2.bf16.msra.mxu0 0
      %643 = vmatprep.subr.bf16.mxu0 0
      %644 = vmatpush2.bf16.msra.mxu0 0
      %645 = vmatprep.subr.bf16.mxu0 0
      %646 = vmatpush2.bf16.msra.mxu0 0
      %647 = vmatprep.subr.bf16.mxu0 0
      %648 = vmatpush2.bf16.msra.mxu0 0
      %649 = vmatprep.subr.bf16.mxu0 0
      %650 = vmatpush2.bf16.msra.mxu0 0
      %651 = vmatprep.mubr.bf16.mxu0 0
      %652 = vmatmul.mubr.bf16.gmra.mxu0 %v611
      %v653 = vpop.f32.mrf.mxu0
      %v654 = vadd.f32 0.0, %v653
      %v655 = vpop.f32.mrf.mxu0
      %v656 = vadd.f32 0.0, %v655
      %v657 = vpop.f32.mrf.mxu0
      %v658 = vpop.f32.mrf.mxu0
      %659 = vdwg.mxu0
      %v660 = vadd.f32 %v606, %v654
      %v661 = vadd.f32 %v607, %v656
      %662 = vrot.lane.b32.xlu0 %v354, 127
      %v663 = vpop.permute.xlu0 %662
      %664 = vrot.lane.b32.xlu0 %v355, 127
      %v665 = vpop.permute.xlu0 %664
      %vm666 = vcmask 1039360
      %v667 = vsel %vm666, %v663, %v665
      %vm668 = vcmask 1039360
      %v670 = vsel %vm668, %v665, 0
      %s671 = scalar_lea.vmem %s4, 20
      %v672 = vld [vmem:[%s671] sm:$0xf]
      %v674 = vsel %vm382, %v672, 0
      %v677 = vsel %vm386, %v667, 0
      %v679 = vsel %vm386, %v670, 0
      %681 = vmatprep.subr.bf16.mxu0 0
      %682 = vmatpush1.bf16.msra.mxu0 0
      %683 = vmatprep.subr.bf16.mxu0 0
      %684 = vmatpush1.bf16.msra.mxu0 0
      %685 = vmatprep.subr.bf16.mxu0 0
      %686 = vmatpush1.bf16.msra.mxu0 0
      %687 = vmatprep.subr.bf16.mxu0 0
      %688 = vmatpush1.bf16.msra.mxu0 0
      %689 = vmatprep.subr.bf16.mxu0 0
      %690 = vmatpush1.bf16.msra.mxu0 0
      %691 = vmatprep.subr.bf16.mxu0 0
      %692 = vmatpush1.bf16.msra.mxu0 0
      %693 = vmatprep.subr.bf16.mxu0 0
      %694 = vmatpush1.bf16.msra.mxu0 0
      %695 = vmatprep.subr.bf16.mxu0 %v679
      %696 = vmatpush1.bf16.msra.mxu0 %v677
      %697 = vmatprep.subr.bf16.mxu0 0
      %698 = vmatpush2.bf16.msra.mxu0 0
      %699 = vmatprep.subr.bf16.mxu0 0
      %700 = vmatpush2.bf16.msra.mxu0 0
      %701 = vmatprep.subr.bf16.mxu0 0
      %702 = vmatpush2.bf16.msra.mxu0 0
      %703 = vmatprep.subr.bf16.mxu0 0
      %704 = vmatpush2.bf16.msra.mxu0 0
      %705 = vmatprep.subr.bf16.mxu0 0
      %706 = vmatpush2.bf16.msra.mxu0 0
      %707 = vmatprep.subr.bf16.mxu0 0
      %708 = vmatpush2.bf16.msra.mxu0 0
      %709 = vmatprep.subr.bf16.mxu0 0
      %710 = vmatpush2.bf16.msra.mxu0 0
      %711 = vmatprep.subr.bf16.mxu0 0
      %712 = vmatpush2.bf16.msra.mxu0 0
      %713 = vmatprep.mubr.bf16.mxu0 0
      %714 = vmatmul.mubr.bf16.gmra.mxu0 %v674
      %v715 = vpop.f32.mrf.mxu0
      %v716 = vadd.f32 0.0, %v715
      %v717 = vpop.f32.mrf.mxu0
      %v718 = vadd.f32 0.0, %v717
      %v719 = vpop.f32.mrf.mxu0
      %v720 = vpop.f32.mrf.mxu0
      %721 = vdwg.mxu0
      %v722 = vadd.f32 %v660, %v716
      %v723 = vadd.f32 %v661, %v718
      %724 = vrot.lane.b32.xlu0 %v338, 113
      %v725 = vpop.permute.xlu0 %724
      %726 = vrot.lane.b32.xlu0 %v339, 113
      %v727 = vpop.permute.xlu0 %726
      %vm728 = vcmask 924672
      %v729 = vsel %vm728, %v725, %v727
      %vm730 = vcmask 924672
      %v732 = vsel %vm730, %v727, 0
      %s733 = scalar_lea.vmem %s4, 24
      %v734 = vld [vmem:[%s733] sm:$0xf]
      %v736 = vsel %vm382, %v734, 0
      %v739 = vsel %vm386, %v729, 0
      %v741 = vsel %vm386, %v732, 0
      %743 = vmatprep.subr.bf16.mxu0 0
      %744 = vmatpush1.bf16.msra.mxu0 0
      %745 = vmatprep.subr.bf16.mxu0 0
      %746 = vmatpush1.bf16.msra.mxu0 0
      %747 = vmatprep.subr.bf16.mxu0 0
      %748 = vmatpush1.bf16.msra.mxu0 0
      %749 = vmatprep.subr.bf16.mxu0 0
      %750 = vmatpush1.bf16.msra.mxu0 0
      %751 = vmatprep.subr.bf16.mxu0 0
      %752 = vmatpush1.bf16.msra.mxu0 0
      %753 = vmatprep.subr.bf16.mxu0 0
      %754 = vmatpush1.bf16.msra.mxu0 0
      %755 = vmatprep.subr.bf16.mxu0 0
      %756 = vmatpush1.bf16.msra.mxu0 0
      %757 = vmatprep.subr.bf16.mxu0 %v741
      %758 = vmatpush1.bf16.msra.mxu0 %v739
      %759 = vmatprep.subr.bf16.mxu0 0
      %760 = vmatpush2.bf16.msra.mxu0 0
      %761 = vmatprep.subr.bf16.mxu0 0
      %762 = vmatpush2.bf16.msra.mxu0 0
      %763 = vmatprep.subr.bf16.mxu0 0
      %764 = vmatpush2.bf16.msra.mxu0 0
      %765 = vmatprep.subr.bf16.mxu0 0
      %766 = vmatpush2.bf16.msra.mxu0 0
      %767 = vmatprep.subr.bf16.mxu0 0
      %768 = vmatpush2.bf16.msra.mxu0 0
      %769 = vmatprep.subr.bf16.mxu0 0
      %770 = vmatpush2.bf16.msra.mxu0 0
      %771 = vmatprep.subr.bf16.mxu0 0
      %772 = vmatpush2.bf16.msra.mxu0 0
      %773 = vmatprep.subr.bf16.mxu0 0
      %774 = vmatpush2.bf16.msra.mxu0 0
      %775 = vmatprep.mubr.bf16.mxu0 0
      %776 = vmatmul.mubr.bf16.gmra.mxu0 %v736
      %v777 = vpop.f32.mrf.mxu0
      %v778 = vadd.f32 0.0, %v777
      %v779 = vpop.f32.mrf.mxu0
      %v780 = vadd.f32 0.0, %v779
      %v781 = vpop.f32.mrf.mxu0
      %v782 = vpop.f32.mrf.mxu0
      %783 = vdwg.mxu0
      %v784 = vadd.f32 %v722, %v778
      %v785 = vadd.f32 %v723, %v780
      %786 = vrot.lane.b32.xlu0 %v298, 112
      %v787 = vpop.permute.xlu0 %786
      %788 = vrot.lane.b32.xlu0 %v299, 112
      %v789 = vpop.permute.xlu0 %788
      %vm790 = vcmask 916480
      %v791 = vsel %vm790, %v787, %v789
      %vm792 = vcmask 916480
      %v794 = vsel %vm792, %v789, 0
      %s795 = scalar_lea.vmem %s4, 28
      %v796 = vld [vmem:[%s795] sm:$0xf]
      %v798 = vsel %vm382, %v796, 0
      %v801 = vsel %vm386, %v791, 0
      %v803 = vsel %vm386, %v794, 0
      %805 = vmatprep.subr.bf16.mxu0 0
      %806 = vmatpush1.bf16.msra.mxu0 0
      %807 = vmatprep.subr.bf16.mxu0 0
      %808 = vmatpush1.bf16.msra.mxu0 0
      %809 = vmatprep.subr.bf16.mxu0 0
      %810 = vmatpush1.bf16.msra.mxu0 0
      %811 = vmatprep.subr.bf16.mxu0 0
      %812 = vmatpush1.bf16.msra.mxu0 0
      %813 = vmatprep.subr.bf16.mxu0 0
      %814 = vmatpush1.bf16.msra.mxu0 0
      %815 = vmatprep.subr.bf16.mxu0 0
      %816 = vmatpush1.bf16.msra.mxu0 0
      %817 = vmatprep.subr.bf16.mxu0 0
      %818 = vmatpush1.bf16.msra.mxu0 0
      %819 = vmatprep.subr.bf16.mxu0 %v803
      %820 = vmatpush1.bf16.msra.mxu0 %v801
      %821 = vmatprep.subr.bf16.mxu0 0
      %822 = vmatpush2.bf16.msra.mxu0 0
      %823 = vmatprep.subr.bf16.mxu0 0
      %824 = vmatpush2.bf16.msra.mxu0 0
      %825 = vmatprep.subr.bf16.mxu0 0
      %826 = vmatpush2.bf16.msra.mxu0 0
      %827 = vmatprep.subr.bf16.mxu0 0
      %828 = vmatpush2.bf16.msra.mxu0 0
      %829 = vmatprep.subr.bf16.mxu0 0
      %830 = vmatpush2.bf16.msra.mxu0 0
      %831 = vmatprep.subr.bf16.mxu0 0
      %832 = vmatpush2.bf16.msra.mxu0 0
      %833 = vmatprep.subr.bf16.mxu0 0
      %834 = vmatpush2.bf16.msra.mxu0 0
      %835 = vmatprep.subr.bf16.mxu0 0
      %836 = vmatpush2.bf16.msra.mxu0 0
      %837 = vmatprep.mubr.bf16.mxu0 0
      %838 = vmatmul.mubr.bf16.gmra.mxu0 %v798
      %v839 = vpop.f32.mrf.mxu0
      %v840 = vadd.f32 0.0, %v839
      %v841 = vpop.f32.mrf.mxu0
      %v842 = vadd.f32 0.0, %v841
      %v843 = vpop.f32.mrf.mxu0
      %v844 = vpop.f32.mrf.mxu0
      %845 = vdwg.mxu0
      %v846 = vadd.f32 %v784, %v840
      %v847 = vadd.f32 %v785, %v842
      %848 = vrot.lane.b32.xlu0 %v354, 111
      %v849 = vpop.permute.xlu0 %848
      %850 = vrot.lane.b32.xlu0 %v355, 111
      %v851 = vpop.permute.xlu0 %850
      %vm852 = vcmask 908288
      %v853 = vsel %vm852, %v849, %v851
      %vm854 = vcmask 908288
      %v856 = vsel %vm854, %v851, 0
      %s857 = scalar_lea.vmem %s4, 32
      %v858 = vld [vmem:[%s857] sm:$0xf]
      %v860 = vsel %vm382, %v858, 0
      %v863 = vsel %vm386, %v853, 0
      %v865 = vsel %vm386, %v856, 0
      %867 = vmatprep.subr.bf16.mxu0 0
      %868 = vmatpush1.bf16.msra.mxu0 0
      %869 = vmatprep.subr.bf16.mxu0 0
      %870 = vmatpush1.bf16.msra.mxu0 0
      %871 = vmatprep.subr.bf16.mxu0 0
      %872 = vmatpush1.bf16.msra.mxu0 0
      %873 = vmatprep.subr.bf16.mxu0 0
      %874 = vmatpush1.bf16.msra.mxu0 0
      %875 = vmatprep.subr.bf16.mxu0 0
      %876 = vmatpush1.bf16.msra.mxu0 0
      %877 = vmatprep.subr.bf16.mxu0 0
      %878 = vmatpush1.bf16.msra.mxu0 0
      %879 = vmatprep.subr.bf16.mxu0 0
      %880 = vmatpush1.bf16.msra.mxu0 0
      %881 = vmatprep.subr.bf16.mxu0 %v865
      %882 = vmatpush1.bf16.msra.mxu0 %v863
      %883 = vmatprep.subr.bf16.mxu0 0
      %884 = vmatpush2.bf16.msra.mxu0 0
      %885 = vmatprep.subr.bf16.mxu0 0
      %886 = vmatpush2.bf16.msra.mxu0 0
      %887 = vmatprep.subr.bf16.mxu0 0
      %888 = vmatpush2.bf16.msra.mxu0 0
      %889 = vmatprep.subr.bf16.mxu0 0
      %890 = vmatpush2.bf16.msra.mxu0 0
      %891 = vmatprep.subr.bf16.mxu0 0
      %892 = vmatpush2.bf16.msra.mxu0 0
      %893 = vmatprep.subr.bf16.mxu0 0
      %894 = vmatpush2.bf16.msra.mxu0 0
      %895 = vmatprep.subr.bf16.mxu0 0
      %896 = vmatpush2.bf16.msra.mxu0 0
      %897 = vmatprep.subr.bf16.mxu0 0
      %898 = vmatpush2.bf16.msra.mxu0 0
      %899 = vmatprep.mubr.bf16.mxu0 0
      %900 = vmatmul.mubr.bf16.gmra.mxu0 %v860
      %v901 = vpop.f32.mrf.mxu0
      %v902 = vadd.f32 0.0, %v901
      %v903 = vpop.f32.mrf.mxu0
      %v904 = vadd.f32 0.0, %v903
      %v905 = vpop.f32.mrf.mxu0
      %v906 = vpop.f32.mrf.mxu0
      %907 = vdwg.mxu0
      %v908 = vadd.f32 %v846, %v902
      %v909 = vadd.f32 %v847, %v904
      %v910 = vadd.f32 %v908, %v909
      %911 = vadd.xlane.f32.xlu0 %v910
      %v912 = vpop.xlane.xlu0 %911
      %v913 = vmul.f32 %v912, 0.00390625
      %v914 = vsub.f32 %v908, %v913
      %v915 = vsub.f32 %v909, %v913
      %v916 = vmul.f32 %v914, %v914
      %v917 = vmul.f32 %v915, %v915
      %v918 = vadd.f32 %v916, %v917
      %919 = vadd.xlane.f32.xlu0 %v918
      %v920 = vpop.xlane.xlu0 %919
      %v921 = vsel %vm552, %v913, %v920
      %vm922 = vcmask 15360
      %923 = vst.msk [vmem:[%s262] sm:$0xff] %vm922, %v921
      %v924 = vpack.c.bf16 %v908, %v908
      %v925 = vpack.c.bf16 %v909, %v909
      %v928 = vunpack.c.l.b16 %v924
      %v929 = vunpack.c.l.b16 %v925
      %v930 = vpack.c.b16 %v929, %v928
      %932 = vst [vmem:[%s258] sm:$0xff] %v930
      %p933 = scmp.lt.s32.totalorder %s18, 1
      %s934 = scalar_select %p933, %s18, 1
      %s935 = smul.addr %s934, 2
      %s936 = smul.addr %s935, 4
      %s937 = scalar_lea.vmem %s5, %s936
      %p938 = scmp.lt.s32.totalorder %s18, 1
      %s939 = scalar_select %p938, %s18, 1
      %s940 = smul.addr %s939, 8
      %s941 = scalar_lea.vmem %s6, %s940
      // Predicated region
      $region41: #{up_forward.4} parent=39 // pred_check
        %p942 = pneg %p146
      $region42: #{up_forward.4} parent=39 // pred_check_branch
        %944 = sbr.rel (%p942) target = $region44
      $region43: #{up_forward.4} parent=39 // pred_region
        _
      $region44: #{up_forward.4} parent=39 // pred_fallthru
        _
      // Predicated region
      $region45: #{up_forward.4} parent=39 // pred_check
        %p945 = pneg %p172
      $region46: #{up_forward.4} parent=39 // pred_check_branch
        %947 = sbr.rel (%p945) target = $region48
      $region47: #{up_forward.4} parent=39 // pred_region
        _
      $region48: #{up_forward.4} parent=39 // pred_fallthru
        _
    $region40: #{up_forward.4} parent=5 // pred_fallthru
      _
    %p948 = scmp.le.s32.totalorder 2, %s13
    // Predicated region
    $region49: #{up_forward.4} parent=5 // pred_check
      %p949 = pneg %p948
    $region50: #{up_forward.4} parent=5 // pred_check_branch
      %951 = sbr.rel (%p949) target = $region52
    $region51: #{up_forward.4} parent=5 // pred_region
      %s952 = ssub.s32 %s13, 2
      // Predicated region
      $region53: #{up_forward.4} parent=51 // pred_check
        %p953 = pneg %p152
      $region54: #{up_forward.4} parent=51 // pred_check_branch
        %955 = sbr.rel (%p953) target = $region56
      $region55: #{up_forward.4} parent=51 // pred_region
        %p956 = scmp.lt.s32.totalorder %s19, 1
        %s957 = scalar_select %p956, %s19, 1
        %s958 = smul.addr %s957, 2
        %s959 = smul.addr %s958, 4
        %s960 = scalar_lea.vmem %s5, %s959
      $region56: #{up_forward.4} parent=51 // pred_fallthru
        _
      // Predicated region
      $region57: #{up_forward.4} parent=51 // pred_check
        %p961 = pneg %p178
      $region58: #{up_forward.4} parent=51 // pred_check_branch
        %963 = sbr.rel (%p961) target = $region60
      $region59: #{up_forward.4} parent=51 // pred_region
        %p964 = scmp.lt.s32.totalorder %s19, 1
        %s965 = scalar_select %p964, %s19, 1
        %s966 = smul.addr %s965, 8
        %s967 = scalar_lea.vmem %s6, %s966
      $region60: #{up_forward.4} parent=51 // pred_fallthru
        _
    $region52: #{up_forward.4} parent=5 // pred_fallthru
      _
  $region6: #{up_forward.4} parent=0 // loop_footer
    %s17 = sadd.s32 1, %s13
  $region7: #{up_forward.4} parent=0 // loop_footer_branch
    %12 = sbr.rel target = $region3
  $region8: #{up_forward.4} parent=0 // loop_exit
    _

// kernel: up_forward.3
$region0: #{up_forward.3}
  #allocation0 [shape = 'u32[]', space=smem, size = 0x4, offset = 0x4, fixed_abs, tag = 'smem constant byte address 0x4 - core index']
  #allocation1 [shape = 'u32[144,128]{1,0:T(1,128)}', space=vmem, size = 0x12000, scoped, tag = 'internal scratch']
  %s0 = inlined_call_operand.vmem [shape: f32[2,4,256], index: 0, kind: input, shape index: {}]
  %s1 = inlined_call_operand.vmem [shape: f32[2,4,256], index: 1, kind: input, shape index: {}]
  %s2 = inlined_call_operand.vmem [shape: bf16[2,256], index: 2, kind: input, shape index: {}]
  %s3 = inlined_call_operand.vmem [shape: bf16[9,4,4], index: 3, kind: input, shape index: {}]
  %s4 = inlined_call_operand.vmem [shape: bf16[9,4,4], index: 4, kind: input, shape index: {}]
  %s5 = inlined_call_operand.vmem [shape: bf16[2,4,256], index: 5, kind: output, shape index: {0}]
  %s6 = inlined_call_operand.vmem [shape: f32[2,4,2], index: 6, kind: output, shape index: {1}]
  %7 = xla_tuple %s5, %s6
  %s8 = sld [smem:[#allocation0]]
  $region61: #{up_forward.3} parent=0
    _
  %s10 = ssub.s32 1, %s8
  %s11 = scalar_select 0, %s10, %s8
  loop: start=0, step=1, limit=4
  $region2: #{up_forward.3} parent=0 // loop_pre_header
    _
  $region3: #{up_forward.3} parent=0 // loop_header
    %s13 = sphi 0, %s17
    %p14 = scmp.ge.s32.totalorder %s13, 4
    %s23 = sphi 0, %s25
    %s26 = sphi 0, %s23
    %s27 = sphi 0, %s26
    %s43 = sphi 0, %s27
    %s49 = sphi 0, %s51
    %s52 = sphi 0, %s49
    %s53 = sphi 0, %s52
    %s69 = sphi 0, %s53
    %s73 = sphi 0, %s73
    %s75 = sphi 0, %s73
    %s76 = sphi 0, %s75
    %s90 = sphi 0, %s76
    %s94 = sphi 0, %s94
    %s96 = sphi 0, %s94
    %s97 = sphi 0, %s96
    %s111 = sphi 0, %s97
    %s115 = sphi 0, %s115
    %s117 = sphi 0, %s115
    %s118 = sphi 0, %s117
    %s132 = sphi 0, %s118
    %s138 = sphi 0, %s140
    %s141 = sphi 0, %s138
    %s142 = sphi 0, %s141
    %s158 = sphi 0, %s142
    %s164 = sphi 0, %s166
    %s167 = sphi 0, %s164
    %s168 = sphi 0, %s167
    %s184 = sphi 0, %s168
  $region4: #{up_forward.3} parent=0 // loop_header_branch
    %16 = sbr.rel (%p14) target = $region8
  $region5: #{up_forward.3} parent=0 // loop_body
    %s18 = ssub.s32 %s13, 1
    %s19 = ssub.s32 %s13, 2
    %s20 = sadd.s32 %s13, 1
    %s21 = ssub.s32 %s13, %s20
    %p22 = scmp.eq.s32.totalorder %s21, 0
    %s24 = sadd.s32 %s23, 1
    %s25 = scalar_select %p22, %s23, %s24
    %p28 = pneg %p22
    %p29 = scmp.eq.s32.totalorder %s13, 1
    %p30 = por %p28, %p29
    %p31 = scmp.ne.s32.totalorder %s23, %s26
    %p32 = scmp.eq.s32.totalorder %s13, 0
    %p33 = por %p31, %p32
    %p34 = scmp.ne.s32.totalorder %s23, %s26
    %p35 = scmp.eq.s32.totalorder %s18, 1
    %p36 = por %p34, %p35
    %p37 = scmp.ne.s32.totalorder %s26, %s27
    %p38 = scmp.eq.s32.totalorder %s18, 0
    %p39 = por %p37, %p38
    %p40 = scmp.ne.s32.totalorder %s26, %s27
    %p41 = scmp.eq.s32.totalorder %s19, 1
    %p42 = por %p40, %p41
    %p44 = scmp.ne.s32.totalorder %s27, %s43
    %p45 = scmp.eq.s32.totalorder %s19, 0
    %p46 = por %p44, %p45
    %s47 = ssub.s32 %s13, %s20
    %p48 = scmp.eq.s32.totalorder %s47, 0
    %s50 = sadd.s32 %s49, 1
    %s51 = scalar_select %p48, %s49, %s50
    %p54 = pneg %p48
    %p55 = scmp.eq.s32.totalorder %s13, 1
    %p56 = por %p54, %p55
    %p57 = scmp.ne.s32.totalorder %s49, %s52
    %p58 = scmp.eq.s32.totalorder %s13, 0
    %p59 = por %p57, %p58
    %p60 = scmp.ne.s32.totalorder %s49, %s52
    %p61 = scmp.eq.s32.totalorder %s18, 1
    %p62 = por %p60, %p61
    %p63 = scmp.ne.s32.totalorder %s52, %s53
    %p64 = scmp.eq.s32.totalorder %s18, 0
    %p65 = por %p63, %p64
    %p66 = scmp.ne.s32.totalorder %s52, %s53
    %p67 = scmp.eq.s32.totalorder %s19, 1
    %p68 = por %p66, %p67
    %p70 = scmp.ne.s32.totalorder %s53, %s69
    %p71 = scmp.eq.s32.totalorder %s19, 0
    %p72 = por %p70, %p71
    %s74 = sadd.s32 %s73, 1
    %p77 = scmp.eq.s32.totalorder %s13, 1
    %p78 = scmp.ne.s32.totalorder %s73, %s75
    %p79 = scmp.eq.s32.totalorder %s13, 0
    %p80 = por %p78, %p79
    %p81 = scmp.ne.s32.totalorder %s73, %s75
    %p82 = scmp.eq.s32.totalorder %s18, 1
    %p83 = por %p81, %p82
    %p84 = scmp.ne.s32.totalorder %s75, %s76
    %p85 = scmp.eq.s32.totalorder %s18, 0
    %p86 = por %p84, %p85
    %p87 = scmp.ne.s32.totalorder %s75, %s76
    %p88 = scmp.eq.s32.totalorder %s19, 1
    %p89 = por %p87, %p88
    %p91 = scmp.ne.s32.totalorder %s76, %s90
    %p92 = scmp.eq.s32.totalorder %s19, 0
    %p93 = por %p91, %p92
    %s95 = sadd.s32 %s94, 1
    %p98 = scmp.eq.s32.totalorder %s13, 1
    %p99 = scmp.ne.s32.totalorder %s94, %s96
    %p100 = scmp.eq.s32.totalorder %s13, 0
    %p101 = por %p99, %p100
    %p102 = scmp.ne.s32.totalorder %s94, %s96
    %p103 = scmp.eq.s32.totalorder %s18, 1
    %p104 = por %p102, %p103
    %p105 = scmp.ne.s32.totalorder %s96, %s97
    %p106 = scmp.eq.s32.totalorder %s18, 0
    %p107 = por %p105, %p106
    %p108 = scmp.ne.s32.totalorder %s96, %s97
    %p109 = scmp.eq.s32.totalorder %s19, 1
    %p110 = por %p108, %p109
    %p112 = scmp.ne.s32.totalorder %s97, %s111
    %p113 = scmp.eq.s32.totalorder %s19, 0
    %p114 = por %p112, %p113
    %s116 = sadd.s32 %s115, 1
    %p119 = scmp.eq.s32.totalorder %s13, 1
    %p120 = scmp.ne.s32.totalorder %s115, %s117
    %p121 = scmp.eq.s32.totalorder %s13, 0
    %p122 = por %p120, %p121
    %p123 = scmp.ne.s32.totalorder %s115, %s117
    %p124 = scmp.eq.s32.totalorder %s18, 1
    %p125 = por %p123, %p124
    %p126 = scmp.ne.s32.totalorder %s117, %s118
    %p127 = scmp.eq.s32.totalorder %s18, 0
    %p128 = por %p126, %p127
    %p129 = scmp.ne.s32.totalorder %s117, %s118
    %p130 = scmp.eq.s32.totalorder %s19, 1
    %p131 = por %p129, %p130
    %p133 = scmp.ne.s32.totalorder %s118, %s132
    %p134 = scmp.eq.s32.totalorder %s19, 0
    %p135 = por %p133, %p134
    %s136 = ssub.s32 %s13, %s20
    %p137 = scmp.eq.s32.totalorder %s136, 0
    %s139 = sadd.s32 %s138, 1
    %s140 = scalar_select %p137, %s138, %s139
    %p143 = pneg %p137
    %p144 = scmp.eq.s32.totalorder %s13, 1
    %p145 = por %p143, %p144
    %p146 = scmp.ne.s32.totalorder %s138, %s141
    %p147 = scmp.eq.s32.totalorder %s13, 0
    %p148 = por %p146, %p147
    %p149 = scmp.ne.s32.totalorder %s138, %s141
    %p150 = scmp.eq.s32.totalorder %s18, 1
    %p151 = por %p149, %p150
    %p152 = scmp.ne.s32.totalorder %s141, %s142
    %p153 = scmp.eq.s32.totalorder %s18, 0
    %p154 = por %p152, %p153
    %p155 = scmp.ne.s32.totalorder %s141, %s142
    %p156 = scmp.eq.s32.totalorder %s19, 1
    %p157 = por %p155, %p156
    %p159 = scmp.ne.s32.totalorder %s142, %s158
    %p160 = scmp.eq.s32.totalorder %s19, 0
    %p161 = por %p159, %p160
    %s162 = ssub.s32 %s13, %s20
    %p163 = scmp.eq.s32.totalorder %s162, 0
    %s165 = sadd.s32 %s164, 1
    %s166 = scalar_select %p163, %s164, %s165
    %p169 = pneg %p163
    %p170 = scmp.eq.s32.totalorder %s13, 1
    %p171 = por %p169, %p170
    %p172 = scmp.ne.s32.totalorder %s164, %s167
    %p173 = scmp.eq.s32.totalorder %s13, 0
    %p174 = por %p172, %p173
    %p175 = scmp.ne.s32.totalorder %s164, %s167
    %p176 = scmp.eq.s32.totalorder %s18, 1
    %p177 = por %p175, %p176
    %p178 = scmp.ne.s32.totalorder %s167, %s168
    %p179 = scmp.eq.s32.totalorder %s18, 0
    %p180 = por %p178, %p179
    %p181 = scmp.ne.s32.totalorder %s167, %s168
    %p182 = scmp.eq.s32.totalorder %s19, 1
    %p183 = por %p181, %p182
    %p185 = scmp.ne.s32.totalorder %s168, %s184
    %p186 = scmp.eq.s32.totalorder %s19, 0
    %p187 = por %p185, %p186
    %p188 = scmp.le.s32.totalorder 1, %s13
    %p189 = scmp.lt.s32.totalorder %s13, 3
    %p190 = pnand %p188, %p189
    %p191 = pneg %p190
    // Predicated region
    $region9: #{up_forward.3} parent=5 // pred_check
      _
    $region10: #{up_forward.3} parent=5 // pred_check_branch
      %193 = sbr.rel (%p190) target = $region12
    $region11: #{up_forward.3} parent=5 // pred_region
      %s194 = ssub.s32 %s13, 1
      // Predicated region
      $region13: #{up_forward.3} parent=11 // pred_check
        %p195 = pneg %p86
      $region14: #{up_forward.3} parent=11 // pred_check_branch
        %197 = sbr.rel (%p195) target = $region16
      $region15: #{up_forward.3} parent=11 // pred_region
        _
      $region16: #{up_forward.3} parent=11 // pred_fallthru
        _
      // Predicated region
      $region17: #{up_forward.3} parent=11 // pred_check
        %p198 = pneg %p107
      $region18: #{up_forward.3} parent=11 // pred_check_branch
        %200 = sbr.rel (%p198) target = $region20
      $region19: #{up_forward.3} parent=11 // pred_region
        _
      $region20: #{up_forward.3} parent=11 // pred_fallthru
        _
      // Predicated region
      $region21: #{up_forward.3} parent=11 // pred_check
        %p201 = pneg %p128
      $region22: #{up_forward.3} parent=11 // pred_check_branch
        %203 = sbr.rel (%p201) target = $region24
      $region23: #{up_forward.3} parent=11 // pred_region
        _
      $region24: #{up_forward.3} parent=11 // pred_fallthru
        _
    $region12: #{up_forward.3} parent=5 // pred_fallthru
      _
    %p204 = scmp.lt.s32.totalorder %s13, 2
    // Predicated region
    $region25: #{up_forward.3} parent=5 // pred_check
      %p205 = pneg %p204
    $region26: #{up_forward.3} parent=5 // pred_check_branch
      %207 = sbr.rel (%p205) target = $region28
    $region27: #{up_forward.3} parent=5 // pred_region
      // Predicated region
      $region29: #{up_forward.3} parent=27 // pred_check
        %p208 = pneg %p33
      $region30: #{up_forward.3} parent=27 // pred_check_branch
        %210 = sbr.rel (%p208) target = $region32
      $region31: #{up_forward.3} parent=27 // pred_region
        %p211 = scmp.lt.s32.totalorder %s13, 1
        %s212 = scalar_select %p211, %s13, 1
        %s213 = smul.addr %s212, 2
        %s214 = smul.addr %s213, 4
        %s215 = scalar_lea.vmem %s0, %s214
      $region32: #{up_forward.3} parent=27 // pred_fallthru
        _
      // Predicated region
      $region33: #{up_forward.3} parent=27 // pred_check
        %p216 = pneg %p59
      $region34: #{up_forward.3} parent=27 // pred_check_branch
        %218 = sbr.rel (%p216) target = $region36
      $region35: #{up_forward.3} parent=27 // pred_region
        %p219 = scmp.lt.s32.totalorder %s13, 1
        %s220 = scalar_select %p219, %s13, 1
        %s221 = smul.addr %s220, 2
        %s222 = smul.addr %s221, 4
        %s223 = scalar_lea.vmem %s1, %s222
      $region36: #{up_forward.3} parent=27 // pred_fallthru
        _
    $region28: #{up_forward.3} parent=5 // pred_fallthru
      _
    %p224 = scmp.le.s32.totalorder 1, %s13
    %p225 = scmp.lt.s32.totalorder %s13, 3
    %p226 = pnand %p224, %p225
    %p227 = pneg %p226
    // Predicated region
    $region37: #{up_forward.3} parent=5 // pred_check
      _
    $region38: #{up_forward.3} parent=5 // pred_check_branch
      %229 = sbr.rel (%p226) target = $region40
    $region39: #{up_forward.3} parent=5 // pred_region
      %s230 = ssub.s32 %s13, 1
      %p231 = scmp.lt.s32.totalorder %s18, 1
      %s232 = scalar_select %p231, %s18, 1
      %s233 = smul.addr %s232, 2
      %s234 = smul.addr %s233, 4
      %s235 = scalar_lea.vmem %s0, %s234
      %p236 = pneg %p39
      %p237 = pneg %p36
      %p238 = scmp.lt.s32.totalorder %s18, 1
      %s239 = scalar_select %p238, %s18, 1
      %s240 = smul.addr %s239, 2
      %s241 = smul.addr %s240, 4
      %s242 = scalar_lea.vmem %s1, %s241
      %p243 = pneg %p65
      %p244 = pneg %p62
      %p245 = pneg %p86
      %p246 = pneg %p83
      %p247 = pneg %p107
      %p248 = pneg %p104
      %p249 = pneg %p128
      %p250 = pneg %p125
      %p251 = pneg %p154
      %p252 = pneg %p151
      %p253 = scmp.lt.s32.totalorder %s18, 1
      %s254 = scalar_select %p253, %s18, 1
      %s255 = smul.addr %s254, 2
      %s256 = smul.addr %s255, 2
      %s257 = scalar_lea.vmem %s5, %s256
      %p258 = pneg %p180
      %p259 = pneg %p177
      %p260 = scmp.lt.s32.totalorder %s18, 1
      %s261 = scalar_select %p260, %s18, 1
      %s262 = smul.addr %s261, 4
      %s263 = scalar_lea.vmem %s6, %s262
      %p264 = scmp.lt.s32.totalorder %s18, 1
      %s265 = scalar_select %p264, %s18, 1
      %s266 = smul.addr %s265, 2
      %s267 = smul.addr %s266, 4
      %s268 = scalar_lea.vmem %s0, %s267
      %p269 = scmp.lt.s32.totalorder %s18, 1
      %s270 = scalar_select %p269, %s18, 1
      %s271 = smul.addr %s270, 2
      %s272 = smul.addr %s271, 4
      %s273 = scalar_lea.vmem %s1, %s272
      %p274 = scmp.lt.s32.totalorder %s18, 1
      %s275 = scalar_select %p274, %s18, 1
      %s276 = smul.addr %s275, 2
      %s277 = smul.addr %s276, 2
      %s278 = scalar_lea.vmem %s5, %s277
      %p279 = scmp.lt.s32.totalorder %s18, 1
      %s280 = scalar_select %p279, %s18, 1
      %s281 = smul.addr %s280, 4
      %s282 = scalar_lea.vmem %s6, %s281
      %v284 = vld [vmem:[%s2] sm:$0x3]
      %v285 = vld [vmem:[%s268] sm:$0xff]
      %v287 = vcombine.high %v285, %v285
      %v289 = vpack.c.bf16 %v285, %v285
      %v290 = vpack.c.bf16 %v287, %v287
      %v293 = vunpack.c.l.s4 1966171168
      %v294 = vunpack.c.0.s8 %v293
      %v295 = vlaneseq
      %v296 = vshrl.u32 %v295, 7
      %v297 = vsub.s32 %v294, %v296
      %v298 = vrot.slane %v284, %v297
      %v299 = vcombine.high %v298, %v298
      %v301 = vunpack.c.l.s4 1966171168
      %v302 = vunpack.c.0.s8 %v301
      %v303 = vlaneseq
      %v304 = vshrl.u32 %v303, 7
      %v305 = vsub.s32 %v302, %v304
      %v306 = vrot.slane %v298, %v305
      %v308 = vunpack.c.l.s4 1966171168
      %v309 = vunpack.c.0.s8 %v308
      %v310 = vlaneseq
      %v311 = vshrl.u32 %v310, 7
      %v312 = vsub.s32 %v309, %v311
      %v313 = vrot.slane %v299, %v312
      %v315 = vpack.i.b16 %v306, %v306
      %v317 = vlaneseq
      %v318 = vshrl.u32 %v317, 7
      %v319 = vsub.s32 0, %v318
      %v320 = vrot.slane %v315, %v319
      %v322 = vpack.i.b16 %v313, %v313
      %v324 = vlaneseq
      %v325 = vshrl.u32 %v324, 7
      %v326 = vsub.s32 0, %v325
      %v327 = vrot.slane %v322, %v326
      %v328 = vmul.bf16 %v289, %v320
      %v329 = vmul.bf16 %v290, %v327
      %v330 = vshrl.u32 %v306, 16
      %v331 = vpack.i.b16 %v330, %v330
      %v333 = vlaneseq
      %v334 = vshrl.u32 %v333, 7
      %v335 = vsub.s32 0, %v334
      %v336 = vrot.slane %v331, %v335
      %v337 = vshrl.u32 %v313, 16
      %v338 = vpack.i.b16 %v337, %v337
      %v340 = vlaneseq
      %v341 = vshrl.u32 %v340, 7
      %v342 = vsub.s32 0, %v341
      %v343 = vrot.slane %v338, %v342
      %v344 = vmul.bf16 %v289, %v336
      %v345 = vmul.bf16 %v290, %v343
      %348 = vrot.lane.b32.xlu0 %v328, 17
      %v349 = vpop.permute.xlu0 %348
      %350 = vrot.lane.b32.xlu0 %v329, 17
      %v351 = vpop.permute.xlu0 %350
      %vm352 = vcmask 138240
      %v353 = vsel %vm352, %v349, %v351
      %vm354 = vcmask 138240
      %v357 = vsel %vm354, 0, %v349
      %v358 = vld [vmem:[%s3] sm:$0x3]
      %361 = vrot.lane.b32.xlu0 %v289, 16
      %v362 = vpop.permute.xlu0 %361
      %363 = vrot.lane.b32.xlu0 %v290, 16
      %v364 = vpop.permute.xlu0 %363
      %vm365 = vcmask 130048
      %v366 = vsel %vm365, %v362, %v364
      %vm367 = vcmask 130048
      %v369 = vsel %vm367, 0, %v362
      %s370 = scalar_lea.vmem %s3, 2
      %v371 = vld [vmem:[%s370] sm:$0x3]
      %vm372 = vcmask 31744
      %v374 = vsel %vm372, %v371, 0
      %vm376 = vcmask 1041408
      %v377 = vsel %vm376, %v369, 0
      %v380 = vsel %vm376, %v366, 0
      %382 = vmatprep.subr.bf16.mxu0 0
      %383 = vmatpush1.bf16.msra.mxu0 0
      %384 = vmatprep.subr.bf16.mxu0 0
      %385 = vmatpush1.bf16.msra.mxu0 0
      %386 = vmatprep.subr.bf16.mxu0 0
      %387 = vmatpush1.bf16.msra.mxu0 0
      %388 = vmatprep.subr.bf16.mxu0 0
      %389 = vmatpush1.bf16.msra.mxu0 0
      %390 = vmatprep.subr.bf16.mxu0 0
      %391 = vmatpush1.bf16.msra.mxu0 0
      %392 = vmatprep.subr.bf16.mxu0 0
      %393 = vmatpush1.bf16.msra.mxu0 0
      %394 = vmatprep.subr.bf16.mxu0 0
      %395 = vmatpush1.bf16.msra.mxu0 0
      %396 = vmatprep.subr.bf16.mxu0 %v380
      %397 = vmatpush1.bf16.msra.mxu0 %v377
      %398 = vmatprep.subr.bf16.mxu0 0
      %399 = vmatpush2.bf16.msra.mxu0 0
      %400 = vmatprep.subr.bf16.mxu0 0
      %401 = vmatpush2.bf16.msra.mxu0 0
      %402 = vmatprep.subr.bf16.mxu0 0
      %403 = vmatpush2.bf16.msra.mxu0 0
      %404 = vmatprep.subr.bf16.mxu0 0
      %405 = vmatpush2.bf16.msra.mxu0 0
      %406 = vmatprep.subr.bf16.mxu0 0
      %407 = vmatpush2.bf16.msra.mxu0 0
      %408 = vmatprep.subr.bf16.mxu0 0
      %409 = vmatpush2.bf16.msra.mxu0 0
      %410 = vmatprep.subr.bf16.mxu0 0
      %411 = vmatpush2.bf16.msra.mxu0 0
      %412 = vmatprep.subr.bf16.mxu0 0
      %413 = vmatpush2.bf16.msra.mxu0 0
      %414 = vmatprep.mubr.bf16.mxu0 0
      %415 = vmatmul.mubr.bf16.gmra.mxu0 %v374
      %v416 = vpop.f32.mrf.mxu0
      %v417 = vadd.f32 0.0, %v416
      %v418 = vpop.f32.mrf.mxu0
      %v419 = vadd.f32 0.0, %v418
      %v420 = vpop.f32.mrf.mxu0
      %v421 = vpop.f32.mrf.mxu0
      %422 = vdwg.mxu0
      %v424 = vsel %vm372, %v358, 0
      %v426 = vsel %vm376, %v357, 0
      %v429 = vsel %vm376, %v353, 0
      %431 = vmatprep.subr.bf16.mxu0 0
      %432 = vmatpush1.bf16.msra.mxu0 0
      %433 = vmatprep.subr.bf16.mxu0 0
      %434 = vmatpush1.bf16.msra.mxu0 0
      %435 = vmatprep.subr.bf16.mxu0 0
      %436 = vmatpush1.bf16.msra.mxu0 0
      %437 = vmatprep.subr.bf16.mxu0 0
      %438 = vmatpush1.bf16.msra.mxu0 0
      %439 = vmatprep.subr.bf16.mxu0 0
      %440 = vmatpush1.bf16.msra.mxu0 0
      %441 = vmatprep.subr.bf16.mxu0 0
      %442 = vmatpush1.bf16.msra.mxu0 0
      %443 = vmatprep.subr.bf16.mxu0 0
      %444 = vmatpush1.bf16.msra.mxu0 0
      %445 = vmatprep.subr.bf16.mxu0 %v429
      %446 = vmatpush1.bf16.msra.mxu0 %v426
      %447 = vmatprep.subr.bf16.mxu0 0
      %448 = vmatpush2.bf16.msra.mxu0 0
      %449 = vmatprep.subr.bf16.mxu0 0
      %450 = vmatpush2.bf16.msra.mxu0 0
      %451 = vmatprep.subr.bf16.mxu0 0
      %452 = vmatpush2.bf16.msra.mxu0 0
      %453 = vmatprep.subr.bf16.mxu0 0
      %454 = vmatpush2.bf16.msra.mxu0 0
      %455 = vmatprep.subr.bf16.mxu0 0
      %456 = vmatpush2.bf16.msra.mxu0 0
      %457 = vmatprep.subr.bf16.mxu0 0
      %458 = vmatpush2.bf16.msra.mxu0 0
      %459 = vmatprep.subr.bf16.mxu0 0
      %460 = vmatpush2.bf16.msra.mxu0 0
      %461 = vmatprep.subr.bf16.mxu0 0
      %462 = vmatpush2.bf16.msra.mxu0 0
      %463 = vmatprep.mubr.bf16.mxu0 0
      %464 = vmatmul.mubr.bf16.gmra.mxu0 %v424
      %v465 = vpop.f32.mrf.mxu0
      %v466 = vadd.f32 %v417, %v465
      %v467 = vpop.f32.mrf.mxu0
      %v468 = vadd.f32 %v419, %v467
      %v469 = vpop.f32.mrf.mxu0
      %v470 = vpop.f32.mrf.mxu0
      %471 = vdwg.mxu0
      %474 = vrot.lane.b32.xlu0 %v344, 15
      %v475 = vpop.permute.xlu0 %474
      %476 = vrot.lane.b32.xlu0 %v345, 15
      %v477 = vpop.permute.xlu0 %476
      %vm478 = vcmask 121856
      %v479 = vsel %vm478, %v475, %v477
      %vm480 = vcmask 121856
      %v482 = vsel %vm480, 0, %v475
      %s483 = scalar_lea.vmem %s3, 4
      %v484 = vld [vmem:[%s483] sm:$0x3]
      %v486 = vsel %vm372, %v484, 0
      %v488 = vsel %vm376, %v482, 0
      %v491 = vsel %vm376, %v479, 0
      %493 = vmatprep.subr.bf16.mxu0 0
      %494 = vmatpush1.bf16.msra.mxu0 0
      %495 = vmatprep.subr.bf16.mxu0 0
      %496 = vmatpush1.bf16.msra.mxu0 0
      %497 = vmatprep.subr.bf16.mxu0 0
      %498 = vmatpush1.bf16.msra.mxu0 0
      %499 = vmatprep.subr.bf16.mxu0 0
      %500 = vmatpush1.bf16.msra.mxu0 0
      %501 = vmatprep.subr.bf16.mxu0 0
      %502 = vmatpush1.bf16.msra.mxu0 0
      %503 = vmatprep.subr.bf16.mxu0 0
      %504 = vmatpush1.bf16.msra.mxu0 0
      %505 = vmatprep.subr.bf16.mxu0 0
      %506 = vmatpush1.bf16.msra.mxu0 0
      %507 = vmatprep.subr.bf16.mxu0 %v491
      %508 = vmatpush1.bf16.msra.mxu0 %v488
      %509 = vmatprep.subr.bf16.mxu0 0
      %510 = vmatpush2.bf16.msra.mxu0 0
      %511 = vmatprep.subr.bf16.mxu0 0
      %512 = vmatpush2.bf16.msra.mxu0 0
      %513 = vmatprep.subr.bf16.mxu0 0
      %514 = vmatpush2.bf16.msra.mxu0 0
      %515 = vmatprep.subr.bf16.mxu0 0
      %516 = vmatpush2.bf16.msra.mxu0 0
      %517 = vmatprep.subr.bf16.mxu0 0
      %518 = vmatpush2.bf16.msra.mxu0 0
      %519 = vmatprep.subr.bf16.mxu0 0
      %520 = vmatpush2.bf16.msra.mxu0 0
      %521 = vmatprep.subr.bf16.mxu0 0
      %522 = vmatpush2.bf16.msra.mxu0 0
      %523 = vmatprep.subr.bf16.mxu0 0
      %524 = vmatpush2.bf16.msra.mxu0 0
      %525 = vmatprep.mubr.bf16.mxu0 0
      %526 = vmatmul.mubr.bf16.gmra.mxu0 %v486
      %v527 = vpop.f32.mrf.mxu0
      %v528 = vadd.f32 0.0, %v527
      %v529 = vpop.f32.mrf.mxu0
      %v530 = vadd.f32 0.0, %v529
      %v531 = vpop.f32.mrf.mxu0
      %v532 = vpop.f32.mrf.mxu0
      %533 = vdwg.mxu0
      %v534 = vadd.f32 %v466, %v528
      %v535 = vadd.f32 %v468, %v530
      %536 = vrot.lane.b32.xlu0 %v328, 1
      %v537 = vpop.permute.xlu0 %536
      %538 = vrot.lane.b32.xlu0 %v329, 1
      %v539 = vpop.permute.xlu0 %538
      %vm540 = vcmask 7168
      %v541 = vsel %vm540, %v537, %v539
      %vm542 = vcmask 7168
      %v544 = vsel %vm542, 0, %v537
      %s545 = scalar_lea.vmem %s3, 6
      %v546 = vld [vmem:[%s545] sm:$0x3]
      %v548 = vsel %vm372, %v546, 0
      %v550 = vsel %vm376, %v544, 0
      %v553 = vsel %vm376, %v541, 0
      %555 = vmatprep.subr.bf16.mxu0 0
      %556 = vmatpush1.bf16.msra.mxu0 0
      %557 = vmatprep.subr.bf16.mxu0 0
      %558 = vmatpush1.bf16.msra.mxu0 0
      %559 = vmatprep.subr.bf16.mxu0 0
      %560 = vmatpush1.bf16.msra.mxu0 0
      %561 = vmatprep.subr.bf16.mxu0 0
      %562 = vmatpush1.bf16.msra.mxu0 0
      %563 = vmatprep.subr.bf16.mxu0 0
      %564 = vmatpush1.bf16.msra.mxu0 0
      %565 = vmatprep.subr.bf16.mxu0 0
      %566 = vmatpush1.bf16.msra.mxu0 0
      %567 = vmatprep.subr.bf16.mxu0 0
      %568 = vmatpush1.bf16.msra.mxu0 0
      %569 = vmatprep.subr.bf16.mxu0 %v553
      %570 = vmatpush1.bf16.msra.mxu0 %v550
      %571 = vmatprep.subr.bf16.mxu0 0
      %572 = vmatpush2.bf16.msra.mxu0 0
      %573 = vmatprep.subr.bf16.mxu0 0
      %574 = vmatpush2.bf16.msra.mxu0 0
      %575 = vmatprep.subr.bf16.mxu0 0
      %576 = vmatpush2.bf16.msra.mxu0 0
      %577 = vmatprep.subr.bf16.mxu0 0
      %578 = vmatpush2.bf16.msra.mxu0 0
      %579 = vmatprep.subr.bf16.mxu0 0
      %580 = vmatpush2.bf16.msra.mxu0 0
      %581 = vmatprep.subr.bf16.mxu0 0
      %582 = vmatpush2.bf16.msra.mxu0 0
      %583 = vmatprep.subr.bf16.mxu0 0
      %584 = vmatpush2.bf16.msra.mxu0 0
      %585 = vmatprep.subr.bf16.mxu0 0
      %586 = vmatpush2.bf16.msra.mxu0 0
      %587 = vmatprep.mubr.bf16.mxu0 0
      %588 = vmatmul.mubr.bf16.gmra.mxu0 %v548
      %v589 = vpop.f32.mrf.mxu0
      %v590 = vadd.f32 0.0, %v589
      %v591 = vpop.f32.mrf.mxu0
      %v592 = vadd.f32 0.0, %v591
      %v593 = vpop.f32.mrf.mxu0
      %v594 = vpop.f32.mrf.mxu0
      %595 = vdwg.mxu0
      %v596 = vadd.f32 %v534, %v590
      %v597 = vadd.f32 %v535, %v592
      %s598 = scalar_lea.vmem %s3, 8
      %v599 = vld [vmem:[%s598] sm:$0x3]
      %v601 = vsel %vm372, %v599, 0
      %v604 = vsel %vm376, %v289, 0
      %v607 = vsel %vm376, %v290, 0
      %609 = vmatprep.subr.bf16.mxu0 0
      %610 = vmatpush1.bf16.msra.mxu0 0
      %611 = vmatprep.subr.bf16.mxu0 0
      %612 = vmatpush1.bf16.msra.mxu0 0
      %613 = vmatprep.subr.bf16.mxu0 0
      %614 = vmatpush1.bf16.msra.mxu0 0
      %615 = vmatprep.subr.bf16.mxu0 0
      %616 = vmatpush1.bf16.msra.mxu0 0
      %617 = vmatprep.subr.bf16.mxu0 0
      %618 = vmatpush1.bf16.msra.mxu0 0
      %619 = vmatprep.subr.bf16.mxu0 0
      %620 = vmatpush1.bf16.msra.mxu0 0
      %621 = vmatprep.subr.bf16.mxu0 0
      %622 = vmatpush1.bf16.msra.mxu0 0
      %623 = vmatprep.subr.bf16.mxu0 %v607
      %624 = vmatpush1.bf16.msra.mxu0 %v604
      %625 = vmatprep.subr.bf16.mxu0 0
      %626 = vmatpush2.bf16.msra.mxu0 0
      %627 = vmatprep.subr.bf16.mxu0 0
      %628 = vmatpush2.bf16.msra.mxu0 0
      %629 = vmatprep.subr.bf16.mxu0 0
      %630 = vmatpush2.bf16.msra.mxu0 0
      %631 = vmatprep.subr.bf16.mxu0 0
      %632 = vmatpush2.bf16.msra.mxu0 0
      %633 = vmatprep.subr.bf16.mxu0 0
      %634 = vmatpush2.bf16.msra.mxu0 0
      %635 = vmatprep.subr.bf16.mxu0 0
      %636 = vmatpush2.bf16.msra.mxu0 0
      %637 = vmatprep.subr.bf16.mxu0 0
      %638 = vmatpush2.bf16.msra.mxu0 0
      %639 = vmatprep.subr.bf16.mxu0 0
      %640 = vmatpush2.bf16.msra.mxu0 0
      %641 = vmatprep.mubr.bf16.mxu0 0
      %642 = vmatmul.mubr.bf16.gmra.mxu0 %v601
      %v643 = vpop.f32.mrf.mxu0
      %v644 = vadd.f32 0.0, %v643
      %v645 = vpop.f32.mrf.mxu0
      %v646 = vadd.f32 0.0, %v645
      %v647 = vpop.f32.mrf.mxu0
      %v648 = vpop.f32.mrf.mxu0
      %649 = vdwg.mxu0
      %v650 = vadd.f32 %v596, %v644
      %v651 = vadd.f32 %v597, %v646
      %652 = vrot.lane.b32.xlu0 %v344, 127
      %v653 = vpop.permute.xlu0 %652
      %654 = vrot.lane.b32.xlu0 %v345, 127
      %v655 = vpop.permute.xlu0 %654
      %vm656 = vcmask 1039360
      %v657 = vsel %vm656, %v653, %v655
      %vm658 = vcmask 1039360
      %v660 = vsel %vm658, %v655, 0
      %s661 = scalar_lea.vmem %s3, 10
      %v662 = vld [vmem:[%s661] sm:$0x3]
      %v664 = vsel %vm372, %v662, 0
      %v667 = vsel %vm376, %v657, 0
      %v669 = vsel %vm376, %v660, 0
      %671 = vmatprep.subr.bf16.mxu0 0
      %672 = vmatpush1.bf16.msra.mxu0 0
      %673 = vmatprep.subr.bf16.mxu0 0
      %674 = vmatpush1.bf16.msra.mxu0 0
      %675 = vmatprep.subr.bf16.mxu0 0
      %676 = vmatpush1.bf16.msra.mxu0 0
      %677 = vmatprep.subr.bf16.mxu0 0
      %678 = vmatpush1.bf16.msra.mxu0 0
      %679 = vmatprep.subr.bf16.mxu0 0
      %680 = vmatpush1.bf16.msra.mxu0 0
      %681 = vmatprep.subr.bf16.mxu0 0
      %682 = vmatpush1.bf16.msra.mxu0 0
      %683 = vmatprep.subr.bf16.mxu0 0
      %684 = vmatpush1.bf16.msra.mxu0 0
      %685 = vmatprep.subr.bf16.mxu0 %v669
      %686 = vmatpush1.bf16.msra.mxu0 %v667
      %687 = vmatprep.subr.bf16.mxu0 0
      %688 = vmatpush2.bf16.msra.mxu0 0
      %689 = vmatprep.subr.bf16.mxu0 0
      %690 = vmatpush2.bf16.msra.mxu0 0
      %691 = vmatprep.subr.bf16.mxu0 0
      %692 = vmatpush2.bf16.msra.mxu0 0
      %693 = vmatprep.subr.bf16.mxu0 0
      %694 = vmatpush2.bf16.msra.mxu0 0
      %695 = vmatprep.subr.bf16.mxu0 0
      %696 = vmatpush2.bf16.msra.mxu0 0
      %697 = vmatprep.subr.bf16.mxu0 0
      %698 = vmatpush2.bf16.msra.mxu0 0
      %699 = vmatprep.subr.bf16.mxu0 0
      %700 = vmatpush2.bf16.msra.mxu0 0
      %701 = vmatprep.subr.bf16.mxu0 0
      %702 = vmatpush2.bf16.msra.mxu0 0
      %703 = vmatprep.mubr.bf16.mxu0 0
      %704 = vmatmul.mubr.bf16.gmra.mxu0 %v664
      %v705 = vpop.f32.mrf.mxu0
      %v706 = vadd.f32 0.0, %v705
      %v707 = vpop.f32.mrf.mxu0
      %v708 = vadd.f32 0.0, %v707
      %v709 = vpop.f32.mrf.mxu0
      %v710 = vpop.f32.mrf.mxu0
      %711 = vdwg.mxu0
      %v712 = vadd.f32 %v650, %v706
      %v713 = vadd.f32 %v651, %v708
      %714 = vrot.lane.b32.xlu0 %v328, 113
      %v715 = vpop.permute.xlu0 %714
      %716 = vrot.lane.b32.xlu0 %v329, 113
      %v717 = vpop.permute.xlu0 %716
      %vm718 = vcmask 924672
      %v719 = vsel %vm718, %v715, %v717
      %vm720 = vcmask 924672
      %v722 = vsel %vm720, %v717, 0
      %s723 = scalar_lea.vmem %s3, 12
      %v724 = vld [vmem:[%s723] sm:$0x3]
      %v726 = vsel %vm372, %v724, 0
      %v729 = vsel %vm376, %v719, 0
      %v731 = vsel %vm376, %v722, 0
      %733 = vmatprep.subr.bf16.mxu0 0
      %734 = vmatpush1.bf16.msra.mxu0 0
      %735 = vmatprep.subr.bf16.mxu0 0
      %736 = vmatpush1.bf16.msra.mxu0 0
      %737 = vmatprep.subr.bf16.mxu0 0
      %738 = vmatpush1.bf16.msra.mxu0 0
      %739 = vmatprep.subr.bf16.mxu0 0
      %740 = vmatpush1.bf16.msra.mxu0 0
      %741 = vmatprep.subr.bf16.mxu0 0
      %742 = vmatpush1.bf16.msra.mxu0 0
      %743 = vmatprep.subr.bf16.mxu0 0
      %744 = vmatpush1.bf16.msra.mxu0 0
      %745 = vmatprep.subr.bf16.mxu0 0
      %746 = vmatpush1.bf16.msra.mxu0 0
      %747 = vmatprep.subr.bf16.mxu0 %v731
      %748 = vmatpush1.bf16.msra.mxu0 %v729
      %749 = vmatprep.subr.bf16.mxu0 0
      %750 = vmatpush2.bf16.msra.mxu0 0
      %751 = vmatprep.subr.bf16.mxu0 0
      %752 = vmatpush2.bf16.msra.mxu0 0
      %753 = vmatprep.subr.bf16.mxu0 0
      %754 = vmatpush2.bf16.msra.mxu0 0
      %755 = vmatprep.subr.bf16.mxu0 0
      %756 = vmatpush2.bf16.msra.mxu0 0
      %757 = vmatprep.subr.bf16.mxu0 0
      %758 = vmatpush2.bf16.msra.mxu0 0
      %759 = vmatprep.subr.bf16.mxu0 0
      %760 = vmatpush2.bf16.msra.mxu0 0
      %761 = vmatprep.subr.bf16.mxu0 0
      %762 = vmatpush2.bf16.msra.mxu0 0
      %763 = vmatprep.subr.bf16.mxu0 0
      %764 = vmatpush2.bf16.msra.mxu0 0
      %765 = vmatprep.mubr.bf16.mxu0 0
      %766 = vmatmul.mubr.bf16.gmra.mxu0 %v726
      %v767 = vpop.f32.mrf.mxu0
      %v768 = vadd.f32 0.0, %v767
      %v769 = vpop.f32.mrf.mxu0
      %v770 = vadd.f32 0.0, %v769
      %v771 = vpop.f32.mrf.mxu0
      %v772 = vpop.f32.mrf.mxu0
      %773 = vdwg.mxu0
      %v774 = vadd.f32 %v712, %v768
      %v775 = vadd.f32 %v713, %v770
      %776 = vrot.lane.b32.xlu0 %v289, 112
      %v777 = vpop.permute.xlu0 %776
      %778 = vrot.lane.b32.xlu0 %v290, 112
      %v779 = vpop.permute.xlu0 %778
      %vm780 = vcmask 916480
      %v781 = vsel %vm780, %v777, %v779
      %vm782 = vcmask 916480
      %v784 = vsel %vm782, %v779, 0
      %s785 = scalar_lea.vmem %s3, 14
      %v786 = vld [vmem:[%s785] sm:$0x3]
      %v788 = vsel %vm372, %v786, 0
      %v791 = vsel %vm376, %v781, 0
      %v793 = vsel %vm376, %v784, 0
      %795 = vmatprep.subr.bf16.mxu0 0
      %796 = vmatpush1.bf16.msra.mxu0 0
      %797 = vmatprep.subr.bf16.mxu0 0
      %798 = vmatpush1.bf16.msra.mxu0 0
      %799 = vmatprep.subr.bf16.mxu0 0
      %800 = vmatpush1.bf16.msra.mxu0 0
      %801 = vmatprep.subr.bf16.mxu0 0
      %802 = vmatpush1.bf16.msra.mxu0 0
      %803 = vmatprep.subr.bf16.mxu0 0
      %804 = vmatpush1.bf16.msra.mxu0 0
      %805 = vmatprep.subr.bf16.mxu0 0
      %806 = vmatpush1.bf16.msra.mxu0 0
      %807 = vmatprep.subr.bf16.mxu0 0
      %808 = vmatpush1.bf16.msra.mxu0 0
      %809 = vmatprep.subr.bf16.mxu0 %v793
      %810 = vmatpush1.bf16.msra.mxu0 %v791
      %811 = vmatprep.subr.bf16.mxu0 0
      %812 = vmatpush2.bf16.msra.mxu0 0
      %813 = vmatprep.subr.bf16.mxu0 0
      %814 = vmatpush2.bf16.msra.mxu0 0
      %815 = vmatprep.subr.bf16.mxu0 0
      %816 = vmatpush2.bf16.msra.mxu0 0
      %817 = vmatprep.subr.bf16.mxu0 0
      %818 = vmatpush2.bf16.msra.mxu0 0
      %819 = vmatprep.subr.bf16.mxu0 0
      %820 = vmatpush2.bf16.msra.mxu0 0
      %821 = vmatprep.subr.bf16.mxu0 0
      %822 = vmatpush2.bf16.msra.mxu0 0
      %823 = vmatprep.subr.bf16.mxu0 0
      %824 = vmatpush2.bf16.msra.mxu0 0
      %825 = vmatprep.subr.bf16.mxu0 0
      %826 = vmatpush2.bf16.msra.mxu0 0
      %827 = vmatprep.mubr.bf16.mxu0 0
      %828 = vmatmul.mubr.bf16.gmra.mxu0 %v788
      %v829 = vpop.f32.mrf.mxu0
      %v830 = vadd.f32 0.0, %v829
      %v831 = vpop.f32.mrf.mxu0
      %v832 = vadd.f32 0.0, %v831
      %v833 = vpop.f32.mrf.mxu0
      %v834 = vpop.f32.mrf.mxu0
      %835 = vdwg.mxu0
      %v836 = vadd.f32 %v774, %v830
      %v837 = vadd.f32 %v775, %v832
      %838 = vrot.lane.b32.xlu0 %v344, 111
      %v839 = vpop.permute.xlu0 %838
      %840 = vrot.lane.b32.xlu0 %v345, 111
      %v841 = vpop.permute.xlu0 %840
      %vm842 = vcmask 908288
      %v843 = vsel %vm842, %v839, %v841
      %vm844 = vcmask 908288
      %v846 = vsel %vm844, %v841, 0
      %s847 = scalar_lea.vmem %s3, 16
      %v848 = vld [vmem:[%s847] sm:$0x3]
      %v850 = vsel %vm372, %v848, 0
      %v853 = vsel %vm376, %v843, 0
      %v855 = vsel %vm376, %v846, 0
      %857 = vmatprep.subr.bf16.mxu0 0
      %858 = vmatpush1.bf16.msra.mxu0 0
      %859 = vmatprep.subr.bf16.mxu0 0
      %860 = vmatpush1.bf16.msra.mxu0 0
      %861 = vmatprep.subr.bf16.mxu0 0
      %862 = vmatpush1.bf16.msra.mxu0 0
      %863 = vmatprep.subr.bf16.mxu0 0
      %864 = vmatpush1.bf16.msra.mxu0 0
      %865 = vmatprep.subr.bf16.mxu0 0
      %866 = vmatpush1.bf16.msra.mxu0 0
      %867 = vmatprep.subr.bf16.mxu0 0
      %868 = vmatpush1.bf16.msra.mxu0 0
      %869 = vmatprep.subr.bf16.mxu0 0
      %870 = vmatpush1.bf16.msra.mxu0 0
      %871 = vmatprep.subr.bf16.mxu0 %v855
      %872 = vmatpush1.bf16.msra.mxu0 %v853
      %873 = vmatprep.subr.bf16.mxu0 0
      %874 = vmatpush2.bf16.msra.mxu0 0
      %875 = vmatprep.subr.bf16.mxu0 0
      %876 = vmatpush2.bf16.msra.mxu0 0
      %877 = vmatprep.subr.bf16.mxu0 0
      %878 = vmatpush2.bf16.msra.mxu0 0
      %879 = vmatprep.subr.bf16.mxu0 0
      %880 = vmatpush2.bf16.msra.mxu0 0
      %881 = vmatprep.subr.bf16.mxu0 0
      %882 = vmatpush2.bf16.msra.mxu0 0
      %883 = vmatprep.subr.bf16.mxu0 0
      %884 = vmatpush2.bf16.msra.mxu0 0
      %885 = vmatprep.subr.bf16.mxu0 0
      %886 = vmatpush2.bf16.msra.mxu0 0
      %887 = vmatprep.subr.bf16.mxu0 0
      %888 = vmatpush2.bf16.msra.mxu0 0
      %889 = vmatprep.mubr.bf16.mxu0 0
      %890 = vmatmul.mubr.bf16.gmra.mxu0 %v850
      %v891 = vpop.f32.mrf.mxu0
      %v892 = vadd.f32 0.0, %v891
      %v893 = vpop.f32.mrf.mxu0
      %v894 = vadd.f32 0.0, %v893
      %v895 = vpop.f32.mrf.mxu0
      %v896 = vpop.f32.mrf.mxu0
      %897 = vdwg.mxu0
      %v898 = vadd.f32 %v836, %v892
      %v899 = vadd.f32 %v837, %v894
      %v900 = vld [vmem:[%s273] sm:$0xff]
      %v902 = vcombine.high %v900, %v900
      %v904 = vpack.c.bf16 %v900, %v900
      %v905 = vpack.c.bf16 %v902, %v902
      %v906 = vmul.bf16 %v904, %v320
      %v907 = vmul.bf16 %v905, %v327
      %v908 = vmul.bf16 %v904, %v336
      %v909 = vmul.bf16 %v905, %v343
      %912 = vrot.lane.b32.xlu0 %v906, 17
      %v913 = vpop.permute.xlu0 %912
      %914 = vrot.lane.b32.xlu0 %v907, 17
      %v915 = vpop.permute.xlu0 %914
      %v916 = vsel %vm352, %v913, %v915
      %v918 = vsel %vm354, 0, %v913
      %v919 = vld [vmem:[%s4] sm:$0x3]
      %v921 = vsel %vm372, %v919, 0
      %v923 = vsel %vm376, %v918, 0
      %v926 = vsel %vm376, %v916, 0
      %928 = vmatprep.subr.bf16.mxu0 0
      %929 = vmatpush1.bf16.msra.mxu0 0
      %930 = vmatprep.subr.bf16.mxu0 0
      %931 = vmatpush1.bf16.msra.mxu0 0
      %932 = vmatprep.subr.bf16.mxu0 0
      %933 = vmatpush1.bf16.msra.mxu0 0
      %934 = vmatprep.subr.bf16.mxu0 0
      %935 = vmatpush1.bf16.msra.mxu0 0
      %936 = vmatprep.subr.bf16.mxu0 0
      %937 = vmatpush1.bf16.msra.mxu0 0
      %938 = vmatprep.subr.bf16.mxu0 0
      %939 = vmatpush1.bf16.msra.mxu0 0
      %940 = vmatprep.subr.bf16.mxu0 0
      %941 = vmatpush1.bf16.msra.mxu0 0
      %942 = vmatprep.subr.bf16.mxu0 %v926
      %943 = vmatpush1.bf16.msra.mxu0 %v923
      %944 = vmatprep.subr.bf16.mxu0 0
      %945 = vmatpush2.bf16.msra.mxu0 0
      %946 = vmatprep.subr.bf16.mxu0 0
      %947 = vmatpush2.bf16.msra.mxu0 0
      %948 = vmatprep.subr.bf16.mxu0 0
      %949 = vmatpush2.bf16.msra.mxu0 0
      %950 = vmatprep.subr.bf16.mxu0 0
      %951 = vmatpush2.bf16.msra.mxu0 0
      %952 = vmatprep.subr.bf16.mxu0 0
      %953 = vmatpush2.bf16.msra.mxu0 0
      %954 = vmatprep.subr.bf16.mxu0 0
      %955 = vmatpush2.bf16.msra.mxu0 0
      %956 = vmatprep.subr.bf16.mxu0 0
      %957 = vmatpush2.bf16.msra.mxu0 0
      %958 = vmatprep.subr.bf16.mxu0 0
      %959 = vmatpush2.bf16.msra.mxu0 0
      %960 = vmatprep.mubr.bf16.mxu0 0
      %961 = vmatmul.mubr.bf16.gmra.mxu0 %v921
      %v962 = vpop.f32.mrf.mxu0
      %v963 = vadd.f32 0.0, %v962
      %v964 = vpop.f32.mrf.mxu0
      %v965 = vadd.f32 0.0, %v964
      %v966 = vpop.f32.mrf.mxu0
      %v967 = vpop.f32.mrf.mxu0
      %968 = vdwg.mxu0
      %v969 = vadd.f32 %v898, %v963
      %v970 = vadd.f32 %v899, %v965
      %973 = vrot.lane.b32.xlu0 %v904, 16
      %v974 = vpop.permute.xlu0 %973
      %975 = vrot.lane.b32.xlu0 %v905, 16
      %v976 = vpop.permute.xlu0 %975
      %v977 = vsel %vm365, %v974, %v976
      %v979 = vsel %vm367, 0, %v974
      %s980 = scalar_lea.vmem %s4, 2
      %v981 = vld [vmem:[%s980] sm:$0x3]
      %v983 = vsel %vm372, %v981, 0
      %v985 = vsel %vm376, %v979, 0
      %v988 = vsel %vm376, %v977, 0
      %990 = vmatprep.subr.bf16.mxu0 0
      %991 = vmatpush1.bf16.msra.mxu0 0
      %992 = vmatprep.subr.bf16.mxu0 0
      %993 = vmatpush1.bf16.msra.mxu0 0
      %994 = vmatprep.subr.bf16.mxu0 0
      %995 = vmatpush1.bf16.msra.mxu0 0
      %996 = vmatprep.subr.bf16.mxu0 0
      %997 = vmatpush1.bf16.msra.mxu0 0
      %998 = vmatprep.subr.bf16.mxu0 0
      %999 = vmatpush1.bf16.msra.mxu0 0
      %1000 = vmatprep.subr.bf16.mxu0 0
      %1001 = vmatpush1.bf16.msra.mxu0 0
      %1002 = vmatprep.subr.bf16.mxu0 0
      %1003 = vmatpush1.bf16.msra.mxu0 0
      %1004 = vmatprep.subr.bf16.mxu0 %v988
      %1005 = vmatpush1.bf16.msra.mxu0 %v985
      %1006 = vmatprep.subr.bf16.mxu0 0
      %1007 = vmatpush2.bf16.msra.mxu0 0
      %1008 = vmatprep.subr.bf16.mxu0 0
      %1009 = vmatpush2.bf16.msra.mxu0 0
      %1010 = vmatprep.subr.bf16.mxu0 0
      %1011 = vmatpush2.bf16.msra.mxu0 0
      %1012 = vmatprep.subr.bf16.mxu0 0
      %1013 = vmatpush2.bf16.msra.mxu0 0
      %1014 = vmatprep.subr.bf16.mxu0 0
      %1015 = vmatpush2.bf16.msra.mxu0 0
      %1016 = vmatprep.subr.bf16.mxu0 0
      %1017 = vmatpush2.bf16.msra.mxu0 0
      %1018 = vmatprep.subr.bf16.mxu0 0
      %1019 = vmatpush2.bf16.msra.mxu0 0
      %1020 = vmatprep.subr.bf16.mxu0 0
      %1021 = vmatpush2.bf16.msra.mxu0 0
      %1022 = vmatprep.mubr.bf16.mxu0 0
      %1023 = vmatmul.mubr.bf16.gmra.mxu0 %v983
      %v1024 = vpop.f32.mrf.mxu0
      %v1025 = vadd.f32 0.0, %v1024
      %v1026 = vpop.f32.mrf.mxu0
      %v1027 = vadd.f32 0.0, %v1026
      %v1028 = vpop.f32.mrf.mxu0
      %v1029 = vpop.f32.mrf.mxu0
      %1030 = vdwg.mxu0
      %v1031 = vadd.f32 %v969, %v1025
      %v1032 = vadd.f32 %v970, %v1027
      %1035 = vrot.lane.b32.xlu0 %v908, 15
      %v1036 = vpop.permute.xlu0 %1035
      %1037 = vrot.lane.b32.xlu0 %v909, 15
      %v1038 = vpop.permute.xlu0 %1037
      %v1039 = vsel %vm478, %v1036, %v1038
      %v1041 = vsel %vm480, 0, %v1036
      %s1042 = scalar_lea.vmem %s4, 4
      %v1043 = vld [vmem:[%s1042] sm:$0x3]
      %v1045 = vsel %vm372, %v1043, 0
      %v1047 = vsel %vm376, %v1041, 0
      %v1050 = vsel %vm376, %v1039, 0
      %1052 = vmatprep.subr.bf16.mxu0 0
      %1053 = vmatpush1.bf16.msra.mxu0 0
      %1054 = vmatprep.subr.bf16.mxu0 0
      %1055 = vmatpush1.bf16.msra.mxu0 0
      %1056 = vmatprep.subr.bf16.mxu0 0
      %1057 = vmatpush1.bf16.msra.mxu0 0
      %1058 = vmatprep.subr.bf16.mxu0 0
      %1059 = vmatpush1.bf16.msra.mxu0 0
      %1060 = vmatprep.subr.bf16.mxu0 0
      %1061 = vmatpush1.bf16.msra.mxu0 0
      %1062 = vmatprep.subr.bf16.mxu0 0
      %1063 = vmatpush1.bf16.msra.mxu0 0
      %1064 = vmatprep.subr.bf16.mxu0 0
      %1065 = vmatpush1.bf16.msra.mxu0 0
      %1066 = vmatprep.subr.bf16.mxu0 %v1050
      %1067 = vmatpush1.bf16.msra.mxu0 %v1047
      %1068 = vmatprep.subr.bf16.mxu0 0
      %1069 = vmatpush2.bf16.msra.mxu0 0
      %1070 = vmatprep.subr.bf16.mxu0 0
      %1071 = vmatpush2.bf16.msra.mxu0 0
      %1072 = vmatprep.subr.bf16.mxu0 0
      %1073 = vmatpush2.bf16.msra.mxu0 0
      %1074 = vmatprep.subr.bf16.mxu0 0
      %1075 = vmatpush2.bf16.msra.mxu0 0
      %1076 = vmatprep.subr.bf16.mxu0 0
      %1077 = vmatpush2.bf16.msra.mxu0 0
      %1078 = vmatprep.subr.bf16.mxu0 0
      %1079 = vmatpush2.bf16.msra.mxu0 0
      %1080 = vmatprep.subr.bf16.mxu0 0
      %1081 = vmatpush2.bf16.msra.mxu0 0
      %1082 = vmatprep.subr.bf16.mxu0 0
      %1083 = vmatpush2.bf16.msra.mxu0 0
      %1084 = vmatprep.mubr.bf16.mxu0 0
      %1085 = vmatmul.mubr.bf16.gmra.mxu0 %v1045
      %v1086 = vpop.f32.mrf.mxu0
      %v1087 = vadd.f32 0.0, %v1086
      %v1088 = vpop.f32.mrf.mxu0
      %v1089 = vadd.f32 0.0, %v1088
      %v1090 = vpop.f32.mrf.mxu0
      %v1091 = vpop.f32.mrf.mxu0
      %1092 = vdwg.mxu0
      %v1093 = vadd.f32 %v1031, %v1087
      %v1094 = vadd.f32 %v1032, %v1089
      %1095 = vrot.lane.b32.xlu0 %v906, 1
      %v1096 = vpop.permute.xlu0 %1095
      %1097 = vrot.lane.b32.xlu0 %v907, 1
      %v1098 = vpop.permute.xlu0 %1097
      %v1099 = vsel %vm540, %v1096, %v1098
      %v1101 = vsel %vm542, 0, %v1096
      %s1102 = scalar_lea.vmem %s4, 6
      %v1103 = vld [vmem:[%s1102] sm:$0x3]
      %v1105 = vsel %vm372, %v1103, 0
      %v1107 = vsel %vm376, %v1101, 0
      %v1110 = vsel %vm376, %v1099, 0
      %1112 = vmatprep.subr.bf16.mxu0 0
      %1113 = vmatpush1.bf16.msra.mxu0 0
      %1114 = vmatprep.subr.bf16.mxu0 0
      %1115 = vmatpush1.bf16.msra.mxu0 0
      %1116 = vmatprep.subr.bf16.mxu0 0
      %1117 = vmatpush1.bf16.msra.mxu0 0
      %1118 = vmatprep.subr.bf16.mxu0 0
      %1119 = vmatpush1.bf16.msra.mxu0 0
      %1120 = vmatprep.subr.bf16.mxu0 0
      %1121 = vmatpush1.bf16.msra.mxu0 0
      %1122 = vmatprep.subr.bf16.mxu0 0
      %1123 = vmatpush1.bf16.msra.mxu0 0
      %1124 = vmatprep.subr.bf16.mxu0 0
      %1125 = vmatpush1.bf16.msra.mxu0 0
      %1126 = vmatprep.subr.bf16.mxu0 %v1110
      %1127 = vmatpush1.bf16.msra.mxu0 %v1107
      %1128 = vmatprep.subr.bf16.mxu0 0
      %1129 = vmatpush2.bf16.msra.mxu0 0
      %1130 = vmatprep.subr.bf16.mxu0 0
      %1131 = vmatpush2.bf16.msra.mxu0 0
      %1132 = vmatprep.subr.bf16.mxu0 0
      %1133 = vmatpush2.bf16.msra.mxu0 0
      %1134 = vmatprep.subr.bf16.mxu0 0
      %1135 = vmatpush2.bf16.msra.mxu0 0
      %1136 = vmatprep.subr.bf16.mxu0 0
      %1137 = vmatpush2.bf16.msra.mxu0 0
      %1138 = vmatprep.subr.bf16.mxu0 0
      %1139 = vmatpush2.bf16.msra.mxu0 0
      %1140 = vmatprep.subr.bf16.mxu0 0
      %1141 = vmatpush2.bf16.msra.mxu0 0
      %1142 = vmatprep.subr.bf16.mxu0 0
      %1143 = vmatpush2.bf16.msra.mxu0 0
      %1144 = vmatprep.mubr.bf16.mxu0 0
      %1145 = vmatmul.mubr.bf16.gmra.mxu0 %v1105
      %v1146 = vpop.f32.mrf.mxu0
      %v1147 = vadd.f32 0.0, %v1146
      %v1148 = vpop.f32.mrf.mxu0
      %v1149 = vadd.f32 0.0, %v1148
      %v1150 = vpop.f32.mrf.mxu0
      %v1151 = vpop.f32.mrf.mxu0
      %1152 = vdwg.mxu0
      %v1153 = vadd.f32 %v1093, %v1147
      %v1154 = vadd.f32 %v1094, %v1149
      %s1155 = scalar_lea.vmem %s4, 8
      %v1156 = vld [vmem:[%s1155] sm:$0x3]
      %v1158 = vsel %vm372, %v1156, 0
      %v1161 = vsel %vm376, %v904, 0
      %v1164 = vsel %vm376, %v905, 0
      %1166 = vmatprep.subr.bf16.mxu0 0
      %1167 = vmatpush1.bf16.msra.mxu0 0
      %1168 = vmatprep.subr.bf16.mxu0 0
      %1169 = vmatpush1.bf16.msra.mxu0 0
      %1170 = vmatprep.subr.bf16.mxu0 0
      %1171 = vmatpush1.bf16.msra.mxu0 0
      %1172 = vmatprep.subr.bf16.mxu0 0
      %1173 = vmatpush1.bf16.msra.mxu0 0
      %1174 = vmatprep.subr.bf16.mxu0 0
      %1175 = vmatpush1.bf16.msra.mxu0 0
      %1176 = vmatprep.subr.bf16.mxu0 0
      %1177 = vmatpush1.bf16.msra.mxu0 0
      %1178 = vmatprep.subr.bf16.mxu0 0
      %1179 = vmatpush1.bf16.msra.mxu0 0
      %1180 = vmatprep.subr.bf16.mxu0 %v1164
      %1181 = vmatpush1.bf16.msra.mxu0 %v1161
      %1182 = vmatprep.subr.bf16.mxu0 0
      %1183 = vmatpush2.bf16.msra.mxu0 0
      %1184 = vmatprep.subr.bf16.mxu0 0
      %1185 = vmatpush2.bf16.msra.mxu0 0
      %1186 = vmatprep.subr.bf16.mxu0 0
      %1187 = vmatpush2.bf16.msra.mxu0 0
      %1188 = vmatprep.subr.bf16.mxu0 0
      %1189 = vmatpush2.bf16.msra.mxu0 0
      %1190 = vmatprep.subr.bf16.mxu0 0
      %1191 = vmatpush2.bf16.msra.mxu0 0
      %1192 = vmatprep.subr.bf16.mxu0 0
      %1193 = vmatpush2.bf16.msra.mxu0 0
      %1194 = vmatprep.subr.bf16.mxu0 0
      %1195 = vmatpush2.bf16.msra.mxu0 0
      %1196 = vmatprep.subr.bf16.mxu0 0
      %1197 = vmatpush2.bf16.msra.mxu0 0
      %1198 = vmatprep.mubr.bf16.mxu0 0
      %1199 = vmatmul.mubr.bf16.gmra.mxu0 %v1158
      %v1200 = vpop.f32.mrf.mxu0
      %v1201 = vadd.f32 0.0, %v1200
      %v1202 = vpop.f32.mrf.mxu0
      %v1203 = vadd.f32 0.0, %v1202
      %v1204 = vpop.f32.mrf.mxu0
      %v1205 = vpop.f32.mrf.mxu0
      %1206 = vdwg.mxu0
      %v1207 = vadd.f32 %v1153, %v1201
      %v1208 = vadd.f32 %v1154, %v1203
      %1209 = vrot.lane.b32.xlu0 %v908, 127
      %v1210 = vpop.permute.xlu0 %1209
      %1211 = vrot.lane.b32.xlu0 %v909, 127
      %v1212 = vpop.permute.xlu0 %1211
      %v1213 = vsel %vm656, %v1210, %v1212
      %v1215 = vsel %vm658, %v1212, 0
      %s1216 = scalar_lea.vmem %s4, 10
      %v1217 = vld [vmem:[%s1216] sm:$0x3]
      %v1219 = vsel %vm372, %v1217, 0
      %v1222 = vsel %vm376, %v1213, 0
      %v1224 = vsel %vm376, %v1215, 0
      %1226 = vmatprep.subr.bf16.mxu0 0
      %1227 = vmatpush1.bf16.msra.mxu0 0
      %1228 = vmatprep.subr.bf16.mxu0 0
      %1229 = vmatpush1.bf16.msra.mxu0 0
      %1230 = vmatprep.subr.bf16.mxu0 0
      %1231 = vmatpush1.bf16.msra.mxu0 0
      %1232 = vmatprep.subr.bf16.mxu0 0
      %1233 = vmatpush1.bf16.msra.mxu0 0
      %1234 = vmatprep.subr.bf16.mxu0 0
      %1235 = vmatpush1.bf16.msra.mxu0 0
      %1236 = vmatprep.subr.bf16.mxu0 0
      %1237 = vmatpush1.bf16.msra.mxu0 0
      %1238 = vmatprep.subr.bf16.mxu0 0
      %1239 = vmatpush1.bf16.msra.mxu0 0
      %1240 = vmatprep.subr.bf16.mxu0 %v1224
      %1241 = vmatpush1.bf16.msra.mxu0 %v1222
      %1242 = vmatprep.subr.bf16.mxu0 0
      %1243 = vmatpush2.bf16.msra.mxu0 0
      %1244 = vmatprep.subr.bf16.mxu0 0
      %1245 = vmatpush2.bf16.msra.mxu0 0
      %1246 = vmatprep.subr.bf16.mxu0 0
      %1247 = vmatpush2.bf16.msra.mxu0 0
      %1248 = vmatprep.subr.bf16.mxu0 0
      %1249 = vmatpush2.bf16.msra.mxu0 0
      %1250 = vmatprep.subr.bf16.mxu0 0
      %1251 = vmatpush2.bf16.msra.mxu0 0
      %1252 = vmatprep.subr.bf16.mxu0 0
      %1253 = vmatpush2.bf16.msra.mxu0 0
      %1254 = vmatprep.subr.bf16.mxu0 0
      %1255 = vmatpush2.bf16.msra.mxu0 0
      %1256 = vmatprep.subr.bf16.mxu0 0
      %1257 = vmatpush2.bf16.msra.mxu0 0
      %1258 = vmatprep.mubr.bf16.mxu0 0
      %1259 = vmatmul.mubr.bf16.gmra.mxu0 %v1219
      %v1260 = vpop.f32.mrf.mxu0
      %v1261 = vadd.f32 0.0, %v1260
      %v1262 = vpop.f32.mrf.mxu0
      %v1263 = vadd.f32 0.0, %v1262
      %v1264 = vpop.f32.mrf.mxu0
      %v1265 = vpop.f32.mrf.mxu0
      %1266 = vdwg.mxu0
      %v1267 = vadd.f32 %v1207, %v1261
      %v1268 = vadd.f32 %v1208, %v1263
      %1269 = vrot.lane.b32.xlu0 %v906, 113
      %v1270 = vpop.permute.xlu0 %1269
      %1271 = vrot.lane.b32.xlu0 %v907, 113
      %v1272 = vpop.permute.xlu0 %1271
      %v1273 = vsel %vm718, %v1270, %v1272
      %v1275 = vsel %vm720, %v1272, 0
      %s1276 = scalar_lea.vmem %s4, 12
      %v1277 = vld [vmem:[%s1276] sm:$0x3]
      %v1279 = vsel %vm372, %v1277, 0
      %v1282 = vsel %vm376, %v1273, 0
      %v1284 = vsel %vm376, %v1275, 0
      %1286 = vmatprep.subr.bf16.mxu0 0
      %1287 = vmatpush1.bf16.msra.mxu0 0
      %1288 = vmatprep.subr.bf16.mxu0 0
      %1289 = vmatpush1.bf16.msra.mxu0 0
      %1290 = vmatprep.subr.bf16.mxu0 0
      %1291 = vmatpush1.bf16.msra.mxu0 0
      %1292 = vmatprep.subr.bf16.mxu0 0
      %1293 = vmatpush1.bf16.msra.mxu0 0
      %1294 = vmatprep.subr.bf16.mxu0 0
      %1295 = vmatpush1.bf16.msra.mxu0 0
      %1296 = vmatprep.subr.bf16.mxu0 0
      %1297 = vmatpush1.bf16.msra.mxu0 0
      %1298 = vmatprep.subr.bf16.mxu0 0
      %1299 = vmatpush1.bf16.msra.mxu0 0
      %1300 = vmatprep.subr.bf16.mxu0 %v1284
      %1301 = vmatpush1.bf16.msra.mxu0 %v1282
      %1302 = vmatprep.subr.bf16.mxu0 0
      %1303 = vmatpush2.bf16.msra.mxu0 0
      %1304 = vmatprep.subr.bf16.mxu0 0
      %1305 = vmatpush2.bf16.msra.mxu0 0
      %1306 = vmatprep.subr.bf16.mxu0 0
      %1307 = vmatpush2.bf16.msra.mxu0 0
      %1308 = vmatprep.subr.bf16.mxu0 0
      %1309 = vmatpush2.bf16.msra.mxu0 0
      %1310 = vmatprep.subr.bf16.mxu0 0
      %1311 = vmatpush2.bf16.msra.mxu0 0
      %1312 = vmatprep.subr.bf16.mxu0 0
      %1313 = vmatpush2.bf16.msra.mxu0 0
      %1314 = vmatprep.subr.bf16.mxu0 0
      %1315 = vmatpush2.bf16.msra.mxu0 0
      %1316 = vmatprep.subr.bf16.mxu0 0
      %1317 = vmatpush2.bf16.msra.mxu0 0
      %1318 = vmatprep.mubr.bf16.mxu0 0
      %1319 = vmatmul.mubr.bf16.gmra.mxu0 %v1279
      %v1320 = vpop.f32.mrf.mxu0
      %v1321 = vadd.f32 0.0, %v1320
      %v1322 = vpop.f32.mrf.mxu0
      %v1323 = vadd.f32 0.0, %v1322
      %v1324 = vpop.f32.mrf.mxu0
      %v1325 = vpop.f32.mrf.mxu0
      %1326 = vdwg.mxu0
      %v1327 = vadd.f32 %v1267, %v1321
      %v1328 = vadd.f32 %v1268, %v1323
      %1329 = vrot.lane.b32.xlu0 %v904, 112
      %v1330 = vpop.permute.xlu0 %1329
      %1331 = vrot.lane.b32.xlu0 %v905, 112
      %v1332 = vpop.permute.xlu0 %1331
      %v1333 = vsel %vm780, %v1330, %v1332
      %v1335 = vsel %vm782, %v1332, 0
      %s1336 = scalar_lea.vmem %s4, 14
      %v1337 = vld [vmem:[%s1336] sm:$0x3]
      %v1339 = vsel %vm372, %v1337, 0
      %v1342 = vsel %vm376, %v1333, 0
      %v1344 = vsel %vm376, %v1335, 0
      %1346 = vmatprep.subr.bf16.mxu0 0
      %1347 = vmatpush1.bf16.msra.mxu0 0
      %1348 = vmatprep.subr.bf16.mxu0 0
      %1349 = vmatpush1.bf16.msra.mxu0 0
      %1350 = vmatprep.subr.bf16.mxu0 0
      %1351 = vmatpush1.bf16.msra.mxu0 0
      %1352 = vmatprep.subr.bf16.mxu0 0
      %1353 = vmatpush1.bf16.msra.mxu0 0
      %1354 = vmatprep.subr.bf16.mxu0 0
      %1355 = vmatpush1.bf16.msra.mxu0 0
      %1356 = vmatprep.subr.bf16.mxu0 0
      %1357 = vmatpush1.bf16.msra.mxu0 0
      %1358 = vmatprep.subr.bf16.mxu0 0
      %1359 = vmatpush1.bf16.msra.mxu0 0
      %1360 = vmatprep.subr.bf16.mxu0 %v1344
      %1361 = vmatpush1.bf16.msra.mxu0 %v1342
      %1362 = vmatprep.subr.bf16.mxu0 0
      %1363 = vmatpush2.bf16.msra.mxu0 0
      %1364 = vmatprep.subr.bf16.mxu0 0
      %1365 = vmatpush2.bf16.msra.mxu0 0
      %1366 = vmatprep.subr.bf16.mxu0 0
      %1367 = vmatpush2.bf16.msra.mxu0 0
      %1368 = vmatprep.subr.bf16.mxu0 0
      %1369 = vmatpush2.bf16.msra.mxu0 0
      %1370 = vmatprep.subr.bf16.mxu0 0
      %1371 = vmatpush2.bf16.msra.mxu0 0
      %1372 = vmatprep.subr.bf16.mxu0 0
      %1373 = vmatpush2.bf16.msra.mxu0 0
      %1374 = vmatprep.subr.bf16.mxu0 0
      %1375 = vmatpush2.bf16.msra.mxu0 0
      %1376 = vmatprep.subr.bf16.mxu0 0
      %1377 = vmatpush2.bf16.msra.mxu0 0
      %1378 = vmatprep.mubr.bf16.mxu0 0
      %1379 = vmatmul.mubr.bf16.gmra.mxu0 %v1339
      %v1380 = vpop.f32.mrf.mxu0
      %v1381 = vadd.f32 0.0, %v1380
      %v1382 = vpop.f32.mrf.mxu0
      %v1383 = vadd.f32 0.0, %v1382
      %v1384 = vpop.f32.mrf.mxu0
      %v1385 = vpop.f32.mrf.mxu0
      %1386 = vdwg.mxu0
      %v1387 = vadd.f32 %v1327, %v1381
      %v1388 = vadd.f32 %v1328, %v1383
      %1389 = vrot.lane.b32.xlu0 %v908, 111
      %v1390 = vpop.permute.xlu0 %1389
      %1391 = vrot.lane.b32.xlu0 %v909, 111
      %v1392 = vpop.permute.xlu0 %1391
      %v1393 = vsel %vm842, %v1390, %v1392
      %v1395 = vsel %vm844, %v1392, 0
      %s1396 = scalar_lea.vmem %s4, 16
      %v1397 = vld [vmem:[%s1396] sm:$0x3]
      %v1399 = vsel %vm372, %v1397, 0
      %v1402 = vsel %vm376, %v1393, 0
      %v1404 = vsel %vm376, %v1395, 0
      %1406 = vmatprep.subr.bf16.mxu0 0
      %1407 = vmatpush1.bf16.msra.mxu0 0
      %1408 = vmatprep.subr.bf16.mxu0 0
      %1409 = vmatpush1.bf16.msra.mxu0 0
      %1410 = vmatprep.subr.bf16.mxu0 0
      %1411 = vmatpush1.bf16.msra.mxu0 0
      %1412 = vmatprep.subr.bf16.mxu0 0
      %1413 = vmatpush1.bf16.msra.mxu0 0
      %1414 = vmatprep.subr.bf16.mxu0 0
      %1415 = vmatpush1.bf16.msra.mxu0 0
      %1416 = vmatprep.subr.bf16.mxu0 0
      %1417 = vmatpush1.bf16.msra.mxu0 0
      %1418 = vmatprep.subr.bf16.mxu0 0
      %1419 = vmatpush1.bf16.msra.mxu0 0
      %1420 = vmatprep.subr.bf16.mxu0 %v1404
      %1421 = vmatpush1.bf16.msra.mxu0 %v1402
      %1422 = vmatprep.subr.bf16.mxu0 0
      %1423 = vmatpush2.bf16.msra.mxu0 0
      %1424 = vmatprep.subr.bf16.mxu0 0
      %1425 = vmatpush2.bf16.msra.mxu0 0
      %1426 = vmatprep.subr.bf16.mxu0 0
      %1427 = vmatpush2.bf16.msra.mxu0 0
      %1428 = vmatprep.subr.bf16.mxu0 0
      %1429 = vmatpush2.bf16.msra.mxu0 0
      %1430 = vmatprep.subr.bf16.mxu0 0
      %1431 = vmatpush2.bf16.msra.mxu0 0
      %1432 = vmatprep.subr.bf16.mxu0 0
      %1433 = vmatpush2.bf16.msra.mxu0 0
      %1434 = vmatprep.subr.bf16.mxu0 0
      %1435 = vmatpush2.bf16.msra.mxu0 0
      %1436 = vmatprep.subr.bf16.mxu0 0
      %1437 = vmatpush2.bf16.msra.mxu0 0
      %1438 = vmatprep.mubr.bf16.mxu0 0
      %1439 = vmatmul.mubr.bf16.gmra.mxu0 %v1399
      %v1440 = vpop.f32.mrf.mxu0
      %v1441 = vadd.f32 0.0, %v1440
      %v1442 = vpop.f32.mrf.mxu0
      %v1443 = vadd.f32 0.0, %v1442
      %v1444 = vpop.f32.mrf.mxu0
      %v1445 = vpop.f32.mrf.mxu0
      %1446 = vdwg.mxu0
      %v1447 = vadd.f32 %v1387, %v1441
      %v1448 = vadd.f32 %v1388, %v1443
      %vm1449 = vcmask 1043456
      %v1450 = vsel %vm1449, %v1447, 0.0
      %v1451 = vsel %vm1449, %v1448, 0.0
      %v1452 = vadd.f32 %v1450, %v1451
      %1453 = vadd.xlane.f32.xlu0 %v1452
      %v1454 = vpop.xlane.xlu0 %1453
      %v1455 = vmul.f32 %v1454, 0.00390625
      %v1456 = vsub.f32 %v1447, %v1455
      %v1457 = vsub.f32 %v1448, %v1455
      %v1458 = vmul.f32 %v1456, %v1456
      %v1459 = vmul.f32 %v1457, %v1457
      %v1460 = vsel %vm1449, %v1458, 0.0
      %v1461 = vsel %vm1449, %v1459, 0.0
      %v1462 = vadd.f32 %v1460, %v1461
      %1463 = vadd.xlane.f32.xlu0 %v1462
      %v1464 = vpop.xlane.xlu0 %1463
      %v1465 = vsel %vm542, %v1455, %v1464
      %vm1466 = vcmask 11264
      %1467 = vst.msk [vmem:[%s282] sm:$0xf] %vm1466, %v1465
      %v1468 = vpack.c.bf16 %v1447, %v1447
      %v1469 = vpack.c.bf16 %v1448, %v1448
      %v1472 = vcombine.low %v1468, %v1469
      %v1474 = vunpack.c.l.s4 1983009808
      %v1475 = vunpack.c.0.s8 %v1474
      %v1476 = vlaneseq
      %v1477 = vshrl.u32 %v1476, 7
      %v1478 = vsub.s32 %v1475, %v1477
      %v1479 = vrot.slane %v1472, %v1478
      %1481 = vst [vmem:[%s278] sm:$0xf] %v1479
      %p1482 = scmp.lt.s32.totalorder %s18, 1
      %s1483 = scalar_select %p1482, %s18, 1
      %s1484 = smul.addr %s1483, 2
      %s1485 = smul.addr %s1484, 2
      %s1486 = scalar_lea.vmem %s5, %s1485
      %p1487 = scmp.lt.s32.totalorder %s18, 1
      %s1488 = scalar_select %p1487, %s18, 1
      %s1489 = smul.addr %s1488, 4
      %s1490 = scalar_lea.vmem %s6, %s1489
      // Predicated region
      $region41: #{up_forward.3} parent=39 // pred_check
        %p1491 = pneg %p151
      $region42: #{up_forward.3} parent=39 // pred_check_branch
        %1493 = sbr.rel (%p1491) target = $region44
      $region43: #{up_forward.3} parent=39 // pred_region
        _
      $region44: #{up_forward.3} parent=39 // pred_fallthru
        _
      // Predicated region
      $region45: #{up_forward.3} parent=39 // pred_check
        %p1494 = pneg %p177
      $region46: #{up_forward.3} parent=39 // pred_check_branch
        %1496 = sbr.rel (%p1494) target = $region48
      $region47: #{up_forward.3} parent=39 // pred_region
        _
      $region48: #{up_forward.3} parent=39 // pred_fallthru
        _
    $region40: #{up_forward.3} parent=5 // pred_fallthru
      _
    %p1497 = scmp.le.s32.totalorder 2, %s13
    // Predicated region
    $region49: #{up_forward.3} parent=5 // pred_check
      %p1498 = pneg %p1497
    $region50: #{up_forward.3} parent=5 // pred_check_branch
      %1500 = sbr.rel (%p1498) target = $region52
    $region51: #{up_forward.3} parent=5 // pred_region
      %s1501 = ssub.s32 %s13, 2
      // Predicated region
      $region53: #{up_forward.3} parent=51 // pred_check
        %p1502 = pneg %p157
      $region54: #{up_forward.3} parent=51 // pred_check_branch
        %1504 = sbr.rel (%p1502) target = $region56
      $region55: #{up_forward.3} parent=51 // pred_region
        %p1505 = scmp.lt.s32.totalorder %s19, 1
        %s1506 = scalar_select %p1505, %s19, 1
        %s1507 = smul.addr %s1506, 2
        %s1508 = smul.addr %s1507, 2
        %s1509 = scalar_lea.vmem %s5, %s1508
      $region56: #{up_forward.3} parent=51 // pred_fallthru
        _
      // Predicated region
      $region57: #{up_forward.3} parent=51 // pred_check
        %p1510 = pneg %p183
      $region58: #{up_forward.3} parent=51 // pred_check_branch
        %1512 = sbr.rel (%p1510) target = $region60
      $region59: #{up_forward.3} parent=51 // pred_region
        %p1513 = scmp.lt.s32.totalorder %s19, 1
        %s1514 = scalar_select %p1513, %s19, 1
        %s1515 = smul.addr %s1514, 4
        %s1516 = scalar_lea.vmem %s6, %s1515
      $region60: #{up_forward.3} parent=51 // pred_fallthru
        _
    $region52: #{up_forward.3} parent=5 // pred_fallthru
      _
  $region6: #{up_forward.3} parent=0 // loop_footer
    %s17 = sadd.s32 1, %s13
  $region7: #{up_forward.3} parent=0 // loop_footer_branch
    %12 = sbr.rel target = $region3
  $region8: #{up_forward.3} parent=0 // loop_exit
    _

</llo_original>
